<compile_context>
chip_gen: v5e
topology: v5e:2x2
jax: 0.10.0
libtpu: 0.0.40
codegen_flags: <defaults>
</compile_context>

<pallas_src>
import jax
import jax.numpy as jnp
from jax.experimental import pallas as pl
from jax.experimental.pallas import tpu as pltpu

GROUPS = 32
EPS = 1e-6


# ----------------------------- in-kernel helpers -----------------------------

def _groupnorm_swish(x2d, M, gamma, beta):
    """GroupNorm(32, eps=1e-6, affine) + swish on a (P, C) f32 pixel slab.

    M: (C, G) 0/1 group-membership matrix; gamma/beta: (1, C).
    Centered two-pass variance (no E[x^2]-E[x]^2 cancellation).
    """
    P, C = x2d.shape
    G = M.shape[1]
    n = P * (C // G)

    def group_bcast(stat_c):
        # per-channel sums -> per-group mean -> broadcast back to channels
        g = jnp.dot(stat_c, M, preferred_element_type=jnp.float32) / n        # (1, G)
        return jax.lax.dot_general(g, M, (((1,), (1,)), ((), ())),
                                   preferred_element_type=jnp.float32)        # (1, C)

    s = jnp.sum(x2d, axis=0, keepdims=True)                                    # (1, C)
    mean_c = group_bcast(s)
    d = x2d - mean_c
    ss = jnp.sum(d * d, axis=0, keepdims=True)                                 # (1, C)
    var_c = group_bcast(ss)                                                    # biased var (torch)
    y = d * jax.lax.rsqrt(var_c + EPS) * gamma + beta
    return y * jax.nn.sigmoid(y)                                               # swish


def _conv3x3(y2d, H, W, pad_ref, w_ref):
    """3x3 'SAME' conv as 9 accumulating bf16 MXU matmuls (K = C), no im2col slab.

    y2d:     (H*W, C) f32 activation
    pad_ref: VMEM scratch (H+2, W+2, C) bf16 (1-px zero halo maintained here)
    w_ref:   (9, C, Cout) bf16 weights, tap-major (tap = 3*dy + dx)
    returns  (H*W, Cout) f32
    """
    C = y2d.shape[-1]

    # Border-only zero (cheap: perimeter * C elems), done every step so it is
    # correct under any grid partitioning; interior is fully overwritten below.
    pad_ref[0:1, :, :] = jnp.zeros((1, W + 2, C), pad_ref.dtype)
    pad_ref[H + 1:H + 2, :, :] = jnp.zeros((1, W + 2, C), pad_ref.dtype)
    pad_ref[:, 0:1, :] = jnp.zeros((H + 2, 1, C), pad_ref.dtype)
    pad_ref[:, W + 1:W + 2, :] = jnp.zeros((H + 2, 1, C), pad_ref.dtype)

    # single f32 -> bf16 cast per pixel, written once into the padded scratch
    pad_ref[1:H + 1, 1:W + 1, :] = y2d.reshape(H, W, C).astype(pad_ref.dtype)

    acc = None
    for dy in range(3):
        for dx in range(3):
            win = pad_ref[dy:dy + H, dx:dx + W, :].reshape(H * W, C)
            part = jnp.dot(win, w_ref[3 * dy + dx],
                           preferred_element_type=jnp.float32)
            acc = part if acc is None else acc + part
    return acc


# --------------------------------- kernel ------------------------------------

def _make_resnet_block_kernel(has_nin):
    """Fused ResnetBlock kernel for one batch element (NHWC, channels on lanes)."""

    def kernel(x_ref, t_ref, g1_ref, b1_ref, m1_ref, w1_ref, cb1_ref,
               tw_ref, tb_ref, g2_ref, b2_ref, m2_ref, w2_ref, cb2_ref, *rest):
        if has_nin:
            nw_ref, nb_ref, o_ref, pad1_ref, pad2_ref = rest
        else:
            o_ref, pad1_ref, pad2_ref = rest

        _, H, W, Cin = x_ref.shape
        Cout = o_ref.shape[-1]

        x2d = x_ref[0].astype(jnp.float32).reshape(H * W, Cin)

        # ---- stage 1: GN1 + swish + conv1(3x3) + bias + temb projection ----
        y1 = _groupnorm_swish(x2d, m1_ref[...], g1_ref[...], b1_ref[...])
        h = _conv3x3(y1, H, W, pad1_ref, w1_ref) + cb1_ref[...]

        t = t_ref[0].astype(jnp.float32)
        t = t * jax.nn.sigmoid(t)                                   # swish(temb)
        h = h + (jnp.dot(t.astype(jnp.bfloat16), tw_ref[...],
                         preferred_element_type=jnp.float32) + tb_ref[...])

        # ---- stage 2: GN2 + swish + dropout(identity at eval) + conv2(3x3) --
        y2 = _groupnorm_swish(h, m2_ref[...], g2_ref[...], b2_ref[...])
        h2 = _conv3x3(y2, H, W, pad2_ref, w2_ref) + cb2_ref[...]

        # ---- shortcut (fused 1x1 nin or identity) + residual ----------------
        if has_nin:
            xs = jnp.dot(x2d.astype(jnp.bfloat16), nw_ref[...],
                         preferred_element_type=jnp.float32) + nb_ref[...]
        else:
            xs = x2d
        o_ref[0] = (h2 + xs).reshape(H, W, Cout).astype(o_ref.dtype)

    return kernel


# --------------------------- pallas_call wrapper ------------------------------

def _vmem_limit_bytes(H, W, Cin, Cout, Tch, has_nin):
    """Explicit scoped-VMEM limit sized from the block + scratch footprint."""
    bf, f32 = 2, 4
    dbuf = 2  # default double-buffering of pipelined blocks
    blocks = dbuf * (
        H * W * Cin * bf                          # x block (bf16)
        + H * W * Cout * f32                      # output block
        + Tch * f32                               # temb block
        + 9 * Cin * Cout * bf                     # conv1 weights
        + 9 * Cout * Cout * bf                    # conv2 weights
        + Tch * Cout * bf                         # temb_proj weights
        + (Cin + Cout) * GROUPS * f32             # group-membership matrices
        + (2 * Cin + 7 * Cout) * f32              # gammas / betas / biases
        + (Cin * Cout + Cout) * bf * (1 if has_nin else 0)
    )
    scratch = (H + 2) * (W + 2) * (Cin + Cout) * bf        # padded activations
    live = H * W * (Cin + 4 * Cout) * f32                  # in-flight f32 temporaries
    total = blocks + scratch + live
    return int(min(max(2 * total, 32 * 1024 * 1024), 128 * 1024 * 1024))


def resnet_block_forward(x_nchw, temb, pp):
    """ResnetBlock forward. x_nchw: (N, Cin, H, W) f32, temb: (N, Tch) f32."""
    # NCHW -> NHWC, fused with a single cast to bf16 transport.
    x = jnp.transpose(x_nchw, (0, 2, 3, 1)).astype(jnp.bfloat16)
    N, H, W, Cin = x.shape
    Cout = pp['conv1_b'].shape[-1]
    Tch = temb.shape[-1]
    temb3 = temb.reshape(N, 1, Tch).astype(jnp.float32)
    has_nin = 'nin_w' in pp

    in_specs = [
        pl.BlockSpec((1, H, W, Cin), lambda n: (n, 0, 0, 0)),     # x
        pl.BlockSpec((1, 1, Tch), lambda n: (n, 0, 0)),           # temb
        pl.BlockSpec((1, Cin), lambda n: (0, 0)),                 # norm1 gamma
        pl.BlockSpec((1, Cin), lambda n: (0, 0)),                 # norm1 beta
        pl.BlockSpec((Cin, GROUPS), lambda n: (0, 0)),            # M1
        pl.BlockSpec((9, Cin, Cout), lambda n: (0, 0, 0)),        # conv1 w (taps)
        pl.BlockSpec((1, Cout), lambda n: (0, 0)),                # conv1 b
        pl.BlockSpec((Tch, Cout), lambda n: (0, 0)),              # temb_w.T
        pl.BlockSpec((1, Cout), lambda n: (0, 0)),                # temb b
        pl.BlockSpec((1, Cout), lambda n: (0, 0)),                # norm2 gamma
        pl.BlockSpec((1, Cout), lambda n: (0, 0)),                # norm2 beta
        pl.BlockSpec((Cout, GROUPS), lambda n: (0, 0)),           # M2
        pl.BlockSpec((9, Cout, Cout), lambda n: (0, 0, 0)),       # conv2 w (taps)
        pl.BlockSpec((1, Cout), lambda n: (0, 0)),                # conv2 b
    ]
    args = [x, temb3, pp['norm1_g'], pp['norm1_b'], pp['M1'], pp['w1'],
            pp['conv1_b'], pp['temb_w_t'], pp['temb_b'], pp['norm2_g'],
            pp['norm2_b'], pp['M2'], pp['w2'], pp['conv2_b']]
    if has_nin:   # Cin != Cout -> 1x1 nin_shortcut fused into the kernel
        in_specs += [pl.BlockSpec((Cin, Cout), lambda n: (0, 0)),
                     pl.BlockSpec((1, Cout), lambda n: (0, 0))]
        args += [pp['nin_w'], pp['nin_b']]

    out = pl.pallas_call(
        _make_resnet_block_kernel(has_nin),
        out_shape=jax.ShapeDtypeStruct((N, H, W, Cout), jnp.float32),
        grid=(N,),
        in_specs=in_specs,
        out_specs=pl.BlockSpec((1, H, W, Cout), lambda n: (n, 0, 0, 0)),
        scratch_shapes=[
            pltpu.VMEM((H + 2, W + 2, Cin), jnp.bfloat16),    # zero-halo pad, stage 1
            pltpu.VMEM((H + 2, W + 2, Cout), jnp.bfloat16),   # zero-halo pad, stage 2
        ],
        compiler_params=pltpu.CompilerParams(
            dimension_semantics=("parallel",),
            vmem_limit_bytes=_vmem_limit_bytes(H, W, Cin, Cout, Tch, has_nin)),
    )(*args)
    return jnp.transpose(out, (0, 3, 1, 2))                       # NHWC -> NCHW


# ------------------------------ parameters -----------------------------------

def init_params(key, cin, cout, temb_ch):
    ks = jax.random.split(key, 12)
    nrm = lambda k, shape, s=0.05: s * jax.random.normal(k, shape, jnp.float32)
    return {
        'norm1_g': jnp.ones((cin,), jnp.float32) + nrm(ks[0], (cin,)),
        'norm1_b': nrm(ks[1], (cin,)),
        'conv1_w': nrm(ks[2], (cout, cin, 3, 3)),
        'conv1_b': nrm(ks[3], (cout,)),
        'temb_w': nrm(ks[4], (cout, temb_ch)),
        'temb_b': nrm(ks[5], (cout,)),
        'norm2_g': jnp.ones((cout,), jnp.float32) + nrm(ks[6], (cout,)),
        'norm2_b': nrm(ks[7], (cout,)),
        'conv2_w': nrm(ks[8], (cout, cout, 3, 3)),
        'conv2_b': nrm(ks[9], (cout,)),
        'nin_w': nrm(ks[10], (cout, cin, 1, 1)),
        'nin_b': nrm(ks[11], (cout,)),
    }


def prepare_params(p):
    """One-time hoisted weight reshapes/casts (done once, outside the forward)."""
    cout, cin = p['conv1_w'].shape[0], p['conv1_w'].shape[1]

    def group_matrix(C):
        cpg = C // GROUPS
        cidx = jax.lax.broadcasted_iota(jnp.int32, (C, GROUPS), 0) // cpg
        gidx = jax.lax.broadcasted_iota(jnp.int32, (C, GROUPS), 1)
        return (cidx == gidx).astype(jnp.float32)

    def conv_w(w):  # (Cout, Cin, 3, 3) -> (9, Cin, Cout), tap-major
        return jnp.transpose(w, (2, 3, 1, 0)).reshape(
            9, w.shape[1], w.shape[0]).astype(jnp.bfloat16)

    pp = {
        'M1': group_matrix(cin), 'M2': group_matrix(cout),
        'norm1_g': p['norm1_g'].reshape(1, cin).astype(jnp.float32),
        'norm1_b': p['norm1_b'].reshape(1, cin).astype(jnp.float32),
        'norm2_g': p['norm2_g'].reshape(1, cout).astype(jnp.float32),
        'norm2_b': p['norm2_b'].reshape(1, cout).astype(jnp.float32),
        'w1': conv_w(p['conv1_w']),
        'w2': conv_w(p['conv2_w']),
        'conv1_b': p['conv1_b'].reshape(1, cout).astype(jnp.float32),
        'conv2_b': p['conv2_b'].reshape(1, cout).astype(jnp.float32),
        'temb_w_t': p['temb_w'].T.astype(jnp.bfloat16),                 # (Tch, Cout)
        'temb_b': p['temb_b'].reshape(1, cout).astype(jnp.float32),
    }
    if cin != cout:  # use_conv_shortcut=False path -> 1x1 nin_shortcut
        pp['nin_w'] = p['nin_w'][:, :, 0, 0].T.astype(jnp.bfloat16)     # (Cin, Cout)
        pp['nin_b'] = p['nin_b'].reshape(1, cout).astype(jnp.float32)
    return pp


# ------------------------------ pure-JAX reference ---------------------------

def ref_forward(x_nchw, temb, p):
    x = jnp.transpose(x_nchw, (0, 2, 3, 1))

    def gn(h, g, b):
        N, H, W, C = h.shape
        hg = h.reshape(N, H, W, GROUPS, C // GROUPS)
        m = hg.mean(axis=(1, 2, 4), keepdims=True)
        v = hg.var(axis=(1, 2, 4), keepdims=True)
        return ((hg - m) / jnp.sqrt(v + EPS)).reshape(N, H, W, C) * g + b

    swish = lambda t: t * jax.nn.sigmoid(t)

    def conv(h, w, b):
        whwio = jnp.transpose(w, (2, 3, 1, 0))
        return jax.lax.conv_general_dilated(
            h, whwio, (1, 1), 'SAME',
            dimension_numbers=('NHWC', 'HWIO', 'NHWC')) + b

    h = swish(gn(x, p['norm1_g'], p['norm1_b']))
    h = conv(h, p['conv1_w'], p['conv1_b'])
    h = h + (swish(temb) @ p['temb_w'].T + p['temb_b'])[:, None, None, :]
    h = swish(gn(h, p['norm2_g'], p['norm2_b']))
    h = conv(h, p['conv2_w'], p['conv2_b'])
    cin, cout = p['conv1_w'].shape[1], p['conv1_w'].shape[0]
    xs = conv(x, p['nin_w'], p['nin_b']) if cin != cout else x
    return jnp.transpose(xs + h, (0, 3, 1, 2))


# ------------------------------ main ------------------------------------------

if __name__ == "__main__":
    root = jax.random.PRNGKey(0)
    N, H, W, Temb = 2, 8, 8, 128   # GroupNorm(32) requires channels % 32 == 0

    for case_id, (cin, cout) in enumerate([(32, 64),   # 1x1 nin-shortcut path
                                           (32, 32)]): # identity-shortcut path
        kx, kt, kp = jax.random.split(jax.random.fold_in(root, case_id), 3)
        x = jax.random.normal(kx, (N, cin, H, W), jnp.float32)
        temb = jax.random.normal(kt, (N, Temb), jnp.float32)
        raw = init_params(kp, cin, cout, Temb)
        pp = prepare_params(raw)                        # one-time weight prep

        out = jax.block_until_ready(jax.jit(resnet_block_forward)(x, temb, pp))
        assert out.shape == (N, cout, H, W)

        ref = ref_forward(x, temb, raw)
        diff = out - ref
        max_err = float(jnp.max(jnp.abs(diff)))
        rel_l2 = float(jnp.linalg.norm(diff) / jnp.linalg.norm(ref))
        # bf16 MXU matmuls + bf16 x transport vs f32 reference -> bounded error.
        assert max_err < 1e-1 and rel_l2 < 3e-2, (
            f"case {case_id}: max abs err {max_err}, rel l2 {rel_l2}")

    print("KERNEL_OK")
</pallas_src>

<mosaic_0001>
module attributes {stable_mosaic.version = 11 : i64} {
  func.func @kernel(%arg0: i32, %arg1: memref<1x8x8x32xbf16, #tpu.memory_space<vmem>>, %arg2: memref<1x1x128xf32, #tpu.memory_space<vmem>>, %arg3: memref<1x32xf32, #tpu.memory_space<vmem>>, %arg4: memref<1x32xf32, #tpu.memory_space<vmem>>, %arg5: memref<32x32xf32, #tpu.memory_space<vmem>>, %arg6: memref<9x32x64xbf16, #tpu.memory_space<vmem>>, %arg7: memref<1x64xf32, #tpu.memory_space<vmem>>, %arg8: memref<128x64xbf16, #tpu.memory_space<vmem>>, %arg9: memref<1x64xf32, #tpu.memory_space<vmem>>, %arg10: memref<1x64xf32, #tpu.memory_space<vmem>>, %arg11: memref<1x64xf32, #tpu.memory_space<vmem>>, %arg12: memref<64x32xf32, #tpu.memory_space<vmem>>, %arg13: memref<9x64x64xbf16, #tpu.memory_space<vmem>>, %arg14: memref<1x64xf32, #tpu.memory_space<vmem>>, %arg15: memref<32x64xbf16, #tpu.memory_space<vmem>>, %arg16: memref<1x64xf32, #tpu.memory_space<vmem>>, %arg17: memref<1x8x8x64xf32, #tpu.memory_space<vmem>>, %arg18: memref<10x10x32xbf16, #tpu.memory_space<vmem>>, %arg19: memref<10x10x64xbf16, #tpu.memory_space<vmem>>) attributes {dimension_semantics = [#tpu.dimension_semantics<parallel>], iteration_bounds = array<i64: 2>, scalar_prefetch = 0 : i64, scratch_operands = 2 : i64, tpu.core_type = #tpu.core_type<tc>, window_params = [{transform_indices = @transform_0, window_bounds = array<i64: 1, 8, 8, 32>}, {transform_indices = @transform_1, window_bounds = array<i64: 1, 1, 128>}, {pipeline_mode = #tpu.pipeline_mode<synchronous>, transform_indices = @transform_2, window_bounds = array<i64: 1, 32>}, {pipeline_mode = #tpu.pipeline_mode<synchronous>, transform_indices = @transform_3, window_bounds = array<i64: 1, 32>}, {pipeline_mode = #tpu.pipeline_mode<synchronous>, transform_indices = @transform_4, window_bounds = array<i64: 32, 32>}, {pipeline_mode = #tpu.pipeline_mode<synchronous>, transform_indices = @transform_5, window_bounds = array<i64: 9, 32, 64>}, {pipeline_mode = #tpu.pipeline_mode<synchronous>, transform_indices = @transform_6, window_bounds = array<i64: 1, 64>}, {pipeline_mode = #tpu.pipeline_mode<synchronous>, transform_indices = @transform_7, window_bounds = array<i64: 128, 64>}, {pipeline_mode = #tpu.pipeline_mode<synchronous>, transform_indices = @transform_8, window_bounds = array<i64: 1, 64>}, {pipeline_mode = #tpu.pipeline_mode<synchronous>, transform_indices = @transform_9, window_bounds = array<i64: 1, 64>}, {pipeline_mode = #tpu.pipeline_mode<synchronous>, transform_indices = @transform_10, window_bounds = array<i64: 1, 64>}, {pipeline_mode = #tpu.pipeline_mode<synchronous>, transform_indices = @transform_11, window_bounds = array<i64: 64, 32>}, {pipeline_mode = #tpu.pipeline_mode<synchronous>, transform_indices = @transform_12, window_bounds = array<i64: 9, 64, 64>}, {pipeline_mode = #tpu.pipeline_mode<synchronous>, transform_indices = @transform_13, window_bounds = array<i64: 1, 64>}, {pipeline_mode = #tpu.pipeline_mode<synchronous>, transform_indices = @transform_14, window_bounds = array<i64: 32, 64>}, {pipeline_mode = #tpu.pipeline_mode<synchronous>, transform_indices = @transform_15, window_bounds = array<i64: 1, 64>}, {transform_indices = @transform_16, window_bounds = array<i64: 1, 8, 8, 64>}]} {
    %c0 = arith.constant 0 : index
    %c0_0 = arith.constant 0 : index
    %c0_1 = arith.constant 0 : index
    %c0_2 = arith.constant 0 : index
    %0 = vector.load %arg1[%c0, %c0_0, %c0_1, %c0_2] : memref<1x8x8x32xbf16, #tpu.memory_space<vmem>>, vector<1x8x8x32xbf16>
    %1 = vector.shape_cast %0 : vector<1x8x8x32xbf16> to vector<8x8x32xbf16>
    %2 = arith.extf %1 : vector<8x8x32xbf16> to vector<8x8x32xf32>
    %3 = vector.shape_cast %2 : vector<8x8x32xf32> to vector<64x32xf32>
    %c0_3 = arith.constant 0 : index
    %c0_4 = arith.constant 0 : index
    %4 = vector.load %arg5[%c0_3, %c0_4] : memref<32x32xf32, #tpu.memory_space<vmem>>, vector<32x32xf32>
    %c0_5 = arith.constant 0 : index
    %c0_6 = arith.constant 0 : index
    %5 = vector.load %arg3[%c0_5, %c0_6] : memref<1x32xf32, #tpu.memory_space<vmem>>, vector<1x32xf32>
    %c0_7 = arith.constant 0 : index
    %c0_8 = arith.constant 0 : index
    %6 = vector.load %arg4[%c0_7, %c0_8] : memref<1x32xf32, #tpu.memory_space<vmem>>, vector<1x32xf32>
    %cst = arith.constant dense<0.000000e+00> : vector<32xf32>
    %7 = vector.multi_reduction <add>, %3, %cst [0] : vector<64x32xf32> to vector<32xf32>
    %8 = vector.shape_cast %7 : vector<32xf32> to vector<1x32xf32>
    %cst_9 = arith.constant dense<0.000000e+00> : vector<1x32xf32>
    %9 = tpu.matmul %8, %4, %cst_9 {dimension_numbers = #tpu.dot_dimension_numbers<[1], [0], [0], [1], [0, 0, 1, 1], [], []>} : vector<1x32xf32>, vector<32x32xf32>, vector<1x32xf32> -> vector<1x32xf32>
    %cst_10 = arith.constant 6.400000e+01 : f32
    %10 = vector.broadcast %cst_10 : f32 to vector<1x32xf32>
    %11 = arith.divf %9, %10 : vector<1x32xf32>
    %cst_11 = arith.constant dense<0.000000e+00> : vector<1x32xf32>
    %12 = tpu.matmul %11, %4, %cst_11 {dimension_numbers = #tpu.dot_dimension_numbers<[1], [1], [0], [0], [0, 0, 1, 0], [], []>} : vector<1x32xf32>, vector<32x32xf32>, vector<1x32xf32> -> vector<1x32xf32>
    %13 = vector.broadcast %12 : vector<1x32xf32> to vector<64x32xf32>
    %14 = arith.subf %3, %13 : vector<64x32xf32>
    %15 = arith.mulf %14, %14 : vector<64x32xf32>
    %cst_12 = arith.constant dense<0.000000e+00> : vector<32xf32>
    %16 = vector.multi_reduction <add>, %15, %cst_12 [0] : vector<64x32xf32> to vector<32xf32>
    %17 = vector.shape_cast %16 : vector<32xf32> to vector<1x32xf32>
    %cst_13 = arith.constant dense<0.000000e+00> : vector<1x32xf32>
    %18 = tpu.matmul %17, %4, %cst_13 {dimension_numbers = #tpu.dot_dimension_numbers<[1], [0], [0], [1], [0, 0, 1, 1], [], []>} : vector<1x32xf32>, vector<32x32xf32>, vector<1x32xf32> -> vector<1x32xf32>
    %cst_14 = arith.constant 6.400000e+01 : f32
    %19 = vector.broadcast %cst_14 : f32 to vector<1x32xf32>
    %20 = arith.divf %18, %19 : vector<1x32xf32>
    %cst_15 = arith.constant dense<0.000000e+00> : vector<1x32xf32>
    %21 = tpu.matmul %20, %4, %cst_15 {dimension_numbers = #tpu.dot_dimension_numbers<[1], [1], [0], [0], [0, 0, 1, 0], [], []>} : vector<1x32xf32>, vector<32x32xf32>, vector<1x32xf32> -> vector<1x32xf32>
    %cst_16 = arith.constant 9.99999997E-7 : f32
    %22 = vector.broadcast %cst_16 : f32 to vector<1x32xf32>
    %23 = arith.addf %21, %22 : vector<1x32xf32>
    %24 = math.rsqrt %23 : vector<1x32xf32>
    %25 = vector.broadcast %24 : vector<1x32xf32> to vector<64x32xf32>
    %26 = arith.mulf %14, %25 : vector<64x32xf32>
    %27 = vector.broadcast %5 : vector<1x32xf32> to vector<64x32xf32>
    %28 = arith.mulf %26, %27 : vector<64x32xf32>
    %29 = vector.broadcast %6 : vector<1x32xf32> to vector<64x32xf32>
    %30 = arith.addf %28, %29 : vector<64x32xf32>
    %31 = arith.negf %30 : vector<64x32xf32>
    %32 = math.exp %31 : vector<64x32xf32>
    %cst_17 = arith.constant 1.000000e+00 : f32
    %33 = vector.broadcast %cst_17 : f32 to vector<64x32xf32>
    %34 = arith.addf %33, %32 : vector<64x32xf32>
    %35 = arith.divf %33, %34 : vector<64x32xf32>
    %36 = arith.mulf %30, %35 : vector<64x32xf32>
    %cst_18 = arith.constant 0.000000e+00 : bf16
    %37 = vector.broadcast %cst_18 : bf16 to vector<1x10x32xbf16>
    %c0_19 = arith.constant 0 : index
    %c0_20 = arith.constant 0 : index
    %c0_21 = arith.constant 0 : index
    %38 = vector.load %arg18[%c0_19, %c0_20, %c0_21] : memref<10x10x32xbf16, #tpu.memory_space<vmem>>, vector<1x10x32xbf16>
    tpu.vector_store %arg18[%c0_19, %c0_20, %c0_21], %37 {strides = array<i32>} : memref<10x10x32xbf16, #tpu.memory_space<vmem>>, vector<1x10x32xbf16>,
    %cst_22 = arith.constant 0.000000e+00 : bf16
    %39 = vector.broadcast %cst_22 : bf16 to vector<1x10x32xbf16>
    %c9 = arith.constant 9 : index
    %c0_23 = arith.constant 0 : index
    %c0_24 = arith.constant 0 : index
    %40 = vector.load %arg18[%c9, %c0_23, %c0_24] : memref<10x10x32xbf16, #tpu.memory_space<vmem>>, vector<1x10x32xbf16>
    tpu.vector_store %arg18[%c9, %c0_23, %c0_24], %39 {strides = array<i32>} : memref<10x10x32xbf16, #tpu.memory_space<vmem>>, vector<1x10x32xbf16>,
    %cst_25 = arith.constant 0.000000e+00 : bf16
    %41 = vector.broadcast %cst_25 : bf16 to vector<10x1x32xbf16>
    %c0_26 = arith.constant 0 : index
    %c0_27 = arith.constant 0 : index
    %c0_28 = arith.constant 0 : index
    %42 = vector.load %arg18[%c0_26, %c0_27, %c0_28] : memref<10x10x32xbf16, #tpu.memory_space<vmem>>, vector<10x1x32xbf16>
    tpu.vector_store %arg18[%c0_26, %c0_27, %c0_28], %41 {strides = array<i32>} : memref<10x10x32xbf16, #tpu.memory_space<vmem>>, vector<10x1x32xbf16>,
    %cst_29 = arith.constant 0.000000e+00 : bf16
    %43 = vector.broadcast %cst_29 : bf16 to vector<10x1x32xbf16>
    %c0_30 = arith.constant 0 : index
    %c9_31 = arith.constant 9 : index
    %c0_32 = arith.constant 0 : index
    %44 = vector.load %arg18[%c0_30, %c9_31, %c0_32] : memref<10x10x32xbf16, #tpu.memory_space<vmem>>, vector<10x1x32xbf16>
    tpu.vector_store %arg18[%c0_30, %c9_31, %c0_32], %43 {strides = array<i32>} : memref<10x10x32xbf16, #tpu.memory_space<vmem>>, vector<10x1x32xbf16>,
    %45 = vector.shape_cast %36 : vector<64x32xf32> to vector<8x8x32xf32>
    %46 = arith.truncf %45 : vector<8x8x32xf32> to vector<8x8x32xbf16>
    %c1 = arith.constant 1 : index
    %c1_33 = arith.constant 1 : index
    %c0_34 = arith.constant 0 : index
    %47 = vector.load %arg18[%c1, %c1_33, %c0_34] : memref<10x10x32xbf16, #tpu.memory_space<vmem>>, vector<8x8x32xbf16>
    tpu.vector_store %arg18[%c1, %c1_33, %c0_34], %46 {strides = array<i32>} : memref<10x10x32xbf16, #tpu.memory_space<vmem>>, vector<8x8x32xbf16>,
    %c0_35 = arith.constant 0 : index
    %c0_36 = arith.constant 0 : index
    %c0_37 = arith.constant 0 : index
    %48 = vector.load %arg18[%c0_35, %c0_36, %c0_37] : memref<10x10x32xbf16, #tpu.memory_space<vmem>>, vector<8x8x32xbf16>
    %49 = vector.shape_cast %48 : vector<8x8x32xbf16> to vector<64x32xbf16>
    %c0_38 = arith.constant 0 : index
    %c0_39 = arith.constant 0 : index
    %c0_40 = arith.constant 0 : index
    %50 = vector.load %arg6[%c0_38, %c0_39, %c0_40] : memref<9x32x64xbf16, #tpu.memory_space<vmem>>, vector<1x32x64xbf16>
    %51 = vector.shape_cast %50 : vector<1x32x64xbf16> to vector<32x64xbf16>
    %cst_41 = arith.constant dense<0.000000e+00> : vector<64x64xf32>
    %52 = tpu.matmul %49, %51, %cst_41 {dimension_numbers = #tpu.dot_dimension_numbers<[1], [0], [0], [1], [0, 0, 1, 1], [], []>} : vector<64x32xbf16>, vector<32x64xbf16>, vector<64x64xf32> -> vector<64x64xf32>
    %c0_42 = arith.constant 0 : index
    %c1_43 = arith.constant 1 : index
    %c0_44 = arith.constant 0 : index
    %53 = vector.load %arg18[%c0_42, %c1_43, %c0_44] : memref<10x10x32xbf16, #tpu.memory_space<vmem>>, vector<8x8x32xbf16>
    %54 = vector.shape_cast %53 : vector<8x8x32xbf16> to vector<64x32xbf16>
    %c1_45 = arith.constant 1 : index
    %c0_46 = arith.constant 0 : index
    %c0_47 = arith.constant 0 : index
    %55 = vector.load %arg6[%c1_45, %c0_46, %c0_47] : memref<9x32x64xbf16, #tpu.memory_space<vmem>>, vector<1x32x64xbf16>
    %56 = vector.shape_cast %55 : vector<1x32x64xbf16> to vector<32x64xbf16>
    %cst_48 = arith.constant dense<0.000000e+00> : vector<64x64xf32>
    %57 = tpu.matmul %54, %56, %cst_48 {dimension_numbers = #tpu.dot_dimension_numbers<[1], [0], [0], [1], [0, 0, 1, 1], [], []>} : vector<64x32xbf16>, vector<32x64xbf16>, vector<64x64xf32> -> vector<64x64xf32>
    %58 = arith.addf %52, %57 : vector<64x64xf32>
    %c0_49 = arith.constant 0 : index
    %c2 = arith.constant 2 : index
    %c0_50 = arith.constant 0 : index
    %59 = vector.load %arg18[%c0_49, %c2, %c0_50] : memref<10x10x32xbf16, #tpu.memory_space<vmem>>, vector<8x8x32xbf16>
    %60 = vector.shape_cast %59 : vector<8x8x32xbf16> to vector<64x32xbf16>
    %c2_51 = arith.constant 2 : index
    %c0_52 = arith.constant 0 : index
    %c0_53 = arith.constant 0 : index
    %61 = vector.load %arg6[%c2_51, %c0_52, %c0_53] : memref<9x32x64xbf16, #tpu.memory_space<vmem>>, vector<1x32x64xbf16>
    %62 = vector.shape_cast %61 : vector<1x32x64xbf16> to vector<32x64xbf16>
    %cst_54 = arith.constant dense<0.000000e+00> : vector<64x64xf32>
    %63 = tpu.matmul %60, %62, %cst_54 {dimension_numbers = #tpu.dot_dimension_numbers<[1], [0], [0], [1], [0, 0, 1, 1], [], []>} : vector<64x32xbf16>, vector<32x64xbf16>, vector<64x64xf32> -> vector<64x64xf32>
    %64 = arith.addf %58, %63 : vector<64x64xf32>
    %c1_55 = arith.constant 1 : index
    %c0_56 = arith.constant 0 : index
    %c0_57 = arith.constant 0 : index
    %65 = vector.load %arg18[%c1_55, %c0_56, %c0_57] : memref<10x10x32xbf16, #tpu.memory_space<vmem>>, vector<8x8x32xbf16>
    %66 = vector.shape_cast %65 : vector<8x8x32xbf16> to vector<64x32xbf16>
    %c3 = arith.constant 3 : index
    %c0_58 = arith.constant 0 : index
    %c0_59 = arith.constant 0 : index
    %67 = vector.load %arg6[%c3, %c0_58, %c0_59] : memref<9x32x64xbf16, #tpu.memory_space<vmem>>, vector<1x32x64xbf16>
    %68 = vector.shape_cast %67 : vector<1x32x64xbf16> to vector<32x64xbf16>
    %cst_60 = arith.constant dense<0.000000e+00> : vector<64x64xf32>
    %69 = tpu.matmul %66, %68, %cst_60 {dimension_numbers = #tpu.dot_dimension_numbers<[1], [0], [0], [1], [0, 0, 1, 1], [], []>} : vector<64x32xbf16>, vector<32x64xbf16>, vector<64x64xf32> -> vector<64x64xf32>
    %70 = arith.addf %64, %69 : vector<64x64xf32>
    %c1_61 = arith.constant 1 : index
    %c1_62 = arith.constant 1 : index
    %c0_63 = arith.constant 0 : index
    %71 = vector.load %arg18[%c1_61, %c1_62, %c0_63] : memref<10x10x32xbf16, #tpu.memory_space<vmem>>, vector<8x8x32xbf16>
    %72 = vector.shape_cast %71 : vector<8x8x32xbf16> to vector<64x32xbf16>
    %c4 = arith.constant 4 : index
    %c0_64 = arith.constant 0 : index
    %c0_65 = arith.constant 0 : index
    %73 = vector.load %arg6[%c4, %c0_64, %c0_65] : memref<9x32x64xbf16, #tpu.memory_space<vmem>>, vector<1x32x64xbf16>
    %74 = vector.shape_cast %73 : vector<1x32x64xbf16> to vector<32x64xbf16>
    %cst_66 = arith.constant dense<0.000000e+00> : vector<64x64xf32>
    %75 = tpu.matmul %72, %74, %cst_66 {dimension_numbers = #tpu.dot_dimension_numbers<[1], [0], [0], [1], [0, 0, 1, 1], [], []>} : vector<64x32xbf16>, vector<32x64xbf16>, vector<64x64xf32> -> vector<64x64xf32>
    %76 = arith.addf %70, %75 : vector<64x64xf32>
    %c1_67 = arith.constant 1 : index
    %c2_68 = arith.constant 2 : index
    %c0_69 = arith.constant 0 : index
    %77 = vector.load %arg18[%c1_67, %c2_68, %c0_69] : memref<10x10x32xbf16, #tpu.memory_space<vmem>>, vector<8x8x32xbf16>
    %78 = vector.shape_cast %77 : vector<8x8x32xbf16> to vector<64x32xbf16>
    %c5 = arith.constant 5 : index
    %c0_70 = arith.constant 0 : index
    %c0_71 = arith.constant 0 : index
    %79 = vector.load %arg6[%c5, %c0_70, %c0_71] : memref<9x32x64xbf16, #tpu.memory_space<vmem>>, vector<1x32x64xbf16>
    %80 = vector.shape_cast %79 : vector<1x32x64xbf16> to vector<32x64xbf16>
    %cst_72 = arith.constant dense<0.000000e+00> : vector<64x64xf32>
    %81 = tpu.matmul %78, %80, %cst_72 {dimension_numbers = #tpu.dot_dimension_numbers<[1], [0], [0], [1], [0, 0, 1, 1], [], []>} : vector<64x32xbf16>, vector<32x64xbf16>, vector<64x64xf32> -> vector<64x64xf32>
    %82 = arith.addf %76, %81 : vector<64x64xf32>
    %c2_73 = arith.constant 2 : index
    %c0_74 = arith.constant 0 : index
    %c0_75 = arith.constant 0 : index
    %83 = vector.load %arg18[%c2_73, %c0_74, %c0_75] : memref<10x10x32xbf16, #tpu.memory_space<vmem>>, vector<8x8x32xbf16>
    %84 = vector.shape_cast %83 : vector<8x8x32xbf16> to vector<64x32xbf16>
    %c6 = arith.constant 6 : index
    %c0_76 = arith.constant 0 : index
    %c0_77 = arith.constant 0 : index
    %85 = vector.load %arg6[%c6, %c0_76, %c0_77] : memref<9x32x64xbf16, #tpu.memory_space<vmem>>, vector<1x32x64xbf16>
    %86 = vector.shape_cast %85 : vector<1x32x64xbf16> to vector<32x64xbf16>
    %cst_78 = arith.constant dense<0.000000e+00> : vector<64x64xf32>
    %87 = tpu.matmul %84, %86, %cst_78 {dimension_numbers = #tpu.dot_dimension_numbers<[1], [0], [0], [1], [0, 0, 1, 1], [], []>} : vector<64x32xbf16>, vector<32x64xbf16>, vector<64x64xf32> -> vector<64x64xf32>
    %88 = arith.addf %82, %87 : vector<64x64xf32>
    %c2_79 = arith.constant 2 : index
    %c1_80 = arith.constant 1 : index
    %c0_81 = arith.constant 0 : index
    %89 = vector.load %arg18[%c2_79, %c1_80, %c0_81] : memref<10x10x32xbf16, #tpu.memory_space<vmem>>, vector<8x8x32xbf16>
    %90 = vector.shape_cast %89 : vector<8x8x32xbf16> to vector<64x32xbf16>
    %c7 = arith.constant 7 : index
    %c0_82 = arith.constant 0 : index
    %c0_83 = arith.constant 0 : index
    %91 = vector.load %arg6[%c7, %c0_82, %c0_83] : memref<9x32x64xbf16, #tpu.memory_space<vmem>>, vector<1x32x64xbf16>
    %92 = vector.shape_cast %91 : vector<1x32x64xbf16> to vector<32x64xbf16>
    %cst_84 = arith.constant dense<0.000000e+00> : vector<64x64xf32>
    %93 = tpu.matmul %90, %92, %cst_84 {dimension_numbers = #tpu.dot_dimension_numbers<[1], [0], [0], [1], [0, 0, 1, 1], [], []>} : vector<64x32xbf16>, vector<32x64xbf16>, vector<64x64xf32> -> vector<64x64xf32>
    %94 = arith.addf %88, %93 : vector<64x64xf32>
    %c2_85 = arith.constant 2 : index
    %c2_86 = arith.constant 2 : index
    %c0_87 = arith.constant 0 : index
    %95 = vector.load %arg18[%c2_85, %c2_86, %c0_87] : memref<10x10x32xbf16, #tpu.memory_space<vmem>>, vector<8x8x32xbf16>
    %96 = vector.shape_cast %95 : vector<8x8x32xbf16> to vector<64x32xbf16>
    %c8 = arith.constant 8 : index
    %c0_88 = arith.constant 0 : index
    %c0_89 = arith.constant 0 : index
    %97 = vector.load %arg6[%c8, %c0_88, %c0_89] : memref<9x32x64xbf16, #tpu.memory_space<vmem>>, vector<1x32x64xbf16>
    %98 = vector.shape_cast %97 : vector<1x32x64xbf16> to vector<32x64xbf16>
    %cst_90 = arith.constant dense<0.000000e+00> : vector<64x64xf32>
    %99 = tpu.matmul %96, %98, %cst_90 {dimension_numbers = #tpu.dot_dimension_numbers<[1], [0], [0], [1], [0, 0, 1, 1], [], []>} : vector<64x32xbf16>, vector<32x64xbf16>, vector<64x64xf32> -> vector<64x64xf32>
    %100 = arith.addf %94, %99 : vector<64x64xf32>
    %c0_91 = arith.constant 0 : index
    %c0_92 = arith.constant 0 : index
    %101 = vector.load %arg7[%c0_91, %c0_92] : memref<1x64xf32, #tpu.memory_space<vmem>>, vector<1x64xf32>
    %102 = vector.broadcast %101 : vector<1x64xf32> to vector<64x64xf32>
    %103 = arith.addf %100, %102 : vector<64x64xf32>
    %c0_93 = arith.constant 0 : index
    %c0_94 = arith.constant 0 : index
    %c0_95 = arith.constant 0 : index
    %104 = vector.load %arg2[%c0_93, %c0_94, %c0_95] : memref<1x1x128xf32, #tpu.memory_space<vmem>>, vector<1x1x128xf32>
    %105 = vector.shape_cast %104 : vector<1x1x128xf32> to vector<1x128xf32>
    %106 = arith.negf %105 : vector<1x128xf32>
    %107 = math.exp %106 : vector<1x128xf32>
    %cst_96 = arith.constant 1.000000e+00 : f32
    %108 = vector.broadcast %cst_96 : f32 to vector<1x128xf32>
    %109 = arith.addf %108, %107 : vector<1x128xf32>
    %110 = arith.divf %108, %109 : vector<1x128xf32>
    %111 = arith.mulf %105, %110 : vector<1x128xf32>
    %112 = arith.truncf %111 : vector<1x128xf32> to vector<1x128xbf16>
    %c0_97 = arith.constant 0 : index
    %c0_98 = arith.constant 0 : index
    %113 = vector.load %arg8[%c0_97, %c0_98] : memref<128x64xbf16, #tpu.memory_space<vmem>>, vector<128x64xbf16>
    %cst_99 = arith.constant dense<0.000000e+00> : vector<1x64xf32>
    %114 = tpu.matmul %112, %113, %cst_99 {dimension_numbers = #tpu.dot_dimension_numbers<[1], [0], [0], [1], [0, 0, 1, 1], [], []>} : vector<1x128xbf16>, vector<128x64xbf16>, vector<1x64xf32> -> vector<1x64xf32>
    %c0_100 = arith.constant 0 : index
    %c0_101 = arith.constant 0 : index
    %115 = vector.load %arg9[%c0_100, %c0_101] : memref<1x64xf32, #tpu.memory_space<vmem>>, vector<1x64xf32>
    %116 = arith.addf %114, %115 : vector<1x64xf32>
    %117 = vector.broadcast %116 : vector<1x64xf32> to vector<64x64xf32>
    %118 = arith.addf %103, %117 : vector<64x64xf32>
    %c0_102 = arith.constant 0 : index
    %c0_103 = arith.constant 0 : index
    %119 = vector.load %arg12[%c0_102, %c0_103] : memref<64x32xf32, #tpu.memory_space<vmem>>, vector<64x32xf32>
    %c0_104 = arith.constant 0 : index
    %c0_105 = arith.constant 0 : index
    %120 = vector.load %arg10[%c0_104, %c0_105] : memref<1x64xf32, #tpu.memory_space<vmem>>, vector<1x64xf32>
    %c0_106 = arith.constant 0 : index
    %c0_107 = arith.constant 0 : index
    %121 = vector.load %arg11[%c0_106, %c0_107] : memref<1x64xf32, #tpu.memory_space<vmem>>, vector<1x64xf32>
    %cst_108 = arith.constant dense<0.000000e+00> : vector<64xf32>
    %122 = vector.multi_reduction <add>, %118, %cst_108 [0] : vector<64x64xf32> to vector<64xf32>
    %123 = vector.shape_cast %122 : vector<64xf32> to vector<1x64xf32>
    %cst_109 = arith.constant dense<0.000000e+00> : vector<1x32xf32>
    %124 = tpu.matmul %123, %119, %cst_109 {dimension_numbers = #tpu.dot_dimension_numbers<[1], [0], [0], [1], [0, 0, 1, 1], [], []>} : vector<1x64xf32>, vector<64x32xf32>, vector<1x32xf32> -> vector<1x32xf32>
    %cst_110 = arith.constant 1.280000e+02 : f32
    %125 = vector.broadcast %cst_110 : f32 to vector<1x32xf32>
    %126 = arith.divf %124, %125 : vector<1x32xf32>
    %cst_111 = arith.constant dense<0.000000e+00> : vector<1x64xf32>
    %127 = tpu.matmul %126, %119, %cst_111 {dimension_numbers = #tpu.dot_dimension_numbers<[1], [1], [0], [0], [0, 0, 1, 0], [], []>} : vector<1x32xf32>, vector<64x32xf32>, vector<1x64xf32> -> vector<1x64xf32>
    %128 = vector.broadcast %127 : vector<1x64xf32> to vector<64x64xf32>
    %129 = arith.subf %118, %128 : vector<64x64xf32>
    %130 = arith.mulf %129, %129 : vector<64x64xf32>
    %cst_112 = arith.constant dense<0.000000e+00> : vector<64xf32>
    %131 = vector.multi_reduction <add>, %130, %cst_112 [0] : vector<64x64xf32> to vector<64xf32>
    %132 = vector.shape_cast %131 : vector<64xf32> to vector<1x64xf32>
    %cst_113 = arith.constant dense<0.000000e+00> : vector<1x32xf32>
    %133 = tpu.matmul %132, %119, %cst_113 {dimension_numbers = #tpu.dot_dimension_numbers<[1], [0], [0], [1], [0, 0, 1, 1], [], []>} : vector<1x64xf32>, vector<64x32xf32>, vector<1x32xf32> -> vector<1x32xf32>
    %cst_114 = arith.constant 1.280000e+02 : f32
    %134 = vector.broadcast %cst_114 : f32 to vector<1x32xf32>
    %135 = arith.divf %133, %134 : vector<1x32xf32>
    %cst_115 = arith.constant dense<0.000000e+00> : vector<1x64xf32>
    %136 = tpu.matmul %135, %119, %cst_115 {dimension_numbers = #tpu.dot_dimension_numbers<[1], [1], [0], [0], [0, 0, 1, 0], [], []>} : vector<1x32xf32>, vector<64x32xf32>, vector<1x64xf32> -> vector<1x64xf32>
    %cst_116 = arith.constant 9.99999997E-7 : f32
    %137 = vector.broadcast %cst_116 : f32 to vector<1x64xf32>
    %138 = arith.addf %136, %137 : vector<1x64xf32>
    %139 = math.rsqrt %138 : vector<1x64xf32>
    %140 = vector.broadcast %139 : vector<1x64xf32> to vector<64x64xf32>
    %141 = arith.mulf %129, %140 : vector<64x64xf32>
    %142 = vector.broadcast %120 : vector<1x64xf32> to vector<64x64xf32>
    %143 = arith.mulf %141, %142 : vector<64x64xf32>
    %144 = vector.broadcast %121 : vector<1x64xf32> to vector<64x64xf32>
    %145 = arith.addf %143, %144 : vector<64x64xf32>
    %146 = arith.negf %145 : vector<64x64xf32>
    %147 = math.exp %146 : vector<64x64xf32>
    %cst_117 = arith.constant 1.000000e+00 : f32
    %148 = vector.broadcast %cst_117 : f32 to vector<64x64xf32>
    %149 = arith.addf %148, %147 : vector<64x64xf32>
    %150 = arith.divf %148, %149 : vector<64x64xf32>
    %151 = arith.mulf %145, %150 : vector<64x64xf32>
    %cst_118 = arith.constant 0.000000e+00 : bf16
    %152 = vector.broadcast %cst_118 : bf16 to vector<1x10x64xbf16>
    %c0_119 = arith.constant 0 : index
    %c0_120 = arith.constant 0 : index
    %c0_121 = arith.constant 0 : index
    %153 = vector.load %arg19[%c0_119, %c0_120, %c0_121] : memref<10x10x64xbf16, #tpu.memory_space<vmem>>, vector<1x10x64xbf16>
    tpu.vector_store %arg19[%c0_119, %c0_120, %c0_121], %152 {strides = array<i32>} : memref<10x10x64xbf16, #tpu.memory_space<vmem>>, vector<1x10x64xbf16>,
    %cst_122 = arith.constant 0.000000e+00 : bf16
    %154 = vector.broadcast %cst_122 : bf16 to vector<1x10x64xbf16>
    %c9_123 = arith.constant 9 : index
    %c0_124 = arith.constant 0 : index
    %c0_125 = arith.constant 0 : index
    %155 = vector.load %arg19[%c9_123, %c0_124, %c0_125] : memref<10x10x64xbf16, #tpu.memory_space<vmem>>, vector<1x10x64xbf16>
    tpu.vector_store %arg19[%c9_123, %c0_124, %c0_125], %154 {strides = array<i32>} : memref<10x10x64xbf16, #tpu.memory_space<vmem>>, vector<1x10x64xbf16>,
    %cst_126 = arith.constant 0.000000e+00 : bf16
    %156 = vector.broadcast %cst_126 : bf16 to vector<10x1x64xbf16>
    %c0_127 = arith.constant 0 : index
    %c0_128 = arith.constant 0 : index
    %c0_129 = arith.constant 0 : index
    %157 = vector.load %arg19[%c0_127, %c0_128, %c0_129] : memref<10x10x64xbf16, #tpu.memory_space<vmem>>, vector<10x1x64xbf16>
    tpu.vector_store %arg19[%c0_127, %c0_128, %c0_129], %156 {strides = array<i32>} : memref<10x10x64xbf16, #tpu.memory_space<vmem>>, vector<10x1x64xbf16>,
    %cst_130 = arith.constant 0.000000e+00 : bf16
    %158 = vector.broadcast %cst_130 : bf16 to vector<10x1x64xbf16>
    %c0_131 = arith.constant 0 : index
    %c9_132 = arith.constant 9 : index
    %c0_133 = arith.constant 0 : index
    %159 = vector.load %arg19[%c0_131, %c9_132, %c0_133] : memref<10x10x64xbf16, #tpu.memory_space<vmem>>, vector<10x1x64xbf16>
    tpu.vector_store %arg19[%c0_131, %c9_132, %c0_133], %158 {strides = array<i32>} : memref<10x10x64xbf16, #tpu.memory_space<vmem>>, vector<10x1x64xbf16>,
    %160 = vector.shape_cast %151 : vector<64x64xf32> to vector<8x8x64xf32>
    %161 = arith.truncf %160 : vector<8x8x64xf32> to vector<8x8x64xbf16>
    %c1_134 = arith.constant 1 : index
    %c1_135 = arith.constant 1 : index
    %c0_136 = arith.constant 0 : index
    %162 = vector.load %arg19[%c1_134, %c1_135, %c0_136] : memref<10x10x64xbf16, #tpu.memory_space<vmem>>, vector<8x8x64xbf16>
    tpu.vector_store %arg19[%c1_134, %c1_135, %c0_136], %161 {strides = array<i32>} : memref<10x10x64xbf16, #tpu.memory_space<vmem>>, vector<8x8x64xbf16>,
    %c0_137 = arith.constant 0 : index
    %c0_138 = arith.constant 0 : index
    %c0_139 = arith.constant 0 : index
    %163 = vector.load %arg19[%c0_137, %c0_138, %c0_139] : memref<10x10x64xbf16, #tpu.memory_space<vmem>>, vector<8x8x64xbf16>
    %164 = vector.shape_cast %163 : vector<8x8x64xbf16> to vector<64x64xbf16>
    %c0_140 = arith.constant 0 : index
    %c0_141 = arith.constant 0 : index
    %c0_142 = arith.constant 0 : index
    %165 = vector.load %arg13[%c0_140, %c0_141, %c0_142] : memref<9x64x64xbf16, #tpu.memory_space<vmem>>, vector<1x64x64xbf16>
    %166 = vector.shape_cast %165 : vector<1x64x64xbf16> to vector<64x64xbf16>
    %cst_143 = arith.constant dense<0.000000e+00> : vector<64x64xf32>
    %167 = tpu.matmul %164, %166, %cst_143 {dimension_numbers = #tpu.dot_dimension_numbers<[1], [0], [0], [1], [0, 0, 1, 1], [], []>} : vector<64x64xbf16>, vector<64x64xbf16>, vector<64x64xf32> -> vector<64x64xf32>
    %c0_144 = arith.constant 0 : index
    %c1_145 = arith.constant 1 : index
    %c0_146 = arith.constant 0 : index
    %168 = vector.load %arg19[%c0_144, %c1_145, %c0_146] : memref<10x10x64xbf16, #tpu.memory_space<vmem>>, vector<8x8x64xbf16>
    %169 = vector.shape_cast %168 : vector<8x8x64xbf16> to vector<64x64xbf16>
    %c1_147 = arith.constant 1 : index
    %c0_148 = arith.constant 0 : index
    %c0_149 = arith.constant 0 : index
    %170 = vector.load %arg13[%c1_147, %c0_148, %c0_149] : memref<9x64x64xbf16, #tpu.memory_space<vmem>>, vector<1x64x64xbf16>
    %171 = vector.shape_cast %170 : vector<1x64x64xbf16> to vector<64x64xbf16>
    %cst_150 = arith.constant dense<0.000000e+00> : vector<64x64xf32>
    %172 = tpu.matmul %169, %171, %cst_150 {dimension_numbers = #tpu.dot_dimension_numbers<[1], [0], [0], [1], [0, 0, 1, 1], [], []>} : vector<64x64xbf16>, vector<64x64xbf16>, vector<64x64xf32> -> vector<64x64xf32>
    %173 = arith.addf %167, %172 : vector<64x64xf32>
    %c0_151 = arith.constant 0 : index
    %c2_152 = arith.constant 2 : index
    %c0_153 = arith.constant 0 : index
    %174 = vector.load %arg19[%c0_151, %c2_152, %c0_153] : memref<10x10x64xbf16, #tpu.memory_space<vmem>>, vector<8x8x64xbf16>
    %175 = vector.shape_cast %174 : vector<8x8x64xbf16> to vector<64x64xbf16>
    %c2_154 = arith.constant 2 : index
    %c0_155 = arith.constant 0 : index
    %c0_156 = arith.constant 0 : index
    %176 = vector.load %arg13[%c2_154, %c0_155, %c0_156] : memref<9x64x64xbf16, #tpu.memory_space<vmem>>, vector<1x64x64xbf16>
    %177 = vector.shape_cast %176 : vector<1x64x64xbf16> to vector<64x64xbf16>
    %cst_157 = arith.constant dense<0.000000e+00> : vector<64x64xf32>
    %178 = tpu.matmul %175, %177, %cst_157 {dimension_numbers = #tpu.dot_dimension_numbers<[1], [0], [0], [1], [0, 0, 1, 1], [], []>} : vector<64x64xbf16>, vector<64x64xbf16>, vector<64x64xf32> -> vector<64x64xf32>
    %179 = arith.addf %173, %178 : vector<64x64xf32>
    %c1_158 = arith.constant 1 : index
    %c0_159 = arith.constant 0 : index
    %c0_160 = arith.constant 0 : index
    %180 = vector.load %arg19[%c1_158, %c0_159, %c0_160] : memref<10x10x64xbf16, #tpu.memory_space<vmem>>, vector<8x8x64xbf16>
    %181 = vector.shape_cast %180 : vector<8x8x64xbf16> to vector<64x64xbf16>
    %c3_161 = arith.constant 3 : index
    %c0_162 = arith.constant 0 : index
    %c0_163 = arith.constant 0 : index
    %182 = vector.load %arg13[%c3_161, %c0_162, %c0_163] : memref<9x64x64xbf16, #tpu.memory_space<vmem>>, vector<1x64x64xbf16>
    %183 = vector.shape_cast %182 : vector<1x64x64xbf16> to vector<64x64xbf16>
    %cst_164 = arith.constant dense<0.000000e+00> : vector<64x64xf32>
    %184 = tpu.matmul %181, %183, %cst_164 {dimension_numbers = #tpu.dot_dimension_numbers<[1], [0], [0], [1], [0, 0, 1, 1], [], []>} : vector<64x64xbf16>, vector<64x64xbf16>, vector<64x64xf32> -> vector<64x64xf32>
    %185 = arith.addf %179, %184 : vector<64x64xf32>
    %c1_165 = arith.constant 1 : index
    %c1_166 = arith.constant 1 : index
    %c0_167 = arith.constant 0 : index
    %186 = vector.load %arg19[%c1_165, %c1_166, %c0_167] : memref<10x10x64xbf16, #tpu.memory_space<vmem>>, vector<8x8x64xbf16>
    %187 = vector.shape_cast %186 : vector<8x8x64xbf16> to vector<64x64xbf16>
    %c4_168 = arith.constant 4 : index
    %c0_169 = arith.constant 0 : index
    %c0_170 = arith.constant 0 : index
    %188 = vector.load %arg13[%c4_168, %c0_169, %c0_170] : memref<9x64x64xbf16, #tpu.memory_space<vmem>>, vector<1x64x64xbf16>
    %189 = vector.shape_cast %188 : vector<1x64x64xbf16> to vector<64x64xbf16>
    %cst_171 = arith.constant dense<0.000000e+00> : vector<64x64xf32>
    %190 = tpu.matmul %187, %189, %cst_171 {dimension_numbers = #tpu.dot_dimension_numbers<[1], [0], [0], [1], [0, 0, 1, 1], [], []>} : vector<64x64xbf16>, vector<64x64xbf16>, vector<64x64xf32> -> vector<64x64xf32>
    %191 = arith.addf %185, %190 : vector<64x64xf32>
    %c1_172 = arith.constant 1 : index
    %c2_173 = arith.constant 2 : index
    %c0_174 = arith.constant 0 : index
    %192 = vector.load %arg19[%c1_172, %c2_173, %c0_174] : memref<10x10x64xbf16, #tpu.memory_space<vmem>>, vector<8x8x64xbf16>
    %193 = vector.shape_cast %192 : vector<8x8x64xbf16> to vector<64x64xbf16>
    %c5_175 = arith.constant 5 : index
    %c0_176 = arith.constant 0 : index
    %c0_177 = arith.constant 0 : index
    %194 = vector.load %arg13[%c5_175, %c0_176, %c0_177] : memref<9x64x64xbf16, #tpu.memory_space<vmem>>, vector<1x64x64xbf16>
    %195 = vector.shape_cast %194 : vector<1x64x64xbf16> to vector<64x64xbf16>
    %cst_178 = arith.constant dense<0.000000e+00> : vector<64x64xf32>
    %196 = tpu.matmul %193, %195, %cst_178 {dimension_numbers = #tpu.dot_dimension_numbers<[1], [0], [0], [1], [0, 0, 1, 1], [], []>} : vector<64x64xbf16>, vector<64x64xbf16>, vector<64x64xf32> -> vector<64x64xf32>
    %197 = arith.addf %191, %196 : vector<64x64xf32>
    %c2_179 = arith.constant 2 : index
    %c0_180 = arith.constant 0 : index
    %c0_181 = arith.constant 0 : index
    %198 = vector.load %arg19[%c2_179, %c0_180, %c0_181] : memref<10x10x64xbf16, #tpu.memory_space<vmem>>, vector<8x8x64xbf16>
    %199 = vector.shape_cast %198 : vector<8x8x64xbf16> to vector<64x64xbf16>
    %c6_182 = arith.constant 6 : index
    %c0_183 = arith.constant 0 : index
    %c0_184 = arith.constant 0 : index
    %200 = vector.load %arg13[%c6_182, %c0_183, %c0_184] : memref<9x64x64xbf16, #tpu.memory_space<vmem>>, vector<1x64x64xbf16>
    %201 = vector.shape_cast %200 : vector<1x64x64xbf16> to vector<64x64xbf16>
    %cst_185 = arith.constant dense<0.000000e+00> : vector<64x64xf32>
    %202 = tpu.matmul %199, %201, %cst_185 {dimension_numbers = #tpu.dot_dimension_numbers<[1], [0], [0], [1], [0, 0, 1, 1], [], []>} : vector<64x64xbf16>, vector<64x64xbf16>, vector<64x64xf32> -> vector<64x64xf32>
    %203 = arith.addf %197, %202 : vector<64x64xf32>
    %c2_186 = arith.constant 2 : index
    %c1_187 = arith.constant 1 : index
    %c0_188 = arith.constant 0 : index
    %204 = vector.load %arg19[%c2_186, %c1_187, %c0_188] : memref<10x10x64xbf16, #tpu.memory_space<vmem>>, vector<8x8x64xbf16>
    %205 = vector.shape_cast %204 : vector<8x8x64xbf16> to vector<64x64xbf16>
    %c7_189 = arith.constant 7 : index
    %c0_190 = arith.constant 0 : index
    %c0_191 = arith.constant 0 : index
    %206 = vector.load %arg13[%c7_189, %c0_190, %c0_191] : memref<9x64x64xbf16, #tpu.memory_space<vmem>>, vector<1x64x64xbf16>
    %207 = vector.shape_cast %206 : vector<1x64x64xbf16> to vector<64x64xbf16>
    %cst_192 = arith.constant dense<0.000000e+00> : vector<64x64xf32>
    %208 = tpu.matmul %205, %207, %cst_192 {dimension_numbers = #tpu.dot_dimension_numbers<[1], [0], [0], [1], [0, 0, 1, 1], [], []>} : vector<64x64xbf16>, vector<64x64xbf16>, vector<64x64xf32> -> vector<64x64xf32>
    %209 = arith.addf %203, %208 : vector<64x64xf32>
    %c2_193 = arith.constant 2 : index
    %c2_194 = arith.constant 2 : index
    %c0_195 = arith.constant 0 : index
    %210 = vector.load %arg19[%c2_193, %c2_194, %c0_195] : memref<10x10x64xbf16, #tpu.memory_space<vmem>>, vector<8x8x64xbf16>
    %211 = vector.shape_cast %210 : vector<8x8x64xbf16> to vector<64x64xbf16>
    %c8_196 = arith.constant 8 : index
    %c0_197 = arith.constant 0 : index
    %c0_198 = arith.constant 0 : index
    %212 = vector.load %arg13[%c8_196, %c0_197, %c0_198] : memref<9x64x64xbf16, #tpu.memory_space<vmem>>, vector<1x64x64xbf16>
    %213 = vector.shape_cast %212 : vector<1x64x64xbf16> to vector<64x64xbf16>
    %cst_199 = arith.constant dense<0.000000e+00> : vector<64x64xf32>
    %214 = tpu.matmul %211, %213, %cst_199 {dimension_numbers = #tpu.dot_dimension_numbers<[1], [0], [0], [1], [0, 0, 1, 1], [], []>} : vector<64x64xbf16>, vector<64x64xbf16>, vector<64x64xf32> -> vector<64x64xf32>
    %215 = arith.addf %209, %214 : vector<64x64xf32>
    %c0_200 = arith.constant 0 : index
    %c0_201 = arith.constant 0 : index
    %216 = vector.load %arg14[%c0_200, %c0_201] : memref<1x64xf32, #tpu.memory_space<vmem>>, vector<1x64xf32>
    %217 = vector.broadcast %216 : vector<1x64xf32> to vector<64x64xf32>
    %218 = arith.addf %215, %217 : vector<64x64xf32>
    %219 = arith.truncf %3 : vector<64x32xf32> to vector<64x32xbf16>
    %c0_202 = arith.constant 0 : index
    %c0_203 = arith.constant 0 : index
    %220 = vector.load %arg15[%c0_202, %c0_203] : memref<32x64xbf16, #tpu.memory_space<vmem>>, vector<32x64xbf16>
    %cst_204 = arith.constant dense<0.000000e+00> : vector<64x64xf32>
    %221 = tpu.matmul %219, %220, %cst_204 {dimension_numbers = #tpu.dot_dimension_numbers<[1], [0], [0], [1], [0, 0, 1, 1], [], []>} : vector<64x32xbf16>, vector<32x64xbf16>, vector<64x64xf32> -> vector<64x64xf32>
    %c0_205 = arith.constant 0 : index
    %c0_206 = arith.constant 0 : index
    %222 = vector.load %arg16[%c0_205, %c0_206] : memref<1x64xf32, #tpu.memory_space<vmem>>, vector<1x64xf32>
    %223 = vector.broadcast %222 : vector<1x64xf32> to vector<64x64xf32>
    %224 = arith.addf %221, %223 : vector<64x64xf32>
    %225 = arith.addf %218, %224 : vector<64x64xf32>
    %226 = vector.shape_cast %225 : vector<64x64xf32> to vector<8x8x64xf32>
    %c0_207 = arith.constant 0 : index
    %c0_208 = arith.constant 0 : index
    %c0_209 = arith.constant 0 : index
    %c0_210 = arith.constant 0 : index
    %227 = vector.load %arg17[%c0_207, %c0_208, %c0_209, %c0_210] : memref<1x8x8x64xf32, #tpu.memory_space<vmem>>, vector<1x8x8x64xf32>
    %228 = vector.shape_cast %227 : vector<1x8x8x64xf32> to vector<8x8x64xf32>
    %229 = vector.shape_cast %226 : vector<8x8x64xf32> to vector<1x8x8x64xf32>
    tpu.vector_store %arg17[%c0_207, %c0_208, %c0_209, %c0_210], %229 {strides = array<i32>} : memref<1x8x8x64xf32, #tpu.memory_space<vmem>>, vector<1x8x8x64xf32>,
    return
  }
  func.func @transform_0(%arg0: i32) -> (i32, i32, i32, i32) {
    %c0_i32 = arith.constant 0 : i32
    %c0_i32_0 = arith.constant 0 : i32
    %c0_i32_1 = arith.constant 0 : i32
    %c0_i32_2 = arith.constant 0 : i32
    return %arg0, %c0_i32, %c0_i32_0, %c0_i32_1 : i32, i32, i32, i32
  }
  func.func @transform_1(%arg0: i32) -> (i32, i32, i32) {
    %c0_i32 = arith.constant 0 : i32
    %c0_i32_0 = arith.constant 0 : i32
    %c0_i32_1 = arith.constant 0 : i32
    return %arg0, %c0_i32, %c0_i32_0 : i32, i32, i32
  }
  func.func @transform_2(%arg0: i32) -> (i32, i32) {
    %c0_i32 = arith.constant 0 : i32
    %c0_i32_0 = arith.constant 0 : i32
    %c0_i32_1 = arith.constant 0 : i32
    return %c0_i32, %c0_i32_0 : i32, i32
  }
  func.func @transform_3(%arg0: i32) -> (i32, i32) {
    %c0_i32 = arith.constant 0 : i32
    %c0_i32_0 = arith.constant 0 : i32
    %c0_i32_1 = arith.constant 0 : i32
    return %c0_i32, %c0_i32_0 : i32, i32
  }
  func.func @transform_4(%arg0: i32) -> (i32, i32) {
    %c0_i32 = arith.constant 0 : i32
    %c0_i32_0 = arith.constant 0 : i32
    %c0_i32_1 = arith.constant 0 : i32
    return %c0_i32, %c0_i32_0 : i32, i32
  }
  func.func @transform_5(%arg0: i32) -> (i32, i32, i32) {
    %c0_i32 = arith.constant 0 : i32
    %c0_i32_0 = arith.constant 0 : i32
    %c0_i32_1 = arith.constant 0 : i32
    %c0_i32_2 = arith.constant 0 : i32
    return %c0_i32, %c0_i32_0, %c0_i32_1 : i32, i32, i32
  }
  func.func @transform_6(%arg0: i32) -> (i32, i32) {
    %c0_i32 = arith.constant 0 : i32
    %c0_i32_0 = arith.constant 0 : i32
    %c0_i32_1 = arith.constant 0 : i32
    return %c0_i32, %c0_i32_0 : i32, i32
  }
  func.func @transform_7(%arg0: i32) -> (i32, i32) {
    %c0_i32 = arith.constant 0 : i32
    %c0_i32_0 = arith.constant 0 : i32
    %c0_i32_1 = arith.constant 0 : i32
    return %c0_i32, %c0_i32_0 : i32, i32
  }
  func.func @transform_8(%arg0: i32) -> (i32, i32) {
    %c0_i32 = arith.constant 0 : i32
    %c0_i32_0 = arith.constant 0 : i32
    %c0_i32_1 = arith.constant 0 : i32
    return %c0_i32, %c0_i32_0 : i32, i32
  }
  func.func @transform_9(%arg0: i32) -> (i32, i32) {
    %c0_i32 = arith.constant 0 : i32
    %c0_i32_0 = arith.constant 0 : i32
    %c0_i32_1 = arith.constant 0 : i32
    return %c0_i32, %c0_i32_0 : i32, i32
  }
  func.func @transform_10(%arg0: i32) -> (i32, i32) {
    %c0_i32 = arith.constant 0 : i32
    %c0_i32_0 = arith.constant 0 : i32
    %c0_i32_1 = arith.constant 0 : i32
    return %c0_i32, %c0_i32_0 : i32, i32
  }
  func.func @transform_11(%arg0: i32) -> (i32, i32) {
    %c0_i32 = arith.constant 0 : i32
    %c0_i32_0 = arith.constant 0 : i32
    %c0_i32_1 = arith.constant 0 : i32
    return %c0_i32, %c0_i32_0 : i32, i32
  }
  func.func @transform_12(%arg0: i32) -> (i32, i32, i32) {
    %c0_i32 = arith.constant 0 : i32
    %c0_i32_0 = arith.constant 0 : i32
    %c0_i32_1 = arith.constant 0 : i32
    %c0_i32_2 = arith.constant 0 : i32
    return %c0_i32, %c0_i32_0, %c0_i32_1 : i32, i32, i32
  }
  func.func @transform_13(%arg0: i32) -> (i32, i32) {
    %c0_i32 = arith.constant 0 : i32
    %c0_i32_0 = arith.constant 0 : i32
    %c0_i32_1 = arith.constant 0 : i32
    return %c0_i32, %c0_i32_0 : i32, i32
  }
  func.func @transform_14(%arg0: i32) -> (i32, i32) {
    %c0_i32 = arith.constant 0 : i32
    %c0_i32_0 = arith.constant 0 : i32
    %c0_i32_1 = arith.constant 0 : i32
    return %c0_i32, %c0_i32_0 : i32, i32
  }
  func.func @transform_15(%arg0: i32) -> (i32, i32) {
    %c0_i32 = arith.constant 0 : i32
    %c0_i32_0 = arith.constant 0 : i32
    %c0_i32_1 = arith.constant 0 : i32
    return %c0_i32, %c0_i32_0 : i32, i32
  }
  func.func @transform_16(%arg0: i32) -> (i32, i32, i32, i32) {
    %c0_i32 = arith.constant 0 : i32
    %c0_i32_0 = arith.constant 0 : i32
    %c0_i32_1 = arith.constant 0 : i32
    %c0_i32_2 = arith.constant 0 : i32
    return %arg0, %c0_i32, %c0_i32_0, %c0_i32_1 : i32, i32, i32, i32
  }
}

</mosaic_0001>

<llo_original>
// kernel: resnet_block_forward.1
$region0: #{resnet_block_forward.1}
  #allocation0 [shape = 'u32[]', space=smem, size = 0x4, offset = 0x4, fixed_abs, tag = 'smem constant byte address 0x4 - core index']
  #allocation1 [shape = 'u32[72,128]{1,0:T(1,128)}', space=vmem, size = 0x9000, scoped, tag = 'internal scratch']
  #allocation2 [shape = 'bf16[10,10,32]{2,1,0:T(8,128)(2,1)}', space=vmem, size = 0xa000, scoped, tag = 'scratch operand']
  #allocation3 [shape = 'bf16[10,10,64]{2,1,0:T(8,128)(2,1)}', space=vmem, size = 0xa000, scoped, tag = 'scratch operand']
  %s0 = inlined_call_operand.vmem [shape: bf16[2,8,8,32], index: 0, kind: input, shape index: {}]
  %s1 = inlined_call_operand.vmem [shape: f32[2,1,128], index: 1, kind: input, shape index: {}]
  %s2 = inlined_call_operand.vmem [shape: f32[1,32], index: 2, kind: input, shape index: {}]
  %s3 = inlined_call_operand.vmem [shape: f32[1,32], index: 3, kind: input, shape index: {}]
  %s4 = inlined_call_operand.vmem [shape: f32[32,32], index: 4, kind: input, shape index: {}]
  %s5 = inlined_call_operand.vmem [shape: bf16[9,32,64], index: 5, kind: input, shape index: {}]
  %s6 = inlined_call_operand.vmem [shape: f32[1,64], index: 6, kind: input, shape index: {}]
  %s7 = inlined_call_operand.vmem [shape: bf16[128,64], index: 7, kind: input, shape index: {}]
  %s8 = inlined_call_operand.vmem [shape: f32[1,64], index: 8, kind: input, shape index: {}]
  %s9 = inlined_call_operand.vmem [shape: f32[1,64], index: 9, kind: input, shape index: {}]
  %s10 = inlined_call_operand.vmem [shape: f32[1,64], index: 10, kind: input, shape index: {}]
  %s11 = inlined_call_operand.vmem [shape: f32[64,32], index: 11, kind: input, shape index: {}]
  %s12 = inlined_call_operand.hbm [shape: bf16[9,64,64], index: 12, kind: input, shape index: {}]
  %s13 = inlined_call_operand.vmem [shape: f32[1,64], index: 13, kind: input, shape index: {}]
  %s14 = inlined_call_operand.vmem [shape: bf16[32,64], index: 14, kind: input, shape index: {}]
  %s15 = inlined_call_operand.vmem [shape: f32[1,64], index: 15, kind: input, shape index: {}]
  %s16 = inlined_call_operand.hbm [shape: f32[2,8,8,64], index: 16, kind: output, shape index: {}]
  %s17 = sld [smem:[#allocation0]]
  $region101: #{resnet_block_forward.1} parent=0
    _
  %s19 = ssub.s32 1, %s17
  %s20 = scalar_select 0, %s19, %s17
  $region1: #{resnet_block_forward.1} parent=0
    #allocation4 [shape = 'u8[147456]{0}', space=vmem, size = 0x24000, scoped, tag = 'input window, operand 12, single buffered']
    #allocation5 [shape = 's32[2]{0}', space=sflag, size = 0x8, scoped, tag = 'scoped memory for resnet_block_forward.1']
    #allocation6 [shape = 's32[2]{0}', space=sflag, size = 0x8, scoped, tag = 'scoped memory for resnet_block_forward.1']
    #allocation7 [shape = 'u8[65536]{0}', space=vmem, size = 0x10000, scoped, tag = 'output window, operand 0']
    %21 = vsyncpa [#allocation5], 0
    %22 = vsyncpa [#allocation6], 0
    %s23 = scalar_lea.sflag [#allocation6], 1
    %24 = vsyncpa %s23, 0
    loop: start=0, step=1, limit=4
    $region2: #{resnet_block_forward.1} parent=1 // loop_pre_header
      _
    $region3: #{resnet_block_forward.1} parent=1 // loop_header
      %s26 = sphi 0, %s30
      %p27 = scmp.ge.s32.totalorder %s26, 4
      %s36 = sphi 0, %s38
      %s39 = sphi 0, %s36
      %s40 = sphi 0, %s39
      %s56 = sphi 0, %s40
      %s62 = sphi 0, %s64
      %s65 = sphi 0, %s62
      %s66 = sphi 0, %s65
      %s82 = sphi 0, %s66
      %s86 = sphi 0, %s86
      %s88 = sphi 0, %s86
      %s89 = sphi 0, %s88
      %s103 = sphi 0, %s89
      %s107 = sphi 0, %s107
      %s109 = sphi 0, %s107
      %s110 = sphi 0, %s109
      %s124 = sphi 0, %s110
      %s128 = sphi 0, %s128
      %s130 = sphi 0, %s128
      %s131 = sphi 0, %s130
      %s145 = sphi 0, %s131
      %s149 = sphi 0, %s149
      %s151 = sphi 0, %s149
      %s152 = sphi 0, %s151
      %s166 = sphi 0, %s152
      %s170 = sphi 0, %s170
      %s172 = sphi 0, %s170
      %s173 = sphi 0, %s172
      %s187 = sphi 0, %s173
      %s191 = sphi 0, %s191
      %s193 = sphi 0, %s191
      %s194 = sphi 0, %s193
      %s208 = sphi 0, %s194
      %s212 = sphi 0, %s212
      %s214 = sphi 0, %s212
      %s215 = sphi 0, %s214
      %s229 = sphi 0, %s215
      %s233 = sphi 0, %s233
      %s235 = sphi 0, %s233
      %s236 = sphi 0, %s235
      %s250 = sphi 0, %s236
      %s254 = sphi 0, %s254
      %s256 = sphi 0, %s254
      %s257 = sphi 0, %s256
      %s271 = sphi 0, %s257
      %s275 = sphi 0, %s275
      %s277 = sphi 0, %s275
      %s278 = sphi 0, %s277
      %s292 = sphi 0, %s278
      %s296 = sphi 0, %s296
      %s298 = sphi 0, %s296
      %s299 = sphi 0, %s298
      %s313 = sphi 0, %s299
      %s317 = sphi 0, %s317
      %s319 = sphi 0, %s317
      %s320 = sphi 0, %s319
      %s334 = sphi 0, %s320
      %s338 = sphi 0, %s338
      %s340 = sphi 0, %s338
      %s341 = sphi 0, %s340
      %s355 = sphi 0, %s341
      %s359 = sphi 0, %s359
      %s361 = sphi 0, %s359
      %s362 = sphi 0, %s361
      %s376 = sphi 0, %s362
      %s382 = sphi 0, %s384
      %s385 = sphi 0, %s382
      %s386 = sphi 0, %s385
      %s402 = sphi 0, %s386
    $region4: #{resnet_block_forward.1} parent=1 // loop_header_branch
      %29 = sbr.rel (%p27) target = $region8
    $region5: #{resnet_block_forward.1} parent=1 // loop_body
      %s31 = ssub.s32 %s26, 1
      %s32 = ssub.s32 %s26, 2
      %s33 = sadd.s32 %s26, 1
      %s34 = ssub.s32 %s26, %s33
      %p35 = scmp.eq.s32.totalorder %s34, 0
      %s37 = sadd.s32 %s36, 1
      %s38 = scalar_select %p35, %s36, %s37
      %p41 = pneg %p35
      %p42 = scmp.eq.s32.totalorder %s26, 1
      %p43 = por %p41, %p42
      %p44 = scmp.ne.s32.totalorder %s36, %s39
      %p45 = scmp.eq.s32.totalorder %s26, 0
      %p46 = por %p44, %p45
      %p47 = scmp.ne.s32.totalorder %s36, %s39
      %p48 = scmp.eq.s32.totalorder %s31, 1
      %p49 = por %p47, %p48
      %p50 = scmp.ne.s32.totalorder %s39, %s40
      %p51 = scmp.eq.s32.totalorder %s31, 0
      %p52 = por %p50, %p51
      %p53 = scmp.ne.s32.totalorder %s39, %s40
      %p54 = scmp.eq.s32.totalorder %s32, 1
      %p55 = por %p53, %p54
      %p57 = scmp.ne.s32.totalorder %s40, %s56
      %p58 = scmp.eq.s32.totalorder %s32, 0
      %p59 = por %p57, %p58
      %s60 = ssub.s32 %s26, %s33
      %p61 = scmp.eq.s32.totalorder %s60, 0
      %s63 = sadd.s32 %s62, 1
      %s64 = scalar_select %p61, %s62, %s63
      %p67 = pneg %p61
      %p68 = scmp.eq.s32.totalorder %s26, 1
      %p69 = por %p67, %p68
      %p70 = scmp.ne.s32.totalorder %s62, %s65
      %p71 = scmp.eq.s32.totalorder %s26, 0
      %p72 = por %p70, %p71
      %p73 = scmp.ne.s32.totalorder %s62, %s65
      %p74 = scmp.eq.s32.totalorder %s31, 1
      %p75 = por %p73, %p74
      %p76 = scmp.ne.s32.totalorder %s65, %s66
      %p77 = scmp.eq.s32.totalorder %s31, 0
      %p78 = por %p76, %p77
      %p79 = scmp.ne.s32.totalorder %s65, %s66
      %p80 = scmp.eq.s32.totalorder %s32, 1
      %p81 = por %p79, %p80
      %p83 = scmp.ne.s32.totalorder %s66, %s82
      %p84 = scmp.eq.s32.totalorder %s32, 0
      %p85 = por %p83, %p84
      %s87 = sadd.s32 %s86, 1
      %p90 = scmp.eq.s32.totalorder %s26, 1
      %p91 = scmp.ne.s32.totalorder %s86, %s88
      %p92 = scmp.eq.s32.totalorder %s26, 0
      %p93 = por %p91, %p92
      %p94 = scmp.ne.s32.totalorder %s86, %s88
      %p95 = scmp.eq.s32.totalorder %s31, 1
      %p96 = por %p94, %p95
      %p97 = scmp.ne.s32.totalorder %s88, %s89
      %p98 = scmp.eq.s32.totalorder %s31, 0
      %p99 = por %p97, %p98
      %p100 = scmp.ne.s32.totalorder %s88, %s89
      %p101 = scmp.eq.s32.totalorder %s32, 1
      %p102 = por %p100, %p101
      %p104 = scmp.ne.s32.totalorder %s89, %s103
      %p105 = scmp.eq.s32.totalorder %s32, 0
      %p106 = por %p104, %p105
      %s108 = sadd.s32 %s107, 1
      %p111 = scmp.eq.s32.totalorder %s26, 1
      %p112 = scmp.ne.s32.totalorder %s107, %s109
      %p113 = scmp.eq.s32.totalorder %s26, 0
      %p114 = por %p112, %p113
      %p115 = scmp.ne.s32.totalorder %s107, %s109
      %p116 = scmp.eq.s32.totalorder %s31, 1
      %p117 = por %p115, %p116
      %p118 = scmp.ne.s32.totalorder %s109, %s110
      %p119 = scmp.eq.s32.totalorder %s31, 0
      %p120 = por %p118, %p119
      %p121 = scmp.ne.s32.totalorder %s109, %s110
      %p122 = scmp.eq.s32.totalorder %s32, 1
      %p123 = por %p121, %p122
      %p125 = scmp.ne.s32.totalorder %s110, %s124
      %p126 = scmp.eq.s32.totalorder %s32, 0
      %p127 = por %p125, %p126
      %s129 = sadd.s32 %s128, 1
      %p132 = scmp.eq.s32.totalorder %s26, 1
      %p133 = scmp.ne.s32.totalorder %s128, %s130
      %p134 = scmp.eq.s32.totalorder %s26, 0
      %p135 = por %p133, %p134
      %p136 = scmp.ne.s32.totalorder %s128, %s130
      %p137 = scmp.eq.s32.totalorder %s31, 1
      %p138 = por %p136, %p137
      %p139 = scmp.ne.s32.totalorder %s130, %s131
      %p140 = scmp.eq.s32.totalorder %s31, 0
      %p141 = por %p139, %p140
      %p142 = scmp.ne.s32.totalorder %s130, %s131
      %p143 = scmp.eq.s32.totalorder %s32, 1
      %p144 = por %p142, %p143
      %p146 = scmp.ne.s32.totalorder %s131, %s145
      %p147 = scmp.eq.s32.totalorder %s32, 0
      %p148 = por %p146, %p147
      %s150 = sadd.s32 %s149, 1
      %p153 = scmp.eq.s32.totalorder %s26, 1
      %p154 = scmp.ne.s32.totalorder %s149, %s151
      %p155 = scmp.eq.s32.totalorder %s26, 0
      %p156 = por %p154, %p155
      %p157 = scmp.ne.s32.totalorder %s149, %s151
      %p158 = scmp.eq.s32.totalorder %s31, 1
      %p159 = por %p157, %p158
      %p160 = scmp.ne.s32.totalorder %s151, %s152
      %p161 = scmp.eq.s32.totalorder %s31, 0
      %p162 = por %p160, %p161
      %p163 = scmp.ne.s32.totalorder %s151, %s152
      %p164 = scmp.eq.s32.totalorder %s32, 1
      %p165 = por %p163, %p164
      %p167 = scmp.ne.s32.totalorder %s152, %s166
      %p168 = scmp.eq.s32.totalorder %s32, 0
      %p169 = por %p167, %p168
      %s171 = sadd.s32 %s170, 1
      %p174 = scmp.eq.s32.totalorder %s26, 1
      %p175 = scmp.ne.s32.totalorder %s170, %s172
      %p176 = scmp.eq.s32.totalorder %s26, 0
      %p177 = por %p175, %p176
      %p178 = scmp.ne.s32.totalorder %s170, %s172
      %p179 = scmp.eq.s32.totalorder %s31, 1
      %p180 = por %p178, %p179
      %p181 = scmp.ne.s32.totalorder %s172, %s173
      %p182 = scmp.eq.s32.totalorder %s31, 0
      %p183 = por %p181, %p182
      %p184 = scmp.ne.s32.totalorder %s172, %s173
      %p185 = scmp.eq.s32.totalorder %s32, 1
      %p186 = por %p184, %p185
      %p188 = scmp.ne.s32.totalorder %s173, %s187
      %p189 = scmp.eq.s32.totalorder %s32, 0
      %p190 = por %p188, %p189
      %s192 = sadd.s32 %s191, 1
      %p195 = scmp.eq.s32.totalorder %s26, 1
      %p196 = scmp.ne.s32.totalorder %s191, %s193
      %p197 = scmp.eq.s32.totalorder %s26, 0
      %p198 = por %p196, %p197
      %p199 = scmp.ne.s32.totalorder %s191, %s193
      %p200 = scmp.eq.s32.totalorder %s31, 1
      %p201 = por %p199, %p200
      %p202 = scmp.ne.s32.totalorder %s193, %s194
      %p203 = scmp.eq.s32.totalorder %s31, 0
      %p204 = por %p202, %p203
      %p205 = scmp.ne.s32.totalorder %s193, %s194
      %p206 = scmp.eq.s32.totalorder %s32, 1
      %p207 = por %p205, %p206
      %p209 = scmp.ne.s32.totalorder %s194, %s208
      %p210 = scmp.eq.s32.totalorder %s32, 0
      %p211 = por %p209, %p210
      %s213 = sadd.s32 %s212, 1
      %p216 = scmp.eq.s32.totalorder %s26, 1
      %p217 = scmp.ne.s32.totalorder %s212, %s214
      %p218 = scmp.eq.s32.totalorder %s26, 0
      %p219 = por %p217, %p218
      %p220 = scmp.ne.s32.totalorder %s212, %s214
      %p221 = scmp.eq.s32.totalorder %s31, 1
      %p222 = por %p220, %p221
      %p223 = scmp.ne.s32.totalorder %s214, %s215
      %p224 = scmp.eq.s32.totalorder %s31, 0
      %p225 = por %p223, %p224
      %p226 = scmp.ne.s32.totalorder %s214, %s215
      %p227 = scmp.eq.s32.totalorder %s32, 1
      %p228 = por %p226, %p227
      %p230 = scmp.ne.s32.totalorder %s215, %s229
      %p231 = scmp.eq.s32.totalorder %s32, 0
      %p232 = por %p230, %p231
      %s234 = sadd.s32 %s233, 1
      %p237 = scmp.eq.s32.totalorder %s26, 1
      %p238 = scmp.ne.s32.totalorder %s233, %s235
      %p239 = scmp.eq.s32.totalorder %s26, 0
      %p240 = por %p238, %p239
      %p241 = scmp.ne.s32.totalorder %s233, %s235
      %p242 = scmp.eq.s32.totalorder %s31, 1
      %p243 = por %p241, %p242
      %p244 = scmp.ne.s32.totalorder %s235, %s236
      %p245 = scmp.eq.s32.totalorder %s31, 0
      %p246 = por %p244, %p245
      %p247 = scmp.ne.s32.totalorder %s235, %s236
      %p248 = scmp.eq.s32.totalorder %s32, 1
      %p249 = por %p247, %p248
      %p251 = scmp.ne.s32.totalorder %s236, %s250
      %p252 = scmp.eq.s32.totalorder %s32, 0
      %p253 = por %p251, %p252
      %s255 = sadd.s32 %s254, 1
      %p258 = scmp.eq.s32.totalorder %s26, 1
      %p259 = scmp.ne.s32.totalorder %s254, %s256
      %p260 = scmp.eq.s32.totalorder %s26, 0
      %p261 = por %p259, %p260
      %p262 = scmp.ne.s32.totalorder %s254, %s256
      %p263 = scmp.eq.s32.totalorder %s31, 1
      %p264 = por %p262, %p263
      %p265 = scmp.ne.s32.totalorder %s256, %s257
      %p266 = scmp.eq.s32.totalorder %s31, 0
      %p267 = por %p265, %p266
      %p268 = scmp.ne.s32.totalorder %s256, %s257
      %p269 = scmp.eq.s32.totalorder %s32, 1
      %p270 = por %p268, %p269
      %p272 = scmp.ne.s32.totalorder %s257, %s271
      %p273 = scmp.eq.s32.totalorder %s32, 0
      %p274 = por %p272, %p273
      %s276 = sadd.s32 %s275, 1
      %p279 = scmp.eq.s32.totalorder %s26, 1
      %p280 = scmp.ne.s32.totalorder %s275, %s277
      %p281 = scmp.eq.s32.totalorder %s26, 0
      %p282 = por %p280, %p281
      %p283 = scmp.ne.s32.totalorder %s275, %s277
      %p284 = scmp.eq.s32.totalorder %s31, 1
      %p285 = por %p283, %p284
      %p286 = scmp.ne.s32.totalorder %s277, %s278
      %p287 = scmp.eq.s32.totalorder %s31, 0
      %p288 = por %p286, %p287
      %p289 = scmp.ne.s32.totalorder %s277, %s278
      %p290 = scmp.eq.s32.totalorder %s32, 1
      %p291 = por %p289, %p290
      %p293 = scmp.ne.s32.totalorder %s278, %s292
      %p294 = scmp.eq.s32.totalorder %s32, 0
      %p295 = por %p293, %p294
      %s297 = sadd.s32 %s296, 1
      %p300 = scmp.eq.s32.totalorder %s26, 1
      %p301 = scmp.ne.s32.totalorder %s296, %s298
      %p302 = scmp.eq.s32.totalorder %s26, 0
      %p303 = por %p301, %p302
      %p304 = scmp.ne.s32.totalorder %s296, %s298
      %p305 = scmp.eq.s32.totalorder %s31, 1
      %p306 = por %p304, %p305
      %p307 = scmp.ne.s32.totalorder %s298, %s299
      %p308 = scmp.eq.s32.totalorder %s31, 0
      %p309 = por %p307, %p308
      %p310 = scmp.ne.s32.totalorder %s298, %s299
      %p311 = scmp.eq.s32.totalorder %s32, 1
      %p312 = por %p310, %p311
      %p314 = scmp.ne.s32.totalorder %s299, %s313
      %p315 = scmp.eq.s32.totalorder %s32, 0
      %p316 = por %p314, %p315
      %s318 = sadd.s32 %s317, 1
      %p321 = scmp.eq.s32.totalorder %s26, 1
      %p322 = scmp.ne.s32.totalorder %s317, %s319
      %p323 = scmp.eq.s32.totalorder %s26, 0
      %p324 = por %p322, %p323
      %p325 = scmp.ne.s32.totalorder %s317, %s319
      %p326 = scmp.eq.s32.totalorder %s31, 1
      %p327 = por %p325, %p326
      %p328 = scmp.ne.s32.totalorder %s319, %s320
      %p329 = scmp.eq.s32.totalorder %s31, 0
      %p330 = por %p328, %p329
      %p331 = scmp.ne.s32.totalorder %s319, %s320
      %p332 = scmp.eq.s32.totalorder %s32, 1
      %p333 = por %p331, %p332
      %p335 = scmp.ne.s32.totalorder %s320, %s334
      %p336 = scmp.eq.s32.totalorder %s32, 0
      %p337 = por %p335, %p336
      %s339 = sadd.s32 %s338, 1
      %p342 = scmp.eq.s32.totalorder %s26, 1
      %p343 = scmp.ne.s32.totalorder %s338, %s340
      %p344 = scmp.eq.s32.totalorder %s26, 0
      %p345 = por %p343, %p344
      %p346 = scmp.ne.s32.totalorder %s338, %s340
      %p347 = scmp.eq.s32.totalorder %s31, 1
      %p348 = por %p346, %p347
      %p349 = scmp.ne.s32.totalorder %s340, %s341
      %p350 = scmp.eq.s32.totalorder %s31, 0
      %p351 = por %p349, %p350
      %p352 = scmp.ne.s32.totalorder %s340, %s341
      %p353 = scmp.eq.s32.totalorder %s32, 1
      %p354 = por %p352, %p353
      %p356 = scmp.ne.s32.totalorder %s341, %s355
      %p357 = scmp.eq.s32.totalorder %s32, 0
      %p358 = por %p356, %p357
      %s360 = sadd.s32 %s359, 1
      %p363 = scmp.eq.s32.totalorder %s26, 1
      %p364 = scmp.ne.s32.totalorder %s359, %s361
      %p365 = scmp.eq.s32.totalorder %s26, 0
      %p366 = por %p364, %p365
      %p367 = scmp.ne.s32.totalorder %s359, %s361
      %p368 = scmp.eq.s32.totalorder %s31, 1
      %p369 = por %p367, %p368
      %p370 = scmp.ne.s32.totalorder %s361, %s362
      %p371 = scmp.eq.s32.totalorder %s31, 0
      %p372 = por %p370, %p371
      %p373 = scmp.ne.s32.totalorder %s361, %s362
      %p374 = scmp.eq.s32.totalorder %s32, 1
      %p375 = por %p373, %p374
      %p377 = scmp.ne.s32.totalorder %s362, %s376
      %p378 = scmp.eq.s32.totalorder %s32, 0
      %p379 = por %p377, %p378
      %s380 = ssub.s32 %s26, %s33
      %p381 = scmp.eq.s32.totalorder %s380, 0
      %s383 = sadd.s32 %s382, 1
      %s384 = scalar_select %p381, %s382, %s383
      %p387 = pneg %p381
      %p388 = scmp.eq.s32.totalorder %s26, 1
      %p389 = por %p387, %p388
      %p390 = scmp.ne.s32.totalorder %s382, %s385
      %p391 = scmp.eq.s32.totalorder %s26, 0
      %p392 = por %p390, %p391
      %p393 = scmp.ne.s32.totalorder %s382, %s385
      %p394 = scmp.eq.s32.totalorder %s31, 1
      %p395 = por %p393, %p394
      %p396 = scmp.ne.s32.totalorder %s385, %s386
      %p397 = scmp.eq.s32.totalorder %s31, 0
      %p398 = por %p396, %p397
      %p399 = scmp.ne.s32.totalorder %s385, %s386
      %p400 = scmp.eq.s32.totalorder %s32, 1
      %p401 = por %p399, %p400
      %p403 = scmp.ne.s32.totalorder %s386, %s402
      %p404 = scmp.eq.s32.totalorder %s32, 0
      %p405 = por %p403, %p404
      %p406 = scmp.le.s32.totalorder 1, %s26
      %p407 = scmp.lt.s32.totalorder %s26, 3
      %p408 = pnand %p406, %p407
      %p409 = pneg %p408
      // Predicated region
      $region9: #{resnet_block_forward.1} parent=5 // pred_check
        _
      $region10: #{resnet_block_forward.1} parent=5 // pred_check_branch
        %411 = sbr.rel (%p408) target = $region12
      $region11: #{resnet_block_forward.1} parent=5 // pred_region
        %s412 = ssub.s32 %s26, 1
        // Predicated region
        $region13: #{resnet_block_forward.1} parent=11 // pred_check
          %p413 = pneg %p99
        $region14: #{resnet_block_forward.1} parent=11 // pred_check_branch
          %415 = sbr.rel (%p413) target = $region16
        $region15: #{resnet_block_forward.1} parent=11 // pred_region
          _
        $region16: #{resnet_block_forward.1} parent=11 // pred_fallthru
          _
        // Predicated region
        $region17: #{resnet_block_forward.1} parent=11 // pred_check
          %p416 = pneg %p120
        $region18: #{resnet_block_forward.1} parent=11 // pred_check_branch
          %418 = sbr.rel (%p416) target = $region20
        $region19: #{resnet_block_forward.1} parent=11 // pred_region
          _
        $region20: #{resnet_block_forward.1} parent=11 // pred_fallthru
          _
        // Predicated region
        $region21: #{resnet_block_forward.1} parent=11 // pred_check
          %p419 = pneg %p141
        $region22: #{resnet_block_forward.1} parent=11 // pred_check_branch
          %421 = sbr.rel (%p419) target = $region24
        $region23: #{resnet_block_forward.1} parent=11 // pred_region
          _
        $region24: #{resnet_block_forward.1} parent=11 // pred_fallthru
          _
        // Predicated region
        $region25: #{resnet_block_forward.1} parent=11 // pred_check
          %p422 = pneg %p162
        $region26: #{resnet_block_forward.1} parent=11 // pred_check_branch
          %424 = sbr.rel (%p422) target = $region28
        $region27: #{resnet_block_forward.1} parent=11 // pred_region
          _
        $region28: #{resnet_block_forward.1} parent=11 // pred_fallthru
          _
        // Predicated region
        $region29: #{resnet_block_forward.1} parent=11 // pred_check
          %p425 = pneg %p183
        $region30: #{resnet_block_forward.1} parent=11 // pred_check_branch
          %427 = sbr.rel (%p425) target = $region32
        $region31: #{resnet_block_forward.1} parent=11 // pred_region
          _
        $region32: #{resnet_block_forward.1} parent=11 // pred_fallthru
          _
        // Predicated region
        $region33: #{resnet_block_forward.1} parent=11 // pred_check
          %p428 = pneg %p204
        $region34: #{resnet_block_forward.1} parent=11 // pred_check_branch
          %430 = sbr.rel (%p428) target = $region36
        $region35: #{resnet_block_forward.1} parent=11 // pred_region
          _
        $region36: #{resnet_block_forward.1} parent=11 // pred_fallthru
          _
        // Predicated region
        $region37: #{resnet_block_forward.1} parent=11 // pred_check
          %p431 = pneg %p225
        $region38: #{resnet_block_forward.1} parent=11 // pred_check_branch
          %433 = sbr.rel (%p431) target = $region40
        $region39: #{resnet_block_forward.1} parent=11 // pred_region
          _
        $region40: #{resnet_block_forward.1} parent=11 // pred_fallthru
          _
        // Predicated region
        $region41: #{resnet_block_forward.1} parent=11 // pred_check
          %p434 = pneg %p246
        $region42: #{resnet_block_forward.1} parent=11 // pred_check_branch
          %436 = sbr.rel (%p434) target = $region44
        $region43: #{resnet_block_forward.1} parent=11 // pred_region
          _
        $region44: #{resnet_block_forward.1} parent=11 // pred_fallthru
          _
        // Predicated region
        $region45: #{resnet_block_forward.1} parent=11 // pred_check
          %p437 = pneg %p267
        $region46: #{resnet_block_forward.1} parent=11 // pred_check_branch
          %439 = sbr.rel (%p437) target = $region48
        $region47: #{resnet_block_forward.1} parent=11 // pred_region
          _
        $region48: #{resnet_block_forward.1} parent=11 // pred_fallthru
          _
        // Predicated region
        $region49: #{resnet_block_forward.1} parent=11 // pred_check
          %p440 = pneg %p288
        $region50: #{resnet_block_forward.1} parent=11 // pred_check_branch
          %442 = sbr.rel (%p440) target = $region52
        $region51: #{resnet_block_forward.1} parent=11 // pred_region
          _
        $region52: #{resnet_block_forward.1} parent=11 // pred_fallthru
          _
        // Predicated region
        $region53: #{resnet_block_forward.1} parent=11 // pred_check
          %p443 = pneg %p309
        $region54: #{resnet_block_forward.1} parent=11 // pred_check_branch
          %445 = sbr.rel (%p443) target = $region56
        $region55: #{resnet_block_forward.1} parent=11 // pred_region
          %447 = vsyncadd [#allocation5], 0
          %s448 = sshll.u32 %s12, 4
          %s449 = int_to_ptr.hbm [resolvable:$true] %s448
          %s450 = sshll.u32 [#allocation4], 4
          %s451 = int_to_ptr.vmem [resolvable:$true] %s450
          %456 = dma.hbm_to_vmem [thread:$0]  %s449, 4608, %s451, [#allocation5], 64, 64, 4
        $region56: #{resnet_block_forward.1} parent=11 // pred_fallthru
          _
        // Predicated region
        $region57: #{resnet_block_forward.1} parent=11 // pred_check
          %p457 = pneg %p330
        $region58: #{resnet_block_forward.1} parent=11 // pred_check_branch
          %459 = sbr.rel (%p457) target = $region60
        $region59: #{resnet_block_forward.1} parent=11 // pred_region
          _
        $region60: #{resnet_block_forward.1} parent=11 // pred_fallthru
          _
        // Predicated region
        $region61: #{resnet_block_forward.1} parent=11 // pred_check
          %p460 = pneg %p351
        $region62: #{resnet_block_forward.1} parent=11 // pred_check_branch
          %462 = sbr.rel (%p460) target = $region64
        $region63: #{resnet_block_forward.1} parent=11 // pred_region
          _
        $region64: #{resnet_block_forward.1} parent=11 // pred_fallthru
          _
        // Predicated region
        $region65: #{resnet_block_forward.1} parent=11 // pred_check
          %p463 = pneg %p372
        $region66: #{resnet_block_forward.1} parent=11 // pred_check_branch
          %465 = sbr.rel (%p463) target = $region68
        $region67: #{resnet_block_forward.1} parent=11 // pred_region
          _
        $region68: #{resnet_block_forward.1} parent=11 // pred_fallthru
          _
      $region12: #{resnet_block_forward.1} parent=5 // pred_fallthru
        _
      %p466 = scmp.lt.s32.totalorder %s26, 2
      // Predicated region
      $region69: #{resnet_block_forward.1} parent=5 // pred_check
        %p467 = pneg %p466
      $region70: #{resnet_block_forward.1} parent=5 // pred_check_branch
        %469 = sbr.rel (%p467) target = $region72
      $region71: #{resnet_block_forward.1} parent=5 // pred_region
        // Predicated region
        $region73: #{resnet_block_forward.1} parent=71 // pred_check
          %p470 = pneg %p46
        $region74: #{resnet_block_forward.1} parent=71 // pred_check_branch
          %472 = sbr.rel (%p470) target = $region76
        $region75: #{resnet_block_forward.1} parent=71 // pred_region
          %p473 = scmp.lt.s32.totalorder %s26, 1
          %s474 = scalar_select %p473, %s26, 1
          %s475 = smul.addr %s474, 8
          %s476 = smul.addr %s475, 4
          %s477 = scalar_lea.vmem %s0, %s476
        $region76: #{resnet_block_forward.1} parent=71 // pred_fallthru
          _
        // Predicated region
        $region77: #{resnet_block_forward.1} parent=71 // pred_check
          %p478 = pneg %p72
        $region78: #{resnet_block_forward.1} parent=71 // pred_check_branch
          %480 = sbr.rel (%p478) target = $region80
        $region79: #{resnet_block_forward.1} parent=71 // pred_region
          %p481 = scmp.lt.s32.totalorder %s26, 1
          %s482 = scalar_select %p481, %s26, 1
          %s483 = scalar_lea.vmem %s1, %s482
        $region80: #{resnet_block_forward.1} parent=71 // pred_fallthru
          _
      $region72: #{resnet_block_forward.1} parent=5 // pred_fallthru
        _
      %p484 = scmp.le.s32.totalorder 1, %s26
      %p485 = scmp.lt.s32.totalorder %s26, 3
      %p486 = pnand %p484, %p485
      %p487 = pneg %p486
      // Predicated region
      $region81: #{resnet_block_forward.1} parent=5 // pred_check
        _
      $region82: #{resnet_block_forward.1} parent=5 // pred_check_branch
        %489 = sbr.rel (%p486) target = $region84
      $region83: #{resnet_block_forward.1} parent=5 // pred_region
        %s490 = ssub.s32 %s26, 1
        // Predicated region
        $region85: #{resnet_block_forward.1} parent=83 // pred_check
          %p491 = pneg %p309
        $region86: #{resnet_block_forward.1} parent=83 // pred_check_branch
          %493 = sbr.rel (%p491) target = $region88
        $region87: #{resnet_block_forward.1} parent=83 // pred_region
          %495 = dma.done [#allocation5], 4608
        $region88: #{resnet_block_forward.1} parent=83 // pred_fallthru
          _
        %p496 = scmp.lt.s32.totalorder %s31, 1
        %s497 = scalar_select %p496, %s31, 1
        %s498 = smul.addr %s497, 8
        %s499 = smul.addr %s498, 4
        %s500 = scalar_lea.vmem %s0, %s499
        %p501 = pneg %p52
        %p502 = pneg %p49
        %p503 = scmp.lt.s32.totalorder %s31, 1
        %s504 = scalar_select %p503, %s31, 1
        %s505 = scalar_lea.vmem %s1, %s504
        %p506 = pneg %p78
        %p507 = pneg %p75
        %p508 = pneg %p99
        %p509 = pneg %p96
        %p510 = pneg %p120
        %p511 = pneg %p117
        %p512 = pneg %p141
        %p513 = pneg %p138
        %p514 = pneg %p162
        %p515 = pneg %p159
        %p516 = pneg %p183
        %p517 = pneg %p180
        %p518 = pneg %p204
        %p519 = pneg %p201
        %p520 = pneg %p225
        %p521 = pneg %p222
        %p522 = pneg %p246
        %p523 = pneg %p243
        %p524 = pneg %p267
        %p525 = pneg %p264
        %p526 = pneg %p288
        %p527 = pneg %p285
        %p528 = pneg %p309
        %p529 = pneg %p306
        %p530 = pneg %p330
        %p531 = pneg %p327
        %p532 = pneg %p351
        %p533 = pneg %p348
        %p534 = pneg %p372
        %p535 = pneg %p369
        %p536 = pneg %p398
        %p537 = pneg %p395
        %s538 = sand.u32 %s385, 1
        %s539 = scalar_lea.sflag [#allocation6], %s538
        %s540 = sand.u32 %s385, 1
        %s541 = smul.addr %s540, 64
        %s542 = scalar_lea.vmem [#allocation7], %s541
        %p543 = scmp.lt.s32.totalorder %s31, 1
        %s544 = scalar_select %p543, %s31, 1
        %s545 = smul.addr %s544, 8
        %s546 = smul.addr %s545, 4
        %s547 = scalar_lea.vmem %s0, %s546
        %p548 = scmp.lt.s32.totalorder %s31, 1
        %s549 = scalar_select %p548, %s31, 1
        %s550 = scalar_lea.vmem %s1, %s549
        %v552 = vld [vmem:[%s547] sm:$0xf]
        %v553 = vld [vmem:[%s547 + $0x4] sm:$0xf]
        %v554 = vld [vmem:[%s547 + $0x8] sm:$0xf]
        %v555 = vld [vmem:[%s547 + $0xc] sm:$0xf]
        %v556 = vld [vmem:[%s547 + $0x10] sm:$0xf]
        %v557 = vld [vmem:[%s547 + $0x14] sm:$0xf]
        %v558 = vld [vmem:[%s547 + $0x18] sm:$0xf]
        %v559 = vld [vmem:[%s547 + $0x1c] sm:$0xf]
        %v560 = vunpack.c.l.bf16 %v552
        %v561 = vunpack.c.l.bf16 %v553
        %v562 = vunpack.c.l.bf16 %v554
        %v563 = vunpack.c.l.bf16 %v555
        %v564 = vunpack.c.l.bf16 %v556
        %v565 = vunpack.c.l.bf16 %v557
        %v566 = vunpack.c.l.bf16 %v558
        %v567 = vunpack.c.l.bf16 %v559
        %v568 = vld [vmem:[%s4] sm:$0xff]
        %v569 = vld [vmem:[%s4 + $0x8] sm:$0xff]
        %v570 = vld [vmem:[%s4 + $0x10] sm:$0xff]
        %v571 = vld [vmem:[%s4 + $0x18] sm:$0xff]
        %v572 = vld [vmem:[%s2] sm:$0x1]
        %v573 = vld [vmem:[%s3] sm:$0x1]
        %vm574 = vcmask 261120
        %v575 = vsel %vm574, %v560, 0.0
        %v576 = vsel %vm574, %v561, 0.0
        %v577 = vadd.f32 %v575, %v576
        %v578 = vsel %vm574, %v562, 0.0
        %v579 = vadd.f32 %v577, %v578
        %v580 = vsel %vm574, %v563, 0.0
        %v581 = vadd.f32 %v579, %v580
        %v582 = vsel %vm574, %v564, 0.0
        %v583 = vadd.f32 %v581, %v582
        %v584 = vsel %vm574, %v565, 0.0
        %v585 = vadd.f32 %v583, %v584
        %v586 = vsel %vm574, %v566, 0.0
        %v587 = vadd.f32 %v585, %v586
        %v588 = vsel %vm574, %v567, 0.0
        %v589 = vadd.f32 %v587, %v588
        %v590 = vrot.slane %v589, 4
        %v591 = vadd.f32 %v589, %v590
        %v592 = vrot.slane %v591, 2
        %v593 = vadd.f32 %v591, %v592
        %v594 = vrot.slane %v593, 1
        %v595 = vadd.f32 %v593, %v594
        %v597 = vsel %vm574, %v595, 0
        %599 = vmatpush.msra.mxu0 0.0
        %600 = vmatpush.msra.mxu0 0.0
        %601 = vmatpush.msra.mxu0 0.0
        %602 = vmatpush.msra.mxu0 0.0
        %603 = vmatpush.msra.mxu0 0.0
        %604 = vmatpush.msra.mxu0 0.0
        %605 = vmatpush.msra.mxu0 0.0
        %606 = vmatpush.msra.mxu0 0.0
        %607 = vmatpush.msra.mxu0 0.0
        %608 = vmatpush.msra.mxu0 0.0
        %609 = vmatpush.msra.mxu0 0.0
        %610 = vmatpush.msra.mxu0 0.0
        %611 = vmatpush.msra.mxu0 %v571
        %612 = vmatpush.msra.mxu0 %v570
        %613 = vmatpush.msra.mxu0 %v569
        %614 = vmatpush.msra.mxu0 %v568
        %615 = vmatmul.f32.gmra.mxu0 %v597
        %v616 = vpop.f32.mrf.mxu0
        %v617 = vadd.f32 0.0, %v616
        %618 = vdwg.mxu0
        %v619 = vrcp.pop 64.0
        %v620 = vmul.f32 64.0, %v619
        %v621 = vsub.f32 1.0, %v620
        %v622 = vmul.f32 %v619, %v621
        %v623 = vadd.f32 %v619, %v622
        %vm624 = vweird.f32 %v619
        %v625 = vsel %vm624, %v619, %v623
        %v626 = vmul.f32 %v617, %v625
        %v628 = vsel %vm574, %v626, 0
        %v631 = vsel %vm574, %v568, 0
        %v634 = vsel %vm574, %v569, 0
        %v637 = vsel %vm574, %v570, 0
        %v640 = vsel %vm574, %v571, 0
        %642 = vmatpush.xpose.msra.mxu0 0.0
        %643 = vmatpush.xpose.msra.mxu0 0.0
        %644 = vmatpush.xpose.msra.mxu0 0.0
        %645 = vmatpush.xpose.msra.mxu0 0.0
        %646 = vmatpush.xpose.msra.mxu0 0.0
        %647 = vmatpush.xpose.msra.mxu0 0.0
        %648 = vmatpush.xpose.msra.mxu0 0.0
        %649 = vmatpush.xpose.msra.mxu0 0.0
        %650 = vmatpush.xpose.msra.mxu0 0.0
        %651 = vmatpush.xpose.msra.mxu0 0.0
        %652 = vmatpush.xpose.msra.mxu0 0.0
        %653 = vmatpush.xpose.msra.mxu0 0.0
        %654 = vmatpush.xpose.msra.mxu0 %v640
        %655 = vmatpush.xpose.msra.mxu0 %v637
        %656 = vmatpush.xpose.msra.mxu0 %v634
        %657 = vmatpush.xpose.msra.mxu0 %v631
        %658 = vmatmul.f32.gmra.mxu0 %v628
        %v659 = vpop.f32.mrf.mxu0
        %v660 = vadd.f32 0.0, %v659
        %661 = vdwg.mxu0
        %v662 = vperm.slane %v660, 0
        %v663 = vsub.f32 %v560, %v662
        %v664 = vsub.f32 %v561, %v662
        %v665 = vsub.f32 %v562, %v662
        %v666 = vsub.f32 %v563, %v662
        %v667 = vsub.f32 %v564, %v662
        %v668 = vsub.f32 %v565, %v662
        %v669 = vsub.f32 %v566, %v662
        %v670 = vsub.f32 %v567, %v662
        %v671 = vmul.f32 %v663, %v663
        %v672 = vmul.f32 %v664, %v664
        %v673 = vmul.f32 %v665, %v665
        %v674 = vmul.f32 %v666, %v666
        %v675 = vmul.f32 %v667, %v667
        %v676 = vmul.f32 %v668, %v668
        %v677 = vmul.f32 %v669, %v669
        %v678 = vmul.f32 %v670, %v670
        %v679 = vsel %vm574, %v671, 0.0
        %v680 = vsel %vm574, %v672, 0.0
        %v681 = vadd.f32 %v679, %v680
        %v682 = vsel %vm574, %v673, 0.0
        %v683 = vadd.f32 %v681, %v682
        %v684 = vsel %vm574, %v674, 0.0
        %v685 = vadd.f32 %v683, %v684
        %v686 = vsel %vm574, %v675, 0.0
        %v687 = vadd.f32 %v685, %v686
        %v688 = vsel %vm574, %v676, 0.0
        %v689 = vadd.f32 %v687, %v688
        %v690 = vsel %vm574, %v677, 0.0
        %v691 = vadd.f32 %v689, %v690
        %v692 = vsel %vm574, %v678, 0.0
        %v693 = vadd.f32 %v691, %v692
        %v694 = vrot.slane %v693, 4
        %v695 = vadd.f32 %v693, %v694
        %v696 = vrot.slane %v695, 2
        %v697 = vadd.f32 %v695, %v696
        %v698 = vrot.slane %v697, 1
        %v699 = vadd.f32 %v697, %v698
        %v701 = vsel %vm574, %v699, 0
        %703 = vmatpush.msra.mxu0 0.0
        %704 = vmatpush.msra.mxu0 0.0
        %705 = vmatpush.msra.mxu0 0.0
        %706 = vmatpush.msra.mxu0 0.0
        %707 = vmatpush.msra.mxu0 0.0
        %708 = vmatpush.msra.mxu0 0.0
        %709 = vmatpush.msra.mxu0 0.0
        %710 = vmatpush.msra.mxu0 0.0
        %711 = vmatpush.msra.mxu0 0.0
        %712 = vmatpush.msra.mxu0 0.0
        %713 = vmatpush.msra.mxu0 0.0
        %714 = vmatpush.msra.mxu0 0.0
        %715 = vmatpush.msra.mxu0 %v571
        %716 = vmatpush.msra.mxu0 %v570
        %717 = vmatpush.msra.mxu0 %v569
        %718 = vmatpush.msra.mxu0 %v568
        %719 = vmatmul.f32.gmra.mxu0 %v701
        %v720 = vpop.f32.mrf.mxu0
        %v721 = vadd.f32 0.0, %v720
        %722 = vdwg.mxu0
        %v723 = vmul.f32 %v721, %v625
        %v725 = vsel %vm574, %v723, 0
        %727 = vmatpush.xpose.msra.mxu0 0.0
        %728 = vmatpush.xpose.msra.mxu0 0.0
        %729 = vmatpush.xpose.msra.mxu0 0.0
        %730 = vmatpush.xpose.msra.mxu0 0.0
        %731 = vmatpush.xpose.msra.mxu0 0.0
        %732 = vmatpush.xpose.msra.mxu0 0.0
        %733 = vmatpush.xpose.msra.mxu0 0.0
        %734 = vmatpush.xpose.msra.mxu0 0.0
        %735 = vmatpush.xpose.msra.mxu0 0.0
        %736 = vmatpush.xpose.msra.mxu0 0.0
        %737 = vmatpush.xpose.msra.mxu0 0.0
        %738 = vmatpush.xpose.msra.mxu0 0.0
        %739 = vmatpush.xpose.msra.mxu0 %v640
        %740 = vmatpush.xpose.msra.mxu0 %v637
        %741 = vmatpush.xpose.msra.mxu0 %v634
        %742 = vmatpush.xpose.msra.mxu0 %v631
        %743 = vmatmul.f32.gmra.mxu0 %v725
        %v744 = vpop.f32.mrf.mxu0
        %v745 = vadd.f32 1e-06, %v744
        %746 = vdwg.mxu0
        %v747 = vrsqrt.pop %v745
        %v748 = vmul.f32 %v747, %v745
        %v749 = vmul.f32 %v748, %v747
        %v750 = vmul.f32 0.5, %v749
        %v751 = vsub.f32 1.5, %v750
        %v752 = vmul.f32 %v747, %v751
        %vm753 = vweird.f32 %v745
        %vm754 = vweird.f32 %v747
        %vm755 = vmor %vm753, %vm754
        %v756 = vsel %vm755, %v747, %v752
        %v757 = vperm.slane %v756, 0
        %v758 = vmul.f32 %v663, %v757
        %v759 = vmul.f32 %v664, %v757
        %v760 = vmul.f32 %v665, %v757
        %v761 = vmul.f32 %v666, %v757
        %v762 = vmul.f32 %v667, %v757
        %v763 = vmul.f32 %v668, %v757
        %v764 = vmul.f32 %v669, %v757
        %v765 = vmul.f32 %v670, %v757
        %v767 = vperm.slane %v572, 0
        %v769 = vmul.f32 %v758, %v767
        %v770 = vmul.f32 %v759, %v767
        %v771 = vmul.f32 %v760, %v767
        %v772 = vmul.f32 %v761, %v767
        %v773 = vmul.f32 %v762, %v767
        %v774 = vmul.f32 %v763, %v767
        %v775 = vmul.f32 %v764, %v767
        %v776 = vmul.f32 %v765, %v767
        %v778 = vperm.slane %v573, 0
        %v780 = vadd.f32 %v769, %v778
        %v781 = vadd.f32 %v770, %v778
        %v782 = vadd.f32 %v771, %v778
        %v783 = vadd.f32 %v772, %v778
        %v784 = vadd.f32 %v773, %v778
        %v785 = vadd.f32 %v774, %v778
        %v786 = vadd.f32 %v775, %v778
        %v787 = vadd.f32 %v776, %v778
        %v788 = vxor.u32 %v780, 2147483648
        %v789 = vxor.u32 %v781, 2147483648
        %v790 = vxor.u32 %v782, 2147483648
        %v791 = vxor.u32 %v783, 2147483648
        %v792 = vxor.u32 %v784, 2147483648
        %v793 = vxor.u32 %v785, 2147483648
        %v794 = vxor.u32 %v786, 2147483648
        %v795 = vxor.u32 %v787, 2147483648
        %v796 = vmul.f32 %v788, 1.442695
        %v797 = vpow.pop %v796
        %v798 = vmul.f32 %v789, 1.442695
        %v799 = vpow.pop %v798
        %v800 = vmul.f32 %v790, 1.442695
        %v801 = vpow.pop %v800
        %v802 = vmul.f32 %v791, 1.442695
        %v803 = vpow.pop %v802
        %v804 = vmul.f32 %v792, 1.442695
        %v805 = vpow.pop %v804
        %v806 = vmul.f32 %v793, 1.442695
        %v807 = vpow.pop %v806
        %v808 = vmul.f32 %v794, 1.442695
        %v809 = vpow.pop %v808
        %v810 = vmul.f32 %v795, 1.442695
        %v811 = vpow.pop %v810
        %v812 = vadd.f32 %v797, 1.0
        %v813 = vadd.f32 %v799, 1.0
        %v814 = vadd.f32 %v801, 1.0
        %v815 = vadd.f32 %v803, 1.0
        %v816 = vadd.f32 %v805, 1.0
        %v817 = vadd.f32 %v807, 1.0
        %v818 = vadd.f32 %v809, 1.0
        %v819 = vadd.f32 %v811, 1.0
        %v820 = vrcp.pop %v812
        %v821 = vmul.f32 %v812, %v820
        %v822 = vsub.f32 1.0, %v821
        %v823 = vmul.f32 %v820, %v822
        %v824 = vadd.f32 %v820, %v823
        %vm825 = vweird.f32 %v812
        %vm826 = vweird.f32 %v820
        %vm827 = vmor %vm825, %vm826
        %v828 = vsel %vm827, %v820, %v824
        %v829 = vand.u32 2147483647, %v812
        %vm830 = vcmp.eq.f32.partialorder %v829, 8.507059e+37
        %v831 = vand.u32 %v812, 2147483648
        %v832 = vor.u32 1.1754944e-38, %v831
        %v833 = vsel %vm830, %v832, %v828
        %v834 = vmul.f32 1.0, %v833
        %v835 = vrcp.pop %v813
        %v836 = vmul.f32 %v813, %v835
        %v837 = vsub.f32 1.0, %v836
        %v838 = vmul.f32 %v835, %v837
        %v839 = vadd.f32 %v835, %v838
        %vm840 = vweird.f32 %v813
        %vm841 = vweird.f32 %v835
        %vm842 = vmor %vm840, %vm841
        %v843 = vsel %vm842, %v835, %v839
        %v844 = vand.u32 2147483647, %v813
        %vm845 = vcmp.eq.f32.partialorder %v844, 8.507059e+37
        %v846 = vand.u32 %v813, 2147483648
        %v847 = vor.u32 1.1754944e-38, %v846
        %v848 = vsel %vm845, %v847, %v843
        %v849 = vmul.f32 1.0, %v848
        %v850 = vrcp.pop %v814
        %v851 = vmul.f32 %v814, %v850
        %v852 = vsub.f32 1.0, %v851
        %v853 = vmul.f32 %v850, %v852
        %v854 = vadd.f32 %v850, %v853
        %vm855 = vweird.f32 %v814
        %vm856 = vweird.f32 %v850
        %vm857 = vmor %vm855, %vm856
        %v858 = vsel %vm857, %v850, %v854
        %v859 = vand.u32 2147483647, %v814
        %vm860 = vcmp.eq.f32.partialorder %v859, 8.507059e+37
        %v861 = vand.u32 %v814, 2147483648
        %v862 = vor.u32 1.1754944e-38, %v861
        %v863 = vsel %vm860, %v862, %v858
        %v864 = vmul.f32 1.0, %v863
        %v865 = vrcp.pop %v815
        %v866 = vmul.f32 %v815, %v865
        %v867 = vsub.f32 1.0, %v866
        %v868 = vmul.f32 %v865, %v867
        %v869 = vadd.f32 %v865, %v868
        %vm870 = vweird.f32 %v815
        %vm871 = vweird.f32 %v865
        %vm872 = vmor %vm870, %vm871
        %v873 = vsel %vm872, %v865, %v869
        %v874 = vand.u32 2147483647, %v815
        %vm875 = vcmp.eq.f32.partialorder %v874, 8.507059e+37
        %v876 = vand.u32 %v815, 2147483648
        %v877 = vor.u32 1.1754944e-38, %v876
        %v878 = vsel %vm875, %v877, %v873
        %v879 = vmul.f32 1.0, %v878
        %v880 = vrcp.pop %v816
        %v881 = vmul.f32 %v816, %v880
        %v882 = vsub.f32 1.0, %v881
        %v883 = vmul.f32 %v880, %v882
        %v884 = vadd.f32 %v880, %v883
        %vm885 = vweird.f32 %v816
        %vm886 = vweird.f32 %v880
        %vm887 = vmor %vm885, %vm886
        %v888 = vsel %vm887, %v880, %v884
        %v889 = vand.u32 2147483647, %v816
        %vm890 = vcmp.eq.f32.partialorder %v889, 8.507059e+37
        %v891 = vand.u32 %v816, 2147483648
        %v892 = vor.u32 1.1754944e-38, %v891
        %v893 = vsel %vm890, %v892, %v888
        %v894 = vmul.f32 1.0, %v893
        %v895 = vrcp.pop %v817
        %v896 = vmul.f32 %v817, %v895
        %v897 = vsub.f32 1.0, %v896
        %v898 = vmul.f32 %v895, %v897
        %v899 = vadd.f32 %v895, %v898
        %vm900 = vweird.f32 %v817
        %vm901 = vweird.f32 %v895
        %vm902 = vmor %vm900, %vm901
        %v903 = vsel %vm902, %v895, %v899
        %v904 = vand.u32 2147483647, %v817
        %vm905 = vcmp.eq.f32.partialorder %v904, 8.507059e+37
        %v906 = vand.u32 %v817, 2147483648
        %v907 = vor.u32 1.1754944e-38, %v906
        %v908 = vsel %vm905, %v907, %v903
        %v909 = vmul.f32 1.0, %v908
        %v910 = vrcp.pop %v818
        %v911 = vmul.f32 %v818, %v910
        %v912 = vsub.f32 1.0, %v911
        %v913 = vmul.f32 %v910, %v912
        %v914 = vadd.f32 %v910, %v913
        %vm915 = vweird.f32 %v818
        %vm916 = vweird.f32 %v910
        %vm917 = vmor %vm915, %vm916
        %v918 = vsel %vm917, %v910, %v914
        %v919 = vand.u32 2147483647, %v818
        %vm920 = vcmp.eq.f32.partialorder %v919, 8.507059e+37
        %v921 = vand.u32 %v818, 2147483648
        %v922 = vor.u32 1.1754944e-38, %v921
        %v923 = vsel %vm920, %v922, %v918
        %v924 = vmul.f32 1.0, %v923
        %v925 = vrcp.pop %v819
        %v926 = vmul.f32 %v819, %v925
        %v927 = vsub.f32 1.0, %v926
        %v928 = vmul.f32 %v925, %v927
        %v929 = vadd.f32 %v925, %v928
        %vm930 = vweird.f32 %v819
        %vm931 = vweird.f32 %v925
        %vm932 = vmor %vm930, %vm931
        %v933 = vsel %vm932, %v925, %v929
        %v934 = vand.u32 2147483647, %v819
        %vm935 = vcmp.eq.f32.partialorder %v934, 8.507059e+37
        %v936 = vand.u32 %v819, 2147483648
        %v937 = vor.u32 1.1754944e-38, %v936
        %v938 = vsel %vm935, %v937, %v933
        %v939 = vmul.f32 1.0, %v938
        %v940 = vmul.f32 %v780, %v834
        %v941 = vmul.f32 %v781, %v849
        %v942 = vmul.f32 %v782, %v864
        %v943 = vmul.f32 %v783, %v879
        %v944 = vmul.f32 %v784, %v894
        %v945 = vmul.f32 %v785, %v909
        %v946 = vmul.f32 %v786, %v924
        %v947 = vmul.f32 %v787, %v939
        %vm948 = vcmask 257024
        %949 = vst.msk [vmem:[#allocation2] sm:$0xf] %vm948, 0
        %vm950 = vcmask 253952
        %951 = vst.msk [vmem:[#allocation2 + $0x4] sm:$0x1] %vm950, 0
        %s952 = scalar_lea.vmem [#allocation2], 72
        %953 = vst.msk [vmem:[%s952] sm:$0xf] %vm948, 0
        %954 = vst.msk [vmem:[%s952 + $0x4] sm:$0x1] %vm950, 0
        %vm955 = vcmask 253952
        %vm956 = vsmask.f32 256
        %vm957 = vmand %vm955, %vm956
        %v958 = vld [vmem:[#allocation2] sm:$0x1]
        %v959 = vsel %vm957, 0, %v958
        %960 = vst [vmem:[#allocation2] sm:$0x1] %v959
        %v961 = vld [vmem:[#allocation2 + $0x8] sm:$0x1]
        %v962 = vsel %vm957, 0, %v961
        %963 = vst [vmem:[#allocation2 + $0x8] sm:$0x1] %v962
        %v964 = vld [vmem:[#allocation2 + $0x10] sm:$0x1]
        %v965 = vsel %vm957, 0, %v964
        %966 = vst [vmem:[#allocation2 + $0x10] sm:$0x1] %v965
        %v967 = vld [vmem:[#allocation2 + $0x18] sm:$0x1]
        %v968 = vsel %vm957, 0, %v967
        %969 = vst [vmem:[#allocation2 + $0x18] sm:$0x1] %v968
        %v970 = vld [vmem:[#allocation2 + $0x20] sm:$0x1]
        %v971 = vsel %vm957, 0, %v970
        %972 = vst [vmem:[#allocation2 + $0x20] sm:$0x1] %v971
        %v973 = vld [vmem:[#allocation2 + $0x28] sm:$0x1]
        %v974 = vsel %vm957, 0, %v973
        %975 = vst [vmem:[#allocation2 + $0x28] sm:$0x1] %v974
        %v976 = vld [vmem:[#allocation2 + $0x30] sm:$0x1]
        %v977 = vsel %vm957, 0, %v976
        %978 = vst [vmem:[#allocation2 + $0x30] sm:$0x1] %v977
        %v979 = vld [vmem:[#allocation2 + $0x38] sm:$0x1]
        %v980 = vsel %vm957, 0, %v979
        %981 = vst [vmem:[#allocation2 + $0x38] sm:$0x1] %v980
        %v982 = vld [vmem:[#allocation2 + $0x40] sm:$0x1]
        %v983 = vsel %vm957, 0, %v982
        %984 = vst [vmem:[#allocation2 + $0x40] sm:$0x1] %v983
        %v985 = vld [vmem:[#allocation2 + $0x48] sm:$0x1]
        %v986 = vsel %vm957, 0, %v985
        %987 = vst [vmem:[#allocation2 + $0x48] sm:$0x1] %v986
        %vm988 = vsmask.f32 7938
        %vm989 = vmand %vm955, %vm988
        %v990 = vld [vmem:[#allocation2 + $0x4] sm:$0x1]
        %v991 = vsel %vm989, 0, %v990
        %992 = vst [vmem:[#allocation2 + $0x4] sm:$0x1] %v991
        %v993 = vld [vmem:[#allocation2 + $0xc] sm:$0x1]
        %v994 = vsel %vm989, 0, %v993
        %995 = vst [vmem:[#allocation2 + $0xc] sm:$0x1] %v994
        %v996 = vld [vmem:[#allocation2 + $0x14] sm:$0x1]
        %v997 = vsel %vm989, 0, %v996
        %998 = vst [vmem:[#allocation2 + $0x14] sm:$0x1] %v997
        %v999 = vld [vmem:[#allocation2 + $0x1c] sm:$0x1]
        %v1000 = vsel %vm989, 0, %v999
        %1001 = vst [vmem:[#allocation2 + $0x1c] sm:$0x1] %v1000
        %v1002 = vld [vmem:[#allocation2 + $0x24] sm:$0x1]
        %v1003 = vsel %vm989, 0, %v1002
        %1004 = vst [vmem:[#allocation2 + $0x24] sm:$0x1] %v1003
        %v1005 = vld [vmem:[#allocation2 + $0x2c] sm:$0x1]
        %v1006 = vsel %vm989, 0, %v1005
        %1007 = vst [vmem:[#allocation2 + $0x2c] sm:$0x1] %v1006
        %v1008 = vld [vmem:[#allocation2 + $0x34] sm:$0x1]
        %v1009 = vsel %vm989, 0, %v1008
        %1010 = vst [vmem:[#allocation2 + $0x34] sm:$0x1] %v1009
        %v1011 = vld [vmem:[#allocation2 + $0x3c] sm:$0x1]
        %v1012 = vsel %vm989, 0, %v1011
        %1013 = vst [vmem:[#allocation2 + $0x3c] sm:$0x1] %v1012
        %v1014 = vld [vmem:[#allocation2 + $0x44] sm:$0x1]
        %v1015 = vsel %vm989, 0, %v1014
        %1016 = vst [vmem:[#allocation2 + $0x44] sm:$0x1] %v1015
        %v1017 = vld [vmem:[#allocation2 + $0x4c] sm:$0x1]
        %v1018 = vsel %vm989, 0, %v1017
        %1019 = vst [vmem:[#allocation2 + $0x4c] sm:$0x1] %v1018
        %v1020 = vpack.c.bf16 %v940, %v940
        %v1021 = vpack.c.bf16 %v941, %v941
        %v1022 = vpack.c.bf16 %v942, %v942
        %v1023 = vpack.c.bf16 %v943, %v943
        %v1024 = vpack.c.bf16 %v944, %v944
        %v1025 = vpack.c.bf16 %v945, %v945
        %v1026 = vpack.c.bf16 %v946, %v946
        %v1027 = vpack.c.bf16 %v947, %v947
        %v1029 = vshrl.u32 %v1020, 16
        %v1031 = vrot.slane %v1029, 7
        %v1032 = vshll.u32 %v1020, 16
        %v1034 = vor.u32 %v1031, %v1032
        %v1035 = vrot.slane %v1031, 4
        %v1037 = vshrl.u32 %v1021, 16
        %v1039 = vrot.slane %v1037, 7
        %v1040 = vshll.u32 %v1021, 16
        %v1042 = vor.u32 %v1039, %v1040
        %v1043 = vrot.slane %v1039, 4
        %v1045 = vshrl.u32 %v1022, 16
        %v1047 = vrot.slane %v1045, 7
        %v1048 = vshll.u32 %v1022, 16
        %v1050 = vor.u32 %v1047, %v1048
        %v1051 = vrot.slane %v1047, 4
        %v1053 = vshrl.u32 %v1023, 16
        %v1055 = vrot.slane %v1053, 7
        %v1056 = vshll.u32 %v1023, 16
        %v1058 = vor.u32 %v1055, %v1056
        %v1059 = vrot.slane %v1055, 4
        %v1061 = vshrl.u32 %v1024, 16
        %v1063 = vrot.slane %v1061, 7
        %v1064 = vshll.u32 %v1024, 16
        %v1066 = vor.u32 %v1063, %v1064
        %v1067 = vrot.slane %v1063, 4
        %v1069 = vshrl.u32 %v1025, 16
        %v1071 = vrot.slane %v1069, 7
        %v1072 = vshll.u32 %v1025, 16
        %v1074 = vor.u32 %v1071, %v1072
        %v1075 = vrot.slane %v1071, 4
        %v1077 = vshrl.u32 %v1026, 16
        %v1079 = vrot.slane %v1077, 7
        %v1080 = vshll.u32 %v1026, 16
        %v1082 = vor.u32 %v1079, %v1080
        %v1083 = vrot.slane %v1079, 4
        %v1085 = vshrl.u32 %v1027, 16
        %v1087 = vrot.slane %v1085, 7
        %v1088 = vshll.u32 %v1027, 16
        %v1090 = vor.u32 %v1087, %v1088
        %v1091 = vrot.slane %v1087, 4
        %s1108 = scalar_lea.vmem [#allocation2], 8
        %vm1109 = vcmask 257024
        %vm1110 = vmand %vm1109, %vm988
        %v1111 = vld [vmem:[%s1108] sm:$0xf]
        %v1112 = vsel %vm1110, %v1034, %v1111
        %1113 = vst [vmem:[%s1108] sm:$0xf] %v1112
        %v1114 = vld [vmem:[%s1108 + $0x4] sm:$0x1]
        %v1115 = vsel %vm957, %v1035, %v1114
        %1116 = vst [vmem:[%s1108 + $0x4] sm:$0x1] %v1115
        %v1117 = vld [vmem:[%s1108 + $0x8] sm:$0xf]
        %v1118 = vsel %vm1110, %v1042, %v1117
        %1119 = vst [vmem:[%s1108 + $0x8] sm:$0xf] %v1118
        %v1120 = vld [vmem:[%s1108 + $0xc] sm:$0x1]
        %v1121 = vsel %vm957, %v1043, %v1120
        %1122 = vst [vmem:[%s1108 + $0xc] sm:$0x1] %v1121
        %v1123 = vld [vmem:[%s1108 + $0x10] sm:$0xf]
        %v1124 = vsel %vm1110, %v1050, %v1123
        %1125 = vst [vmem:[%s1108 + $0x10] sm:$0xf] %v1124
        %v1126 = vld [vmem:[%s1108 + $0x14] sm:$0x1]
        %v1127 = vsel %vm957, %v1051, %v1126
        %1128 = vst [vmem:[%s1108 + $0x14] sm:$0x1] %v1127
        %v1129 = vld [vmem:[%s1108 + $0x18] sm:$0xf]
        %v1130 = vsel %vm1110, %v1058, %v1129
        %1131 = vst [vmem:[%s1108 + $0x18] sm:$0xf] %v1130
        %v1132 = vld [vmem:[%s1108 + $0x1c] sm:$0x1]
        %v1133 = vsel %vm957, %v1059, %v1132
        %1134 = vst [vmem:[%s1108 + $0x1c] sm:$0x1] %v1133
        %v1135 = vld [vmem:[%s1108 + $0x20] sm:$0xf]
        %v1136 = vsel %vm1110, %v1066, %v1135
        %1137 = vst [vmem:[%s1108 + $0x20] sm:$0xf] %v1136
        %v1138 = vld [vmem:[%s1108 + $0x24] sm:$0x1]
        %v1139 = vsel %vm957, %v1067, %v1138
        %1140 = vst [vmem:[%s1108 + $0x24] sm:$0x1] %v1139
        %v1141 = vld [vmem:[%s1108 + $0x28] sm:$0xf]
        %v1142 = vsel %vm1110, %v1074, %v1141
        %1143 = vst [vmem:[%s1108 + $0x28] sm:$0xf] %v1142
        %v1144 = vld [vmem:[%s1108 + $0x2c] sm:$0x1]
        %v1145 = vsel %vm957, %v1075, %v1144
        %1146 = vst [vmem:[%s1108 + $0x2c] sm:$0x1] %v1145
        %v1147 = vld [vmem:[%s1108 + $0x30] sm:$0xf]
        %v1148 = vsel %vm1110, %v1082, %v1147
        %1149 = vst [vmem:[%s1108 + $0x30] sm:$0xf] %v1148
        %v1150 = vld [vmem:[%s1108 + $0x34] sm:$0x1]
        %v1151 = vsel %vm957, %v1083, %v1150
        %1152 = vst [vmem:[%s1108 + $0x34] sm:$0x1] %v1151
        %v1153 = vld [vmem:[%s1108 + $0x38] sm:$0xf]
        %v1154 = vsel %vm1110, %v1090, %v1153
        %1155 = vst [vmem:[%s1108 + $0x38] sm:$0xf] %v1154
        %v1156 = vld [vmem:[%s1108 + $0x3c] sm:$0x1]
        %v1157 = vsel %vm957, %v1091, %v1156
        %1158 = vst [vmem:[%s1108 + $0x3c] sm:$0x1] %v1157
        %v1159 = vld [vmem:[#allocation2] sm:$0xf]
        %v1160 = vld [vmem:[#allocation2 + $0x8] sm:$0xf]
        %v1161 = vld [vmem:[#allocation2 + $0x10] sm:$0xf]
        %v1162 = vld [vmem:[#allocation2 + $0x18] sm:$0xf]
        %v1163 = vld [vmem:[#allocation2 + $0x20] sm:$0xf]
        %v1164 = vld [vmem:[#allocation2 + $0x28] sm:$0xf]
        %v1165 = vld [vmem:[#allocation2 + $0x30] sm:$0xf]
        %v1166 = vld [vmem:[#allocation2 + $0x38] sm:$0xf]
        %v1167 = vld [vmem:[%s5] sm:$0xf]
        %v1168 = vld [vmem:[%s5 + $0x4] sm:$0xf]
        %v1169 = vld [vmem:[%s5 + $0x8] sm:$0xf]
        %v1170 = vld [vmem:[%s5 + $0xc] sm:$0xf]
        %v1171 = vld [vmem:[#allocation2 + $0x4] sm:$0x1]
        %v1172 = vld [vmem:[#allocation2 + $0xc] sm:$0x1]
        %v1173 = vld [vmem:[#allocation2 + $0x14] sm:$0x1]
        %v1174 = vld [vmem:[#allocation2 + $0x1c] sm:$0x1]
        %v1175 = vld [vmem:[#allocation2 + $0x24] sm:$0x1]
        %v1176 = vld [vmem:[#allocation2 + $0x2c] sm:$0x1]
        %v1177 = vld [vmem:[#allocation2 + $0x34] sm:$0x1]
        %v1178 = vld [vmem:[#allocation2 + $0x3c] sm:$0x1]
        %vm1179 = vsmask.f32 3328
        %vm1180 = vsmask.f32 7440
        %vm1181 = vmor %vm1179, %vm1180
        %v1183 = vshrl.u32 %v1159, 16
        %v1185 = vrot.slane %v1183, 4
        %v1186 = vshll.u32 %v1159, 16
        %v1188 = vrot.slane %v1186, 5
        %v1189 = vor.u32 %v1185, %v1188
        %v1190 = vrot.slane %v1189, 4
        %v1192 = vshll.u32 %v1171, 16
        %v1194 = vrot.slane %v1192, 5
        %v1195 = vsel %vm1181, %v1190, %v1194
        %v1197 = vshrl.u32 %v1160, 16
        %v1199 = vrot.slane %v1197, 4
        %v1200 = vshll.u32 %v1160, 16
        %v1202 = vrot.slane %v1200, 5
        %v1203 = vor.u32 %v1199, %v1202
        %v1204 = vrot.slane %v1203, 4
        %v1206 = vshll.u32 %v1172, 16
        %v1208 = vrot.slane %v1206, 5
        %v1209 = vsel %vm1181, %v1204, %v1208
        %v1211 = vshrl.u32 %v1161, 16
        %v1213 = vrot.slane %v1211, 4
        %v1214 = vshll.u32 %v1161, 16
        %v1216 = vrot.slane %v1214, 5
        %v1217 = vor.u32 %v1213, %v1216
        %v1218 = vrot.slane %v1217, 4
        %v1220 = vshll.u32 %v1173, 16
        %v1222 = vrot.slane %v1220, 5
        %v1223 = vsel %vm1181, %v1218, %v1222
        %v1225 = vshrl.u32 %v1162, 16
        %v1227 = vrot.slane %v1225, 4
        %v1228 = vshll.u32 %v1162, 16
        %v1230 = vrot.slane %v1228, 5
        %v1231 = vor.u32 %v1227, %v1230
        %v1232 = vrot.slane %v1231, 4
        %v1234 = vshll.u32 %v1174, 16
        %v1236 = vrot.slane %v1234, 5
        %v1237 = vsel %vm1181, %v1232, %v1236
        %v1239 = vshrl.u32 %v1163, 16
        %v1241 = vrot.slane %v1239, 4
        %v1242 = vshll.u32 %v1163, 16
        %v1244 = vrot.slane %v1242, 5
        %v1245 = vor.u32 %v1241, %v1244
        %v1246 = vrot.slane %v1245, 4
        %v1248 = vshll.u32 %v1175, 16
        %v1250 = vrot.slane %v1248, 5
        %v1251 = vsel %vm1181, %v1246, %v1250
        %v1253 = vshrl.u32 %v1164, 16
        %v1255 = vrot.slane %v1253, 4
        %v1256 = vshll.u32 %v1164, 16
        %v1258 = vrot.slane %v1256, 5
        %v1259 = vor.u32 %v1255, %v1258
        %v1260 = vrot.slane %v1259, 4
        %v1262 = vshll.u32 %v1176, 16
        %v1264 = vrot.slane %v1262, 5
        %v1265 = vsel %vm1181, %v1260, %v1264
        %v1267 = vshrl.u32 %v1165, 16
        %v1269 = vrot.slane %v1267, 4
        %v1270 = vshll.u32 %v1165, 16
        %v1272 = vrot.slane %v1270, 5
        %v1273 = vor.u32 %v1269, %v1272
        %v1274 = vrot.slane %v1273, 4
        %v1276 = vshll.u32 %v1177, 16
        %v1278 = vrot.slane %v1276, 5
        %v1279 = vsel %vm1181, %v1274, %v1278
        %v1281 = vshrl.u32 %v1166, 16
        %v1283 = vrot.slane %v1281, 4
        %v1284 = vshll.u32 %v1166, 16
        %v1286 = vrot.slane %v1284, 5
        %v1287 = vor.u32 %v1283, %v1286
        %v1288 = vrot.slane %v1287, 4
        %v1290 = vshll.u32 %v1178, 16
        %v1292 = vrot.slane %v1290, 5
        %v1293 = vsel %vm1181, %v1288, %v1292
        %s1294 = scalar_lea.vmem %s5, 16
        %v1295 = vld [vmem:[%s1294] sm:$0xf]
        %v1296 = vld [vmem:[%s1294 + $0x4] sm:$0xf]
        %v1297 = vld [vmem:[%s1294 + $0x8] sm:$0xf]
        %v1298 = vld [vmem:[%s1294 + $0xc] sm:$0xf]
        %v1299 = vunpack.c.l.b16 %v1195
        %v1300 = vunpack.c.l.b16 %v1209
        %v1301 = vunpack.c.l.b16 %v1223
        %v1302 = vunpack.c.l.b16 %v1237
        %v1303 = vunpack.c.l.b16 %v1251
        %v1304 = vunpack.c.l.b16 %v1265
        %v1305 = vunpack.c.l.b16 %v1279
        %v1306 = vunpack.c.l.b16 %v1293
        %v1307 = vpack.c.b16 %v1300, %v1299
        %v1308 = vpack.c.b16 %v1302, %v1301
        %v1309 = vpack.c.b16 %v1304, %v1303
        %v1310 = vpack.c.b16 %v1306, %v1305
        %v1315 = vunpack.c.l.b16 %v1295
        %v1316 = vunpack.c.l.b16 %v1296
        %v1317 = vunpack.c.l.b16 %v1297
        %v1318 = vunpack.c.l.b16 %v1298
        %v1319 = vpack.c.b16 %v1316, %v1315
        %v1320 = vpack.c.b16 %v1318, %v1317
        %v1324 = vsel %vm574, %v1307, 0
        %v1327 = vsel %vm574, %v1308, 0
        %v1330 = vsel %vm574, %v1309, 0
        %v1333 = vsel %vm574, %v1310, 0
        %1335 = vmatpush.bf16.msra.mxu0 0
        %1336 = vmatpush.bf16.msra.mxu0 0
        %1337 = vmatpush.bf16.msra.mxu0 0
        %1338 = vmatpush.bf16.msra.mxu0 0
        %1339 = vmatpush.bf16.msra.mxu0 0
        %1340 = vmatpush.bf16.msra.mxu0 0
        %1341 = vmatpush.bf16.msra.mxu0 %v1320
        %1342 = vmatpush.bf16.msra.mxu0 %v1319
        %1343 = vmatmul.bf16.gmra.mxu0 %v1324
        %v1344 = vpop.f32.mrf.mxu0
        %v1345 = vadd.f32 0.0, %v1344
        %v1346 = vpop.f32.mrf.mxu0
        %v1347 = vadd.f32 0.0, %v1346
        %1348 = vmatmul.bf16.gmra.mxu0 %v1327
        %v1349 = vpop.f32.mrf.mxu0
        %v1350 = vadd.f32 0.0, %v1349
        %v1351 = vpop.f32.mrf.mxu0
        %v1352 = vadd.f32 0.0, %v1351
        %1353 = vmatmul.bf16.gmra.mxu0 %v1330
        %v1354 = vpop.f32.mrf.mxu0
        %v1355 = vadd.f32 0.0, %v1354
        %v1356 = vpop.f32.mrf.mxu0
        %v1357 = vadd.f32 0.0, %v1356
        %1358 = vmatmul.bf16.gmra.mxu0 %v1333
        %v1359 = vpop.f32.mrf.mxu0
        %v1360 = vadd.f32 0.0, %v1359
        %v1361 = vpop.f32.mrf.mxu0
        %v1362 = vadd.f32 0.0, %v1361
        %1363 = vdwg.mxu0
        %v1372 = vunpack.c.l.b16 %v1159
        %v1373 = vunpack.c.l.b16 %v1160
        %v1374 = vunpack.c.l.b16 %v1161
        %v1375 = vunpack.c.l.b16 %v1162
        %v1376 = vunpack.c.l.b16 %v1163
        %v1377 = vunpack.c.l.b16 %v1164
        %v1378 = vunpack.c.l.b16 %v1165
        %v1379 = vunpack.c.l.b16 %v1166
        %v1380 = vpack.c.b16 %v1373, %v1372
        %v1381 = vpack.c.b16 %v1375, %v1374
        %v1382 = vpack.c.b16 %v1377, %v1376
        %v1383 = vpack.c.b16 %v1379, %v1378
        %v1388 = vunpack.c.l.b16 %v1167
        %v1389 = vunpack.c.l.b16 %v1168
        %v1390 = vunpack.c.l.b16 %v1169
        %v1391 = vunpack.c.l.b16 %v1170
        %v1392 = vpack.c.b16 %v1389, %v1388
        %v1393 = vpack.c.b16 %v1391, %v1390
        %v1397 = vsel %vm574, %v1380, 0
        %v1400 = vsel %vm574, %v1381, 0
        %v1403 = vsel %vm574, %v1382, 0
        %v1406 = vsel %vm574, %v1383, 0
        %1408 = vmatpush.bf16.msra.mxu0 0
        %1409 = vmatpush.bf16.msra.mxu0 0
        %1410 = vmatpush.bf16.msra.mxu0 0
        %1411 = vmatpush.bf16.msra.mxu0 0
        %1412 = vmatpush.bf16.msra.mxu0 0
        %1413 = vmatpush.bf16.msra.mxu0 0
        %1414 = vmatpush.bf16.msra.mxu0 %v1393
        %1415 = vmatpush.bf16.msra.mxu0 %v1392
        %1416 = vmatmul.bf16.gmra.mxu0 %v1397
        %v1417 = vpop.f32.mrf.mxu0
        %v1418 = vadd.f32 %v1345, %v1417
        %v1419 = vpop.f32.mrf.mxu0
        %v1420 = vadd.f32 %v1347, %v1419
        %1421 = vmatmul.bf16.gmra.mxu0 %v1400
        %v1422 = vpop.f32.mrf.mxu0
        %v1423 = vadd.f32 %v1350, %v1422
        %v1424 = vpop.f32.mrf.mxu0
        %v1425 = vadd.f32 %v1352, %v1424
        %1426 = vmatmul.bf16.gmra.mxu0 %v1403
        %v1427 = vpop.f32.mrf.mxu0
        %v1428 = vadd.f32 %v1355, %v1427
        %v1429 = vpop.f32.mrf.mxu0
        %v1430 = vadd.f32 %v1357, %v1429
        %1431 = vmatmul.bf16.gmra.mxu0 %v1406
        %v1432 = vpop.f32.mrf.mxu0
        %v1433 = vadd.f32 %v1360, %v1432
        %v1434 = vpop.f32.mrf.mxu0
        %v1435 = vadd.f32 %v1362, %v1434
        %1436 = vdwg.mxu0
        %v1437 = vld [vmem:[#allocation2] sm:$0xe]
        %v1438 = vld [vmem:[#allocation2 + $0x8] sm:$0xe]
        %v1439 = vld [vmem:[#allocation2 + $0x10] sm:$0xe]
        %v1440 = vld [vmem:[#allocation2 + $0x18] sm:$0xe]
        %v1441 = vld [vmem:[#allocation2 + $0x20] sm:$0xe]
        %v1442 = vld [vmem:[#allocation2 + $0x28] sm:$0xe]
        %v1443 = vld [vmem:[#allocation2 + $0x30] sm:$0xe]
        %v1444 = vld [vmem:[#allocation2 + $0x38] sm:$0xe]
        %vm1461 = vcmask 1042432
        %vm1462 = vcmask 1046532
        %vm1463 = vmor %vm1461, %vm1462
        %v1464 = vrot.slane %v1437, 5
        %v1465 = vrot.slane %v1464, 4
        %v1466 = vrot.slane %v1171, 5
        %v1467 = vsel %vm1463, %v1465, %v1466
        %v1468 = vrot.slane %v1438, 5
        %v1469 = vrot.slane %v1468, 4
        %v1470 = vrot.slane %v1172, 5
        %v1471 = vsel %vm1463, %v1469, %v1470
        %v1472 = vrot.slane %v1439, 5
        %v1473 = vrot.slane %v1472, 4
        %v1474 = vrot.slane %v1173, 5
        %v1475 = vsel %vm1463, %v1473, %v1474
        %v1476 = vrot.slane %v1440, 5
        %v1477 = vrot.slane %v1476, 4
        %v1478 = vrot.slane %v1174, 5
        %v1479 = vsel %vm1463, %v1477, %v1478
        %v1480 = vrot.slane %v1441, 5
        %v1481 = vrot.slane %v1480, 4
        %v1482 = vrot.slane %v1175, 5
        %v1483 = vsel %vm1463, %v1481, %v1482
        %v1484 = vrot.slane %v1442, 5
        %v1485 = vrot.slane %v1484, 4
        %v1486 = vrot.slane %v1176, 5
        %v1487 = vsel %vm1463, %v1485, %v1486
        %v1488 = vrot.slane %v1443, 5
        %v1489 = vrot.slane %v1488, 4
        %v1490 = vrot.slane %v1177, 5
        %v1491 = vsel %vm1463, %v1489, %v1490
        %v1492 = vrot.slane %v1444, 5
        %v1493 = vrot.slane %v1492, 4
        %v1494 = vrot.slane %v1178, 5
        %v1495 = vsel %vm1463, %v1493, %v1494
        %s1496 = scalar_lea.vmem %s5, 32
        %v1497 = vld [vmem:[%s1496] sm:$0xf]
        %v1498 = vld [vmem:[%s1496 + $0x4] sm:$0xf]
        %v1499 = vld [vmem:[%s1496 + $0x8] sm:$0xf]
        %v1500 = vld [vmem:[%s1496 + $0xc] sm:$0xf]
        %v1501 = vunpack.c.l.b16 %v1467
        %v1502 = vunpack.c.l.b16 %v1471
        %v1503 = vunpack.c.l.b16 %v1475
        %v1504 = vunpack.c.l.b16 %v1479
        %v1505 = vunpack.c.l.b16 %v1483
        %v1506 = vunpack.c.l.b16 %v1487
        %v1507 = vunpack.c.l.b16 %v1491
        %v1508 = vunpack.c.l.b16 %v1495
        %v1509 = vpack.c.b16 %v1502, %v1501
        %v1510 = vpack.c.b16 %v1504, %v1503
        %v1511 = vpack.c.b16 %v1506, %v1505
        %v1512 = vpack.c.b16 %v1508, %v1507
        %v1517 = vunpack.c.l.b16 %v1497
        %v1518 = vunpack.c.l.b16 %v1498
        %v1519 = vunpack.c.l.b16 %v1499
        %v1520 = vunpack.c.l.b16 %v1500
        %v1521 = vpack.c.b16 %v1518, %v1517
        %v1522 = vpack.c.b16 %v1520, %v1519
        %v1526 = vsel %vm574, %v1509, 0
        %v1529 = vsel %vm574, %v1510, 0
        %v1532 = vsel %vm574, %v1511, 0
        %v1535 = vsel %vm574, %v1512, 0
        %1537 = vmatpush.bf16.msra.mxu0 0
        %1538 = vmatpush.bf16.msra.mxu0 0
        %1539 = vmatpush.bf16.msra.mxu0 0
        %1540 = vmatpush.bf16.msra.mxu0 0
        %1541 = vmatpush.bf16.msra.mxu0 0
        %1542 = vmatpush.bf16.msra.mxu0 0
        %1543 = vmatpush.bf16.msra.mxu0 %v1522
        %1544 = vmatpush.bf16.msra.mxu0 %v1521
        %1545 = vmatmul.bf16.gmra.mxu0 %v1526
        %v1546 = vpop.f32.mrf.mxu0
        %v1547 = vadd.f32 0.0, %v1546
        %v1548 = vpop.f32.mrf.mxu0
        %v1549 = vadd.f32 0.0, %v1548
        %1550 = vmatmul.bf16.gmra.mxu0 %v1529
        %v1551 = vpop.f32.mrf.mxu0
        %v1552 = vadd.f32 0.0, %v1551
        %v1553 = vpop.f32.mrf.mxu0
        %v1554 = vadd.f32 0.0, %v1553
        %1555 = vmatmul.bf16.gmra.mxu0 %v1532
        %v1556 = vpop.f32.mrf.mxu0
        %v1557 = vadd.f32 0.0, %v1556
        %v1558 = vpop.f32.mrf.mxu0
        %v1559 = vadd.f32 0.0, %v1558
        %1560 = vmatmul.bf16.gmra.mxu0 %v1535
        %v1561 = vpop.f32.mrf.mxu0
        %v1562 = vadd.f32 0.0, %v1561
        %v1563 = vpop.f32.mrf.mxu0
        %v1564 = vadd.f32 0.0, %v1563
        %1565 = vdwg.mxu0
        %v1566 = vadd.f32 %v1418, %v1547
        %v1567 = vadd.f32 %v1420, %v1549
        %v1568 = vadd.f32 %v1423, %v1552
        %v1569 = vadd.f32 %v1425, %v1554
        %v1570 = vadd.f32 %v1428, %v1557
        %v1571 = vadd.f32 %v1430, %v1559
        %v1572 = vadd.f32 %v1433, %v1562
        %v1573 = vadd.f32 %v1435, %v1564
        %v1574 = vld [vmem:[%s1108] sm:$0xf]
        %v1575 = vld [vmem:[%s1108 + $0x8] sm:$0xf]
        %v1576 = vld [vmem:[%s1108 + $0x10] sm:$0xf]
        %v1577 = vld [vmem:[%s1108 + $0x18] sm:$0xf]
        %v1578 = vld [vmem:[%s1108 + $0x20] sm:$0xf]
        %v1579 = vld [vmem:[%s1108 + $0x28] sm:$0xf]
        %v1580 = vld [vmem:[%s1108 + $0x30] sm:$0xf]
        %v1581 = vld [vmem:[%s1108 + $0x38] sm:$0xf]
        %s1582 = scalar_lea.vmem %s5, 48
        %v1583 = vld [vmem:[%s1582] sm:$0xf]
        %v1584 = vld [vmem:[%s1582 + $0x4] sm:$0xf]
        %v1585 = vld [vmem:[%s1582 + $0x8] sm:$0xf]
        %v1586 = vld [vmem:[%s1582 + $0xc] sm:$0xf]
        %v1595 = vunpack.c.l.b16 %v1574
        %v1596 = vunpack.c.l.b16 %v1575
        %v1597 = vunpack.c.l.b16 %v1576
        %v1598 = vunpack.c.l.b16 %v1577
        %v1599 = vunpack.c.l.b16 %v1578
        %v1600 = vunpack.c.l.b16 %v1579
        %v1601 = vunpack.c.l.b16 %v1580
        %v1602 = vunpack.c.l.b16 %v1581
        %v1603 = vpack.c.b16 %v1596, %v1595
        %v1604 = vpack.c.b16 %v1598, %v1597
        %v1605 = vpack.c.b16 %v1600, %v1599
        %v1606 = vpack.c.b16 %v1602, %v1601
        %v1611 = vunpack.c.l.b16 %v1583
        %v1612 = vunpack.c.l.b16 %v1584
        %v1613 = vunpack.c.l.b16 %v1585
        %v1614 = vunpack.c.l.b16 %v1586
        %v1615 = vpack.c.b16 %v1612, %v1611
        %v1616 = vpack.c.b16 %v1614, %v1613
        %v1620 = vsel %vm574, %v1603, 0
        %v1623 = vsel %vm574, %v1604, 0
        %v1626 = vsel %vm574, %v1605, 0
        %v1629 = vsel %vm574, %v1606, 0
        %1631 = vmatpush.bf16.msra.mxu0 0
        %1632 = vmatpush.bf16.msra.mxu0 0
        %1633 = vmatpush.bf16.msra.mxu0 0
        %1634 = vmatpush.bf16.msra.mxu0 0
        %1635 = vmatpush.bf16.msra.mxu0 0
        %1636 = vmatpush.bf16.msra.mxu0 0
        %1637 = vmatpush.bf16.msra.mxu0 %v1616
        %1638 = vmatpush.bf16.msra.mxu0 %v1615
        %1639 = vmatmul.bf16.gmra.mxu0 %v1620
        %v1640 = vpop.f32.mrf.mxu0
        %v1641 = vadd.f32 0.0, %v1640
        %v1642 = vpop.f32.mrf.mxu0
        %v1643 = vadd.f32 0.0, %v1642
        %1644 = vmatmul.bf16.gmra.mxu0 %v1623
        %v1645 = vpop.f32.mrf.mxu0
        %v1646 = vadd.f32 0.0, %v1645
        %v1647 = vpop.f32.mrf.mxu0
        %v1648 = vadd.f32 0.0, %v1647
        %1649 = vmatmul.bf16.gmra.mxu0 %v1626
        %v1650 = vpop.f32.mrf.mxu0
        %v1651 = vadd.f32 0.0, %v1650
        %v1652 = vpop.f32.mrf.mxu0
        %v1653 = vadd.f32 0.0, %v1652
        %1654 = vmatmul.bf16.gmra.mxu0 %v1629
        %v1655 = vpop.f32.mrf.mxu0
        %v1656 = vadd.f32 0.0, %v1655
        %v1657 = vpop.f32.mrf.mxu0
        %v1658 = vadd.f32 0.0, %v1657
        %1659 = vdwg.mxu0
        %v1660 = vadd.f32 %v1566, %v1641
        %v1661 = vadd.f32 %v1567, %v1643
        %v1662 = vadd.f32 %v1568, %v1646
        %v1663 = vadd.f32 %v1569, %v1648
        %v1664 = vadd.f32 %v1570, %v1651
        %v1665 = vadd.f32 %v1571, %v1653
        %v1666 = vadd.f32 %v1572, %v1656
        %v1667 = vadd.f32 %v1573, %v1658
        %v1668 = vld [vmem:[%s1108] sm:$0xf]
        %v1669 = vld [vmem:[%s1108 + $0x4] sm:$0x1]
        %v1670 = vld [vmem:[%s1108 + $0x8] sm:$0xf]
        %v1671 = vld [vmem:[%s1108 + $0xc] sm:$0x1]
        %v1672 = vld [vmem:[%s1108 + $0x10] sm:$0xf]
        %v1673 = vld [vmem:[%s1108 + $0x14] sm:$0x1]
        %v1674 = vld [vmem:[%s1108 + $0x18] sm:$0xf]
        %v1675 = vld [vmem:[%s1108 + $0x1c] sm:$0x1]
        %v1676 = vld [vmem:[%s1108 + $0x20] sm:$0xf]
        %v1677 = vld [vmem:[%s1108 + $0x24] sm:$0x1]
        %v1678 = vld [vmem:[%s1108 + $0x28] sm:$0xf]
        %v1679 = vld [vmem:[%s1108 + $0x2c] sm:$0x1]
        %v1680 = vld [vmem:[%s1108 + $0x30] sm:$0xf]
        %v1681 = vld [vmem:[%s1108 + $0x34] sm:$0x1]
        %v1682 = vld [vmem:[%s1108 + $0x38] sm:$0xf]
        %v1683 = vld [vmem:[%s1108 + $0x3c] sm:$0x1]
        %v1685 = vshrl.u32 %v1668, 16
        %v1687 = vrot.slane %v1685, 4
        %v1688 = vshll.u32 %v1668, 16
        %v1690 = vrot.slane %v1688, 5
        %v1691 = vor.u32 %v1687, %v1690
        %v1692 = vrot.slane %v1691, 4
        %v1694 = vshll.u32 %v1669, 16
        %v1696 = vrot.slane %v1694, 5
        %v1697 = vsel %vm1181, %v1692, %v1696
        %v1699 = vshrl.u32 %v1670, 16
        %v1701 = vrot.slane %v1699, 4
        %v1702 = vshll.u32 %v1670, 16
        %v1704 = vrot.slane %v1702, 5
        %v1705 = vor.u32 %v1701, %v1704
        %v1706 = vrot.slane %v1705, 4
        %v1708 = vshll.u32 %v1671, 16
        %v1710 = vrot.slane %v1708, 5
        %v1711 = vsel %vm1181, %v1706, %v1710
        %v1713 = vshrl.u32 %v1672, 16
        %v1715 = vrot.slane %v1713, 4
        %v1716 = vshll.u32 %v1672, 16
        %v1718 = vrot.slane %v1716, 5
        %v1719 = vor.u32 %v1715, %v1718
        %v1720 = vrot.slane %v1719, 4
        %v1722 = vshll.u32 %v1673, 16
        %v1724 = vrot.slane %v1722, 5
        %v1725 = vsel %vm1181, %v1720, %v1724
        %v1727 = vshrl.u32 %v1674, 16
        %v1729 = vrot.slane %v1727, 4
        %v1730 = vshll.u32 %v1674, 16
        %v1732 = vrot.slane %v1730, 5
        %v1733 = vor.u32 %v1729, %v1732
        %v1734 = vrot.slane %v1733, 4
        %v1736 = vshll.u32 %v1675, 16
        %v1738 = vrot.slane %v1736, 5
        %v1739 = vsel %vm1181, %v1734, %v1738
        %v1741 = vshrl.u32 %v1676, 16
        %v1743 = vrot.slane %v1741, 4
        %v1744 = vshll.u32 %v1676, 16
        %v1746 = vrot.slane %v1744, 5
        %v1747 = vor.u32 %v1743, %v1746
        %v1748 = vrot.slane %v1747, 4
        %v1750 = vshll.u32 %v1677, 16
        %v1752 = vrot.slane %v1750, 5
        %v1753 = vsel %vm1181, %v1748, %v1752
        %v1755 = vshrl.u32 %v1678, 16
        %v1757 = vrot.slane %v1755, 4
        %v1758 = vshll.u32 %v1678, 16
        %v1760 = vrot.slane %v1758, 5
        %v1761 = vor.u32 %v1757, %v1760
        %v1762 = vrot.slane %v1761, 4
        %v1764 = vshll.u32 %v1679, 16
        %v1766 = vrot.slane %v1764, 5
        %v1767 = vsel %vm1181, %v1762, %v1766
        %v1769 = vshrl.u32 %v1680, 16
        %v1771 = vrot.slane %v1769, 4
        %v1772 = vshll.u32 %v1680, 16
        %v1774 = vrot.slane %v1772, 5
        %v1775 = vor.u32 %v1771, %v1774
        %v1776 = vrot.slane %v1775, 4
        %v1778 = vshll.u32 %v1681, 16
        %v1780 = vrot.slane %v1778, 5
        %v1781 = vsel %vm1181, %v1776, %v1780
        %v1783 = vshrl.u32 %v1682, 16
        %v1785 = vrot.slane %v1783, 4
        %v1786 = vshll.u32 %v1682, 16
        %v1788 = vrot.slane %v1786, 5
        %v1789 = vor.u32 %v1785, %v1788
        %v1790 = vrot.slane %v1789, 4
        %v1792 = vshll.u32 %v1683, 16
        %v1794 = vrot.slane %v1792, 5
        %v1795 = vsel %vm1181, %v1790, %v1794
        %s1796 = scalar_lea.vmem %s5, 64
        %v1797 = vld [vmem:[%s1796] sm:$0xf]
        %v1798 = vld [vmem:[%s1796 + $0x4] sm:$0xf]
        %v1799 = vld [vmem:[%s1796 + $0x8] sm:$0xf]
        %v1800 = vld [vmem:[%s1796 + $0xc] sm:$0xf]
        %v1801 = vunpack.c.l.b16 %v1697
        %v1802 = vunpack.c.l.b16 %v1711
        %v1803 = vunpack.c.l.b16 %v1725
        %v1804 = vunpack.c.l.b16 %v1739
        %v1805 = vunpack.c.l.b16 %v1753
        %v1806 = vunpack.c.l.b16 %v1767
        %v1807 = vunpack.c.l.b16 %v1781
        %v1808 = vunpack.c.l.b16 %v1795
        %v1809 = vpack.c.b16 %v1802, %v1801
        %v1810 = vpack.c.b16 %v1804, %v1803
        %v1811 = vpack.c.b16 %v1806, %v1805
        %v1812 = vpack.c.b16 %v1808, %v1807
        %v1817 = vunpack.c.l.b16 %v1797
        %v1818 = vunpack.c.l.b16 %v1798
        %v1819 = vunpack.c.l.b16 %v1799
        %v1820 = vunpack.c.l.b16 %v1800
        %v1821 = vpack.c.b16 %v1818, %v1817
        %v1822 = vpack.c.b16 %v1820, %v1819
        %v1826 = vsel %vm574, %v1809, 0
        %v1829 = vsel %vm574, %v1810, 0
        %v1832 = vsel %vm574, %v1811, 0
        %v1835 = vsel %vm574, %v1812, 0
        %1837 = vmatpush.bf16.msra.mxu0 0
        %1838 = vmatpush.bf16.msra.mxu0 0
        %1839 = vmatpush.bf16.msra.mxu0 0
        %1840 = vmatpush.bf16.msra.mxu0 0
        %1841 = vmatpush.bf16.msra.mxu0 0
        %1842 = vmatpush.bf16.msra.mxu0 0
        %1843 = vmatpush.bf16.msra.mxu0 %v1822
        %1844 = vmatpush.bf16.msra.mxu0 %v1821
        %1845 = vmatmul.bf16.gmra.mxu0 %v1826
        %v1846 = vpop.f32.mrf.mxu0
        %v1847 = vadd.f32 0.0, %v1846
        %v1848 = vpop.f32.mrf.mxu0
        %v1849 = vadd.f32 0.0, %v1848
        %1850 = vmatmul.bf16.gmra.mxu0 %v1829
        %v1851 = vpop.f32.mrf.mxu0
        %v1852 = vadd.f32 0.0, %v1851
        %v1853 = vpop.f32.mrf.mxu0
        %v1854 = vadd.f32 0.0, %v1853
        %1855 = vmatmul.bf16.gmra.mxu0 %v1832
        %v1856 = vpop.f32.mrf.mxu0
        %v1857 = vadd.f32 0.0, %v1856
        %v1858 = vpop.f32.mrf.mxu0
        %v1859 = vadd.f32 0.0, %v1858
        %1860 = vmatmul.bf16.gmra.mxu0 %v1835
        %v1861 = vpop.f32.mrf.mxu0
        %v1862 = vadd.f32 0.0, %v1861
        %v1863 = vpop.f32.mrf.mxu0
        %v1864 = vadd.f32 0.0, %v1863
        %1865 = vdwg.mxu0
        %v1866 = vadd.f32 %v1660, %v1847
        %v1867 = vadd.f32 %v1661, %v1849
        %v1868 = vadd.f32 %v1662, %v1852
        %v1869 = vadd.f32 %v1663, %v1854
        %v1870 = vadd.f32 %v1664, %v1857
        %v1871 = vadd.f32 %v1665, %v1859
        %v1872 = vadd.f32 %v1666, %v1862
        %v1873 = vadd.f32 %v1667, %v1864
        %v1874 = vld [vmem:[%s1108] sm:$0xe]
        %v1875 = vld [vmem:[%s1108 + $0x8] sm:$0xe]
        %v1876 = vld [vmem:[%s1108 + $0x10] sm:$0xe]
        %v1877 = vld [vmem:[%s1108 + $0x18] sm:$0xe]
        %v1878 = vld [vmem:[%s1108 + $0x20] sm:$0xe]
        %v1879 = vld [vmem:[%s1108 + $0x28] sm:$0xe]
        %v1880 = vld [vmem:[%s1108 + $0x30] sm:$0xe]
        %v1881 = vld [vmem:[%s1108 + $0x38] sm:$0xe]
        %v1898 = vrot.slane %v1874, 5
        %v1899 = vrot.slane %v1898, 4
        %v1900 = vrot.slane %v1669, 5
        %v1901 = vsel %vm1463, %v1899, %v1900
        %v1902 = vrot.slane %v1875, 5
        %v1903 = vrot.slane %v1902, 4
        %v1904 = vrot.slane %v1671, 5
        %v1905 = vsel %vm1463, %v1903, %v1904
        %v1906 = vrot.slane %v1876, 5
        %v1907 = vrot.slane %v1906, 4
        %v1908 = vrot.slane %v1673, 5
        %v1909 = vsel %vm1463, %v1907, %v1908
        %v1910 = vrot.slane %v1877, 5
        %v1911 = vrot.slane %v1910, 4
        %v1912 = vrot.slane %v1675, 5
        %v1913 = vsel %vm1463, %v1911, %v1912
        %v1914 = vrot.slane %v1878, 5
        %v1915 = vrot.slane %v1914, 4
        %v1916 = vrot.slane %v1677, 5
        %v1917 = vsel %vm1463, %v1915, %v1916
        %v1918 = vrot.slane %v1879, 5
        %v1919 = vrot.slane %v1918, 4
        %v1920 = vrot.slane %v1679, 5
        %v1921 = vsel %vm1463, %v1919, %v1920
        %v1922 = vrot.slane %v1880, 5
        %v1923 = vrot.slane %v1922, 4
        %v1924 = vrot.slane %v1681, 5
        %v1925 = vsel %vm1463, %v1923, %v1924
        %v1926 = vrot.slane %v1881, 5
        %v1927 = vrot.slane %v1926, 4
        %v1928 = vrot.slane %v1683, 5
        %v1929 = vsel %vm1463, %v1927, %v1928
        %s1930 = scalar_lea.vmem %s5, 80
        %v1931 = vld [vmem:[%s1930] sm:$0xf]
        %v1932 = vld [vmem:[%s1930 + $0x4] sm:$0xf]
        %v1933 = vld [vmem:[%s1930 + $0x8] sm:$0xf]
        %v1934 = vld [vmem:[%s1930 + $0xc] sm:$0xf]
        %v1935 = vunpack.c.l.b16 %v1901
        %v1936 = vunpack.c.l.b16 %v1905
        %v1937 = vunpack.c.l.b16 %v1909
        %v1938 = vunpack.c.l.b16 %v1913
        %v1939 = vunpack.c.l.b16 %v1917
        %v1940 = vunpack.c.l.b16 %v1921
        %v1941 = vunpack.c.l.b16 %v1925
        %v1942 = vunpack.c.l.b16 %v1929
        %v1943 = vpack.c.b16 %v1936, %v1935
        %v1944 = vpack.c.b16 %v1938, %v1937
        %v1945 = vpack.c.b16 %v1940, %v1939
        %v1946 = vpack.c.b16 %v1942, %v1941
        %v1951 = vunpack.c.l.b16 %v1931
        %v1952 = vunpack.c.l.b16 %v1932
        %v1953 = vunpack.c.l.b16 %v1933
        %v1954 = vunpack.c.l.b16 %v1934
        %v1955 = vpack.c.b16 %v1952, %v1951
        %v1956 = vpack.c.b16 %v1954, %v1953
        %v1960 = vsel %vm574, %v1943, 0
        %v1963 = vsel %vm574, %v1944, 0
        %v1966 = vsel %vm574, %v1945, 0
        %v1969 = vsel %vm574, %v1946, 0
        %1971 = vmatpush.bf16.msra.mxu0 0
        %1972 = vmatpush.bf16.msra.mxu0 0
        %1973 = vmatpush.bf16.msra.mxu0 0
        %1974 = vmatpush.bf16.msra.mxu0 0
        %1975 = vmatpush.bf16.msra.mxu0 0
        %1976 = vmatpush.bf16.msra.mxu0 0
        %1977 = vmatpush.bf16.msra.mxu0 %v1956
        %1978 = vmatpush.bf16.msra.mxu0 %v1955
        %1979 = vmatmul.bf16.gmra.mxu0 %v1960
        %v1980 = vpop.f32.mrf.mxu0
        %v1981 = vadd.f32 0.0, %v1980
        %v1982 = vpop.f32.mrf.mxu0
        %v1983 = vadd.f32 0.0, %v1982
        %1984 = vmatmul.bf16.gmra.mxu0 %v1963
        %v1985 = vpop.f32.mrf.mxu0
        %v1986 = vadd.f32 0.0, %v1985
        %v1987 = vpop.f32.mrf.mxu0
        %v1988 = vadd.f32 0.0, %v1987
        %1989 = vmatmul.bf16.gmra.mxu0 %v1966
        %v1990 = vpop.f32.mrf.mxu0
        %v1991 = vadd.f32 0.0, %v1990
        %v1992 = vpop.f32.mrf.mxu0
        %v1993 = vadd.f32 0.0, %v1992
        %1994 = vmatmul.bf16.gmra.mxu0 %v1969
        %v1995 = vpop.f32.mrf.mxu0
        %v1996 = vadd.f32 0.0, %v1995
        %v1997 = vpop.f32.mrf.mxu0
        %v1998 = vadd.f32 0.0, %v1997
        %1999 = vdwg.mxu0
        %v2000 = vadd.f32 %v1866, %v1981
        %v2001 = vadd.f32 %v1867, %v1983
        %v2002 = vadd.f32 %v1868, %v1986
        %v2003 = vadd.f32 %v1869, %v1988
        %v2004 = vadd.f32 %v1870, %v1991
        %v2005 = vadd.f32 %v1871, %v1993
        %v2006 = vadd.f32 %v1872, %v1996
        %v2007 = vadd.f32 %v1873, %v1998
        %s2008 = scalar_lea.vmem [#allocation2], 16
        %v2009 = vld [vmem:[%s2008] sm:$0xf]
        %v2010 = vld [vmem:[%s2008 + $0x8] sm:$0xf]
        %v2011 = vld [vmem:[%s2008 + $0x10] sm:$0xf]
        %v2012 = vld [vmem:[%s2008 + $0x18] sm:$0xf]
        %v2013 = vld [vmem:[%s2008 + $0x20] sm:$0xf]
        %v2014 = vld [vmem:[%s2008 + $0x28] sm:$0xf]
        %v2015 = vld [vmem:[%s2008 + $0x30] sm:$0xf]
        %v2016 = vld [vmem:[%s2008 + $0x38] sm:$0xf]
        %s2017 = scalar_lea.vmem %s5, 96
        %v2018 = vld [vmem:[%s2017] sm:$0xf]
        %v2019 = vld [vmem:[%s2017 + $0x4] sm:$0xf]
        %v2020 = vld [vmem:[%s2017 + $0x8] sm:$0xf]
        %v2021 = vld [vmem:[%s2017 + $0xc] sm:$0xf]
        %v2030 = vunpack.c.l.b16 %v2009
        %v2031 = vunpack.c.l.b16 %v2010
        %v2032 = vunpack.c.l.b16 %v2011
        %v2033 = vunpack.c.l.b16 %v2012
        %v2034 = vunpack.c.l.b16 %v2013
        %v2035 = vunpack.c.l.b16 %v2014
        %v2036 = vunpack.c.l.b16 %v2015
        %v2037 = vunpack.c.l.b16 %v2016
        %v2038 = vpack.c.b16 %v2031, %v2030
        %v2039 = vpack.c.b16 %v2033, %v2032
        %v2040 = vpack.c.b16 %v2035, %v2034
        %v2041 = vpack.c.b16 %v2037, %v2036
        %v2046 = vunpack.c.l.b16 %v2018
        %v2047 = vunpack.c.l.b16 %v2019
        %v2048 = vunpack.c.l.b16 %v2020
        %v2049 = vunpack.c.l.b16 %v2021
        %v2050 = vpack.c.b16 %v2047, %v2046
        %v2051 = vpack.c.b16 %v2049, %v2048
        %v2055 = vsel %vm574, %v2038, 0
        %v2058 = vsel %vm574, %v2039, 0
        %v2061 = vsel %vm574, %v2040, 0
        %v2064 = vsel %vm574, %v2041, 0
        %2066 = vmatpush.bf16.msra.mxu0 0
        %2067 = vmatpush.bf16.msra.mxu0 0
        %2068 = vmatpush.bf16.msra.mxu0 0
        %2069 = vmatpush.bf16.msra.mxu0 0
        %2070 = vmatpush.bf16.msra.mxu0 0
        %2071 = vmatpush.bf16.msra.mxu0 0
        %2072 = vmatpush.bf16.msra.mxu0 %v2051
        %2073 = vmatpush.bf16.msra.mxu0 %v2050
        %2074 = vmatmul.bf16.gmra.mxu0 %v2055
        %v2075 = vpop.f32.mrf.mxu0
        %v2076 = vadd.f32 0.0, %v2075
        %v2077 = vpop.f32.mrf.mxu0
        %v2078 = vadd.f32 0.0, %v2077
        %2079 = vmatmul.bf16.gmra.mxu0 %v2058
        %v2080 = vpop.f32.mrf.mxu0
        %v2081 = vadd.f32 0.0, %v2080
        %v2082 = vpop.f32.mrf.mxu0
        %v2083 = vadd.f32 0.0, %v2082
        %2084 = vmatmul.bf16.gmra.mxu0 %v2061
        %v2085 = vpop.f32.mrf.mxu0
        %v2086 = vadd.f32 0.0, %v2085
        %v2087 = vpop.f32.mrf.mxu0
        %v2088 = vadd.f32 0.0, %v2087
        %2089 = vmatmul.bf16.gmra.mxu0 %v2064
        %v2090 = vpop.f32.mrf.mxu0
        %v2091 = vadd.f32 0.0, %v2090
        %v2092 = vpop.f32.mrf.mxu0
        %v2093 = vadd.f32 0.0, %v2092
        %2094 = vdwg.mxu0
        %v2095 = vadd.f32 %v2000, %v2076
        %v2096 = vadd.f32 %v2001, %v2078
        %v2097 = vadd.f32 %v2002, %v2081
        %v2098 = vadd.f32 %v2003, %v2083
        %v2099 = vadd.f32 %v2004, %v2086
        %v2100 = vadd.f32 %v2005, %v2088
        %v2101 = vadd.f32 %v2006, %v2091
        %v2102 = vadd.f32 %v2007, %v2093
        %v2103 = vld [vmem:[%s2008] sm:$0xf]
        %v2104 = vld [vmem:[%s2008 + $0x4] sm:$0x1]
        %v2105 = vld [vmem:[%s2008 + $0x8] sm:$0xf]
        %v2106 = vld [vmem:[%s2008 + $0xc] sm:$0x1]
        %v2107 = vld [vmem:[%s2008 + $0x10] sm:$0xf]
        %v2108 = vld [vmem:[%s2008 + $0x14] sm:$0x1]
        %v2109 = vld [vmem:[%s2008 + $0x18] sm:$0xf]
        %v2110 = vld [vmem:[%s2008 + $0x1c] sm:$0x1]
        %v2111 = vld [vmem:[%s2008 + $0x20] sm:$0xf]
        %v2112 = vld [vmem:[%s2008 + $0x24] sm:$0x1]
        %v2113 = vld [vmem:[%s2008 + $0x28] sm:$0xf]
        %v2114 = vld [vmem:[%s2008 + $0x2c] sm:$0x1]
        %v2115 = vld [vmem:[%s2008 + $0x30] sm:$0xf]
        %v2116 = vld [vmem:[%s2008 + $0x34] sm:$0x1]
        %v2117 = vld [vmem:[%s2008 + $0x38] sm:$0xf]
        %v2118 = vld [vmem:[%s2008 + $0x3c] sm:$0x1]
        %v2120 = vshrl.u32 %v2103, 16
        %v2122 = vrot.slane %v2120, 4
        %v2123 = vshll.u32 %v2103, 16
        %v2125 = vrot.slane %v2123, 5
        %v2126 = vor.u32 %v2122, %v2125
        %v2127 = vrot.slane %v2126, 4
        %v2129 = vshll.u32 %v2104, 16
        %v2131 = vrot.slane %v2129, 5
        %v2132 = vsel %vm1181, %v2127, %v2131
        %v2134 = vshrl.u32 %v2105, 16
        %v2136 = vrot.slane %v2134, 4
        %v2137 = vshll.u32 %v2105, 16
        %v2139 = vrot.slane %v2137, 5
        %v2140 = vor.u32 %v2136, %v2139
        %v2141 = vrot.slane %v2140, 4
        %v2143 = vshll.u32 %v2106, 16
        %v2145 = vrot.slane %v2143, 5
        %v2146 = vsel %vm1181, %v2141, %v2145
        %v2148 = vshrl.u32 %v2107, 16
        %v2150 = vrot.slane %v2148, 4
        %v2151 = vshll.u32 %v2107, 16
        %v2153 = vrot.slane %v2151, 5
        %v2154 = vor.u32 %v2150, %v2153
        %v2155 = vrot.slane %v2154, 4
        %v2157 = vshll.u32 %v2108, 16
        %v2159 = vrot.slane %v2157, 5
        %v2160 = vsel %vm1181, %v2155, %v2159
        %v2162 = vshrl.u32 %v2109, 16
        %v2164 = vrot.slane %v2162, 4
        %v2165 = vshll.u32 %v2109, 16
        %v2167 = vrot.slane %v2165, 5
        %v2168 = vor.u32 %v2164, %v2167
        %v2169 = vrot.slane %v2168, 4
        %v2171 = vshll.u32 %v2110, 16
        %v2173 = vrot.slane %v2171, 5
        %v2174 = vsel %vm1181, %v2169, %v2173
        %v2176 = vshrl.u32 %v2111, 16
        %v2178 = vrot.slane %v2176, 4
        %v2179 = vshll.u32 %v2111, 16
        %v2181 = vrot.slane %v2179, 5
        %v2182 = vor.u32 %v2178, %v2181
        %v2183 = vrot.slane %v2182, 4
        %v2185 = vshll.u32 %v2112, 16
        %v2187 = vrot.slane %v2185, 5
        %v2188 = vsel %vm1181, %v2183, %v2187
        %v2190 = vshrl.u32 %v2113, 16
        %v2192 = vrot.slane %v2190, 4
        %v2193 = vshll.u32 %v2113, 16
        %v2195 = vrot.slane %v2193, 5
        %v2196 = vor.u32 %v2192, %v2195
        %v2197 = vrot.slane %v2196, 4
        %v2199 = vshll.u32 %v2114, 16
        %v2201 = vrot.slane %v2199, 5
        %v2202 = vsel %vm1181, %v2197, %v2201
        %v2204 = vshrl.u32 %v2115, 16
        %v2206 = vrot.slane %v2204, 4
        %v2207 = vshll.u32 %v2115, 16
        %v2209 = vrot.slane %v2207, 5
        %v2210 = vor.u32 %v2206, %v2209
        %v2211 = vrot.slane %v2210, 4
        %v2213 = vshll.u32 %v2116, 16
        %v2215 = vrot.slane %v2213, 5
        %v2216 = vsel %vm1181, %v2211, %v2215
        %v2218 = vshrl.u32 %v2117, 16
        %v2220 = vrot.slane %v2218, 4
        %v2221 = vshll.u32 %v2117, 16
        %v2223 = vrot.slane %v2221, 5
        %v2224 = vor.u32 %v2220, %v2223
        %v2225 = vrot.slane %v2224, 4
        %v2227 = vshll.u32 %v2118, 16
        %v2229 = vrot.slane %v2227, 5
        %v2230 = vsel %vm1181, %v2225, %v2229
        %s2231 = scalar_lea.vmem %s5, 112
        %v2232 = vld [vmem:[%s2231] sm:$0xf]
        %v2233 = vld [vmem:[%s2231 + $0x4] sm:$0xf]
        %v2234 = vld [vmem:[%s2231 + $0x8] sm:$0xf]
        %v2235 = vld [vmem:[%s2231 + $0xc] sm:$0xf]
        %v2236 = vunpack.c.l.b16 %v2132
        %v2237 = vunpack.c.l.b16 %v2146
        %v2238 = vunpack.c.l.b16 %v2160
        %v2239 = vunpack.c.l.b16 %v2174
        %v2240 = vunpack.c.l.b16 %v2188
        %v2241 = vunpack.c.l.b16 %v2202
        %v2242 = vunpack.c.l.b16 %v2216
        %v2243 = vunpack.c.l.b16 %v2230
        %v2244 = vpack.c.b16 %v2237, %v2236
        %v2245 = vpack.c.b16 %v2239, %v2238
        %v2246 = vpack.c.b16 %v2241, %v2240
        %v2247 = vpack.c.b16 %v2243, %v2242
        %v2252 = vunpack.c.l.b16 %v2232
        %v2253 = vunpack.c.l.b16 %v2233
        %v2254 = vunpack.c.l.b16 %v2234
        %v2255 = vunpack.c.l.b16 %v2235
        %v2256 = vpack.c.b16 %v2253, %v2252
        %v2257 = vpack.c.b16 %v2255, %v2254
        %v2261 = vsel %vm574, %v2244, 0
        %v2264 = vsel %vm574, %v2245, 0
        %v2267 = vsel %vm574, %v2246, 0
        %v2270 = vsel %vm574, %v2247, 0
        %2272 = vmatpush.bf16.msra.mxu0 0
        %2273 = vmatpush.bf16.msra.mxu0 0
        %2274 = vmatpush.bf16.msra.mxu0 0
        %2275 = vmatpush.bf16.msra.mxu0 0
        %2276 = vmatpush.bf16.msra.mxu0 0
        %2277 = vmatpush.bf16.msra.mxu0 0
        %2278 = vmatpush.bf16.msra.mxu0 %v2257
        %2279 = vmatpush.bf16.msra.mxu0 %v2256
        %2280 = vmatmul.bf16.gmra.mxu0 %v2261
        %v2281 = vpop.f32.mrf.mxu0
        %v2282 = vadd.f32 0.0, %v2281
        %v2283 = vpop.f32.mrf.mxu0
        %v2284 = vadd.f32 0.0, %v2283
        %2285 = vmatmul.bf16.gmra.mxu0 %v2264
        %v2286 = vpop.f32.mrf.mxu0
        %v2287 = vadd.f32 0.0, %v2286
        %v2288 = vpop.f32.mrf.mxu0
        %v2289 = vadd.f32 0.0, %v2288
        %2290 = vmatmul.bf16.gmra.mxu0 %v2267
        %v2291 = vpop.f32.mrf.mxu0
        %v2292 = vadd.f32 0.0, %v2291
        %v2293 = vpop.f32.mrf.mxu0
        %v2294 = vadd.f32 0.0, %v2293
        %2295 = vmatmul.bf16.gmra.mxu0 %v2270
        %v2296 = vpop.f32.mrf.mxu0
        %v2297 = vadd.f32 0.0, %v2296
        %v2298 = vpop.f32.mrf.mxu0
        %v2299 = vadd.f32 0.0, %v2298
        %2300 = vdwg.mxu0
        %v2301 = vadd.f32 %v2095, %v2282
        %v2302 = vadd.f32 %v2096, %v2284
        %v2303 = vadd.f32 %v2097, %v2287
        %v2304 = vadd.f32 %v2098, %v2289
        %v2305 = vadd.f32 %v2099, %v2292
        %v2306 = vadd.f32 %v2100, %v2294
        %v2307 = vadd.f32 %v2101, %v2297
        %v2308 = vadd.f32 %v2102, %v2299
        %v2309 = vld [vmem:[%s2008] sm:$0xe]
        %v2310 = vld [vmem:[%s2008 + $0x8] sm:$0xe]
        %v2311 = vld [vmem:[%s2008 + $0x10] sm:$0xe]
        %v2312 = vld [vmem:[%s2008 + $0x18] sm:$0xe]
        %v2313 = vld [vmem:[%s2008 + $0x20] sm:$0xe]
        %v2314 = vld [vmem:[%s2008 + $0x28] sm:$0xe]
        %v2315 = vld [vmem:[%s2008 + $0x30] sm:$0xe]
        %v2316 = vld [vmem:[%s2008 + $0x38] sm:$0xe]
        %v2333 = vrot.slane %v2309, 5
        %v2334 = vrot.slane %v2333, 4
        %v2335 = vrot.slane %v2104, 5
        %v2336 = vsel %vm1463, %v2334, %v2335
        %v2337 = vrot.slane %v2310, 5
        %v2338 = vrot.slane %v2337, 4
        %v2339 = vrot.slane %v2106, 5
        %v2340 = vsel %vm1463, %v2338, %v2339
        %v2341 = vrot.slane %v2311, 5
        %v2342 = vrot.slane %v2341, 4
        %v2343 = vrot.slane %v2108, 5
        %v2344 = vsel %vm1463, %v2342, %v2343
        %v2345 = vrot.slane %v2312, 5
        %v2346 = vrot.slane %v2345, 4
        %v2347 = vrot.slane %v2110, 5
        %v2348 = vsel %vm1463, %v2346, %v2347
        %v2349 = vrot.slane %v2313, 5
        %v2350 = vrot.slane %v2349, 4
        %v2351 = vrot.slane %v2112, 5
        %v2352 = vsel %vm1463, %v2350, %v2351
        %v2353 = vrot.slane %v2314, 5
        %v2354 = vrot.slane %v2353, 4
        %v2355 = vrot.slane %v2114, 5
        %v2356 = vsel %vm1463, %v2354, %v2355
        %v2357 = vrot.slane %v2315, 5
        %v2358 = vrot.slane %v2357, 4
        %v2359 = vrot.slane %v2116, 5
        %v2360 = vsel %vm1463, %v2358, %v2359
        %v2361 = vrot.slane %v2316, 5
        %v2362 = vrot.slane %v2361, 4
        %v2363 = vrot.slane %v2118, 5
        %v2364 = vsel %vm1463, %v2362, %v2363
        %s2365 = scalar_lea.vmem %s5, 128
        %v2366 = vld [vmem:[%s2365] sm:$0xf]
        %v2367 = vld [vmem:[%s2365 + $0x4] sm:$0xf]
        %v2368 = vld [vmem:[%s2365 + $0x8] sm:$0xf]
        %v2369 = vld [vmem:[%s2365 + $0xc] sm:$0xf]
        %v2370 = vunpack.c.l.b16 %v2336
        %v2371 = vunpack.c.l.b16 %v2340
        %v2372 = vunpack.c.l.b16 %v2344
        %v2373 = vunpack.c.l.b16 %v2348
        %v2374 = vunpack.c.l.b16 %v2352
        %v2375 = vunpack.c.l.b16 %v2356
        %v2376 = vunpack.c.l.b16 %v2360
        %v2377 = vunpack.c.l.b16 %v2364
        %v2378 = vpack.c.b16 %v2371, %v2370
        %v2379 = vpack.c.b16 %v2373, %v2372
        %v2380 = vpack.c.b16 %v2375, %v2374
        %v2381 = vpack.c.b16 %v2377, %v2376
        %v2386 = vunpack.c.l.b16 %v2366
        %v2387 = vunpack.c.l.b16 %v2367
        %v2388 = vunpack.c.l.b16 %v2368
        %v2389 = vunpack.c.l.b16 %v2369
        %v2390 = vpack.c.b16 %v2387, %v2386
        %v2391 = vpack.c.b16 %v2389, %v2388
        %v2395 = vsel %vm574, %v2378, 0
        %v2398 = vsel %vm574, %v2379, 0
        %v2401 = vsel %vm574, %v2380, 0
        %v2404 = vsel %vm574, %v2381, 0
        %2406 = vmatpush.bf16.msra.mxu0 0
        %2407 = vmatpush.bf16.msra.mxu0 0
        %2408 = vmatpush.bf16.msra.mxu0 0
        %2409 = vmatpush.bf16.msra.mxu0 0
        %2410 = vmatpush.bf16.msra.mxu0 0
        %2411 = vmatpush.bf16.msra.mxu0 0
        %2412 = vmatpush.bf16.msra.mxu0 %v2391
        %2413 = vmatpush.bf16.msra.mxu0 %v2390
        %2414 = vmatmul.bf16.gmra.mxu0 %v2395
        %v2415 = vpop.f32.mrf.mxu0
        %v2416 = vadd.f32 0.0, %v2415
        %v2417 = vpop.f32.mrf.mxu0
        %v2418 = vadd.f32 0.0, %v2417
        %2419 = vmatmul.bf16.gmra.mxu0 %v2398
        %v2420 = vpop.f32.mrf.mxu0
        %v2421 = vadd.f32 0.0, %v2420
        %v2422 = vpop.f32.mrf.mxu0
        %v2423 = vadd.f32 0.0, %v2422
        %2424 = vmatmul.bf16.gmra.mxu0 %v2401
        %v2425 = vpop.f32.mrf.mxu0
        %v2426 = vadd.f32 0.0, %v2425
        %v2427 = vpop.f32.mrf.mxu0
        %v2428 = vadd.f32 0.0, %v2427
        %2429 = vmatmul.bf16.gmra.mxu0 %v2404
        %v2430 = vpop.f32.mrf.mxu0
        %v2431 = vadd.f32 0.0, %v2430
        %v2432 = vpop.f32.mrf.mxu0
        %v2433 = vadd.f32 0.0, %v2432
        %2434 = vdwg.mxu0
        %v2435 = vadd.f32 %v2301, %v2416
        %v2436 = vadd.f32 %v2302, %v2418
        %v2437 = vadd.f32 %v2303, %v2421
        %v2438 = vadd.f32 %v2304, %v2423
        %v2439 = vadd.f32 %v2305, %v2426
        %v2440 = vadd.f32 %v2306, %v2428
        %v2441 = vadd.f32 %v2307, %v2431
        %v2442 = vadd.f32 %v2308, %v2433
        %v2443 = vld [vmem:[%s6] sm:$0x1]
        %v2445 = vperm.slane %v2443, 0
        %v2447 = vadd.f32 %v2435, %v2445
        %v2448 = vadd.f32 %v2436, %v2445
        %v2449 = vadd.f32 %v2437, %v2445
        %v2450 = vadd.f32 %v2438, %v2445
        %v2451 = vadd.f32 %v2439, %v2445
        %v2452 = vadd.f32 %v2440, %v2445
        %v2453 = vadd.f32 %v2441, %v2445
        %v2454 = vadd.f32 %v2442, %v2445
        %v2455 = vld [vmem:[%s550] sm:$0x1]
        %v2456 = vxor.u32 %v2455, 2147483648
        %v2457 = vmul.f32 %v2456, 1.442695
        %v2458 = vpow.pop %v2457
        %v2459 = vadd.f32 %v2458, 1.0
        %v2460 = vrcp.pop %v2459
        %v2461 = vmul.f32 %v2459, %v2460
        %v2462 = vsub.f32 1.0, %v2461
        %v2463 = vmul.f32 %v2460, %v2462
        %v2464 = vadd.f32 %v2460, %v2463
        %vm2465 = vweird.f32 %v2459
        %vm2466 = vweird.f32 %v2460
        %vm2467 = vmor %vm2465, %vm2466
        %v2468 = vsel %vm2467, %v2460, %v2464
        %v2469 = vand.u32 2147483647, %v2459
        %vm2470 = vcmp.eq.f32.partialorder %v2469, 8.507059e+37
        %v2471 = vand.u32 %v2459, 2147483648
        %v2472 = vor.u32 1.1754944e-38, %v2471
        %v2473 = vsel %vm2470, %v2472, %v2468
        %v2474 = vmul.f32 1.0, %v2473
        %v2475 = vmul.f32 %v2455, %v2474
        %v2476 = vpack.c.bf16 %v2475, %v2475
        %v2477 = vld [vmem:[%s7] sm:$0xf]
        %v2478 = vld [vmem:[%s7 + $0x4] sm:$0xf]
        %v2479 = vld [vmem:[%s7 + $0x8] sm:$0xf]
        %v2480 = vld [vmem:[%s7 + $0xc] sm:$0xf]
        %v2481 = vld [vmem:[%s7 + $0x10] sm:$0xf]
        %v2482 = vld [vmem:[%s7 + $0x14] sm:$0xf]
        %v2483 = vld [vmem:[%s7 + $0x18] sm:$0xf]
        %v2484 = vld [vmem:[%s7 + $0x1c] sm:$0xf]
        %v2485 = vld [vmem:[%s7 + $0x20] sm:$0xf]
        %v2486 = vld [vmem:[%s7 + $0x24] sm:$0xf]
        %v2487 = vld [vmem:[%s7 + $0x28] sm:$0xf]
        %v2488 = vld [vmem:[%s7 + $0x2c] sm:$0xf]
        %v2489 = vld [vmem:[%s7 + $0x30] sm:$0xf]
        %v2490 = vld [vmem:[%s7 + $0x34] sm:$0xf]
        %v2491 = vld [vmem:[%s7 + $0x38] sm:$0xf]
        %v2492 = vld [vmem:[%s7 + $0x3c] sm:$0xf]
        %v2493 = vld [vmem:[%s8] sm:$0x1]
        %v2510 = vunpack.c.l.b16 %v2477
        %v2511 = vunpack.c.l.b16 %v2478
        %v2512 = vunpack.c.l.b16 %v2479
        %v2513 = vunpack.c.l.b16 %v2480
        %v2514 = vunpack.c.l.b16 %v2481
        %v2515 = vunpack.c.l.b16 %v2482
        %v2516 = vunpack.c.l.b16 %v2483
        %v2517 = vunpack.c.l.b16 %v2484
        %v2518 = vunpack.c.l.b16 %v2485
        %v2519 = vunpack.c.l.b16 %v2486
        %v2520 = vunpack.c.l.b16 %v2487
        %v2521 = vunpack.c.l.b16 %v2488
        %v2522 = vunpack.c.l.b16 %v2489
        %v2523 = vunpack.c.l.b16 %v2490
        %v2524 = vunpack.c.l.b16 %v2491
        %v2525 = vunpack.c.l.b16 %v2492
        %v2526 = vpack.c.b16 %v2511, %v2510
        %v2527 = vpack.c.b16 %v2513, %v2512
        %v2528 = vpack.c.b16 %v2515, %v2514
        %v2529 = vpack.c.b16 %v2517, %v2516
        %v2530 = vpack.c.b16 %v2519, %v2518
        %v2531 = vpack.c.b16 %v2521, %v2520
        %v2532 = vpack.c.b16 %v2523, %v2522
        %v2533 = vpack.c.b16 %v2525, %v2524
        %2542 = vmatpush.bf16.msra.mxu0 %v2533
        %2543 = vmatpush.bf16.msra.mxu0 %v2532
        %2544 = vmatpush.bf16.msra.mxu0 %v2531
        %2545 = vmatpush.bf16.msra.mxu0 %v2530
        %2546 = vmatpush.bf16.msra.mxu0 %v2529
        %2547 = vmatpush.bf16.msra.mxu0 %v2528
        %2548 = vmatpush.bf16.msra.mxu0 %v2527
        %2549 = vmatpush.bf16.msra.mxu0 %v2526
        %2550 = vmatmul.bf16.gmra.mxu0 %v2476
        %v2551 = vpop.f32.mrf.mxu0
        %v2552 = vadd.f32 %v2493, %v2551
        %v2553 = vpop.f32.mrf.mxu0
        %2554 = vdwg.mxu0
        %v2555 = vperm.slane %v2552, 0
        %v2556 = vadd.f32 %v2447, %v2555
        %v2557 = vadd.f32 %v2448, %v2555
        %v2558 = vadd.f32 %v2449, %v2555
        %v2559 = vadd.f32 %v2450, %v2555
        %v2560 = vadd.f32 %v2451, %v2555
        %v2561 = vadd.f32 %v2452, %v2555
        %v2562 = vadd.f32 %v2453, %v2555
        %v2563 = vadd.f32 %v2454, %v2555
        %v2564 = vld [vmem:[%s11] sm:$0xff]
        %v2565 = vld [vmem:[%s11 + $0x8] sm:$0xff]
        %v2566 = vld [vmem:[%s11 + $0x10] sm:$0xff]
        %v2567 = vld [vmem:[%s11 + $0x18] sm:$0xff]
        %v2568 = vld [vmem:[%s11 + $0x20] sm:$0xff]
        %v2569 = vld [vmem:[%s11 + $0x28] sm:$0xff]
        %v2570 = vld [vmem:[%s11 + $0x30] sm:$0xff]
        %v2571 = vld [vmem:[%s11 + $0x38] sm:$0xff]
        %v2572 = vld [vmem:[%s9] sm:$0x1]
        %v2573 = vld [vmem:[%s10] sm:$0x1]
        %vm2574 = vcmask 523264
        %v2575 = vsel %vm2574, %v2556, 0.0
        %v2576 = vsel %vm2574, %v2557, 0.0
        %v2577 = vadd.f32 %v2575, %v2576
        %v2578 = vsel %vm2574, %v2558, 0.0
        %v2579 = vadd.f32 %v2577, %v2578
        %v2580 = vsel %vm2574, %v2559, 0.0
        %v2581 = vadd.f32 %v2579, %v2580
        %v2582 = vsel %vm2574, %v2560, 0.0
        %v2583 = vadd.f32 %v2581, %v2582
        %v2584 = vsel %vm2574, %v2561, 0.0
        %v2585 = vadd.f32 %v2583, %v2584
        %v2586 = vsel %vm2574, %v2562, 0.0
        %v2587 = vadd.f32 %v2585, %v2586
        %v2588 = vsel %vm2574, %v2563, 0.0
        %v2589 = vadd.f32 %v2587, %v2588
        %v2590 = vrot.slane %v2589, 4
        %v2591 = vadd.f32 %v2589, %v2590
        %v2592 = vrot.slane %v2591, 2
        %v2593 = vadd.f32 %v2591, %v2592
        %v2594 = vrot.slane %v2593, 1
        %v2595 = vadd.f32 %v2593, %v2594
        %v2597 = vsel %vm2574, %v2595, 0
        %2599 = vmatpush.msra.mxu0 0.0
        %2600 = vmatpush.msra.mxu0 0.0
        %2601 = vmatpush.msra.mxu0 0.0
        %2602 = vmatpush.msra.mxu0 0.0
        %2603 = vmatpush.msra.mxu0 0.0
        %2604 = vmatpush.msra.mxu0 0.0
        %2605 = vmatpush.msra.mxu0 0.0
        %2606 = vmatpush.msra.mxu0 0.0
        %2607 = vmatpush.msra.mxu0 %v2571
        %2608 = vmatpush.msra.mxu0 %v2570
        %2609 = vmatpush.msra.mxu0 %v2569
        %2610 = vmatpush.msra.mxu0 %v2568
        %2611 = vmatpush.msra.mxu0 %v2567
        %2612 = vmatpush.msra.mxu0 %v2566
        %2613 = vmatpush.msra.mxu0 %v2565
        %2614 = vmatpush.msra.mxu0 %v2564
        %2615 = vmatmul.f32.gmra.mxu0 %v2597
        %v2616 = vpop.f32.mrf.mxu0
        %v2617 = vadd.f32 0.0, %v2616
        %2618 = vdwg.mxu0
        %v2619 = vrcp.pop 128.0
        %v2620 = vmul.f32 128.0, %v2619
        %v2621 = vsub.f32 1.0, %v2620
        %v2622 = vmul.f32 %v2619, %v2621
        %v2623 = vadd.f32 %v2619, %v2622
        %vm2624 = vweird.f32 %v2619
        %v2625 = vsel %vm2624, %v2619, %v2623
        %v2626 = vmul.f32 %v2617, %v2625
        %v2628 = vsel %vm574, %v2626, 0
        %v2631 = vsel %vm574, %v2564, 0
        %v2634 = vsel %vm574, %v2565, 0
        %v2637 = vsel %vm574, %v2566, 0
        %v2640 = vsel %vm574, %v2567, 0
        %v2643 = vsel %vm574, %v2568, 0
        %v2646 = vsel %vm574, %v2569, 0
        %v2649 = vsel %vm574, %v2570, 0
        %v2652 = vsel %vm574, %v2571, 0
        %2654 = vmatpush.xpose.msra.mxu0 0.0
        %2655 = vmatpush.xpose.msra.mxu0 0.0
        %2656 = vmatpush.xpose.msra.mxu0 0.0
        %2657 = vmatpush.xpose.msra.mxu0 0.0
        %2658 = vmatpush.xpose.msra.mxu0 0.0
        %2659 = vmatpush.xpose.msra.mxu0 0.0
        %2660 = vmatpush.xpose.msra.mxu0 0.0
        %2661 = vmatpush.xpose.msra.mxu0 0.0
        %2662 = vmatpush.xpose.msra.mxu0 %v2652
        %2663 = vmatpush.xpose.msra.mxu0 %v2649
        %2664 = vmatpush.xpose.msra.mxu0 %v2646
        %2665 = vmatpush.xpose.msra.mxu0 %v2643
        %2666 = vmatpush.xpose.msra.mxu0 %v2640
        %2667 = vmatpush.xpose.msra.mxu0 %v2637
        %2668 = vmatpush.xpose.msra.mxu0 %v2634
        %2669 = vmatpush.xpose.msra.mxu0 %v2631
        %2670 = vmatmul.f32.gmra.mxu0 %v2628
        %v2671 = vpop.f32.mrf.mxu0
        %v2672 = vadd.f32 0.0, %v2671
        %2673 = vdwg.mxu0
        %v2674 = vperm.slane %v2672, 0
        %v2675 = vsub.f32 %v2556, %v2674
        %v2676 = vsub.f32 %v2557, %v2674
        %v2677 = vsub.f32 %v2558, %v2674
        %v2678 = vsub.f32 %v2559, %v2674
        %v2679 = vsub.f32 %v2560, %v2674
        %v2680 = vsub.f32 %v2561, %v2674
        %v2681 = vsub.f32 %v2562, %v2674
        %v2682 = vsub.f32 %v2563, %v2674
        %v2683 = vmul.f32 %v2675, %v2675
        %v2684 = vmul.f32 %v2676, %v2676
        %v2685 = vmul.f32 %v2677, %v2677
        %v2686 = vmul.f32 %v2678, %v2678
        %v2687 = vmul.f32 %v2679, %v2679
        %v2688 = vmul.f32 %v2680, %v2680
        %v2689 = vmul.f32 %v2681, %v2681
        %v2690 = vmul.f32 %v2682, %v2682
        %v2691 = vsel %vm2574, %v2683, 0.0
        %v2692 = vsel %vm2574, %v2684, 0.0
        %v2693 = vadd.f32 %v2691, %v2692
        %v2694 = vsel %vm2574, %v2685, 0.0
        %v2695 = vadd.f32 %v2693, %v2694
        %v2696 = vsel %vm2574, %v2686, 0.0
        %v2697 = vadd.f32 %v2695, %v2696
        %v2698 = vsel %vm2574, %v2687, 0.0
        %v2699 = vadd.f32 %v2697, %v2698
        %v2700 = vsel %vm2574, %v2688, 0.0
        %v2701 = vadd.f32 %v2699, %v2700
        %v2702 = vsel %vm2574, %v2689, 0.0
        %v2703 = vadd.f32 %v2701, %v2702
        %v2704 = vsel %vm2574, %v2690, 0.0
        %v2705 = vadd.f32 %v2703, %v2704
        %v2706 = vrot.slane %v2705, 4
        %v2707 = vadd.f32 %v2705, %v2706
        %v2708 = vrot.slane %v2707, 2
        %v2709 = vadd.f32 %v2707, %v2708
        %v2710 = vrot.slane %v2709, 1
        %v2711 = vadd.f32 %v2709, %v2710
        %v2713 = vsel %vm2574, %v2711, 0
        %2715 = vmatpush.msra.mxu0 0.0
        %2716 = vmatpush.msra.mxu0 0.0
        %2717 = vmatpush.msra.mxu0 0.0
        %2718 = vmatpush.msra.mxu0 0.0
        %2719 = vmatpush.msra.mxu0 0.0
        %2720 = vmatpush.msra.mxu0 0.0
        %2721 = vmatpush.msra.mxu0 0.0
        %2722 = vmatpush.msra.mxu0 0.0
        %2723 = vmatpush.msra.mxu0 %v2571
        %2724 = vmatpush.msra.mxu0 %v2570
        %2725 = vmatpush.msra.mxu0 %v2569
        %2726 = vmatpush.msra.mxu0 %v2568
        %2727 = vmatpush.msra.mxu0 %v2567
        %2728 = vmatpush.msra.mxu0 %v2566
        %2729 = vmatpush.msra.mxu0 %v2565
        %2730 = vmatpush.msra.mxu0 %v2564
        %2731 = vmatmul.f32.gmra.mxu0 %v2713
        %v2732 = vpop.f32.mrf.mxu0
        %v2733 = vadd.f32 0.0, %v2732
        %2734 = vdwg.mxu0
        %v2735 = vmul.f32 %v2733, %v2625
        %v2737 = vsel %vm574, %v2735, 0
        %2739 = vmatpush.xpose.msra.mxu0 0.0
        %2740 = vmatpush.xpose.msra.mxu0 0.0
        %2741 = vmatpush.xpose.msra.mxu0 0.0
        %2742 = vmatpush.xpose.msra.mxu0 0.0
        %2743 = vmatpush.xpose.msra.mxu0 0.0
        %2744 = vmatpush.xpose.msra.mxu0 0.0
        %2745 = vmatpush.xpose.msra.mxu0 0.0
        %2746 = vmatpush.xpose.msra.mxu0 0.0
        %2747 = vmatpush.xpose.msra.mxu0 %v2652
        %2748 = vmatpush.xpose.msra.mxu0 %v2649
        %2749 = vmatpush.xpose.msra.mxu0 %v2646
        %2750 = vmatpush.xpose.msra.mxu0 %v2643
        %2751 = vmatpush.xpose.msra.mxu0 %v2640
        %2752 = vmatpush.xpose.msra.mxu0 %v2637
        %2753 = vmatpush.xpose.msra.mxu0 %v2634
        %2754 = vmatpush.xpose.msra.mxu0 %v2631
        %2755 = vmatmul.f32.gmra.mxu0 %v2737
        %v2756 = vpop.f32.mrf.mxu0
        %v2757 = vadd.f32 1e-06, %v2756
        %2758 = vdwg.mxu0
        %v2759 = vrsqrt.pop %v2757
        %v2760 = vmul.f32 %v2759, %v2757
        %v2761 = vmul.f32 %v2760, %v2759
        %v2762 = vmul.f32 0.5, %v2761
        %v2763 = vsub.f32 1.5, %v2762
        %v2764 = vmul.f32 %v2759, %v2763
        %vm2765 = vweird.f32 %v2757
        %vm2766 = vweird.f32 %v2759
        %vm2767 = vmor %vm2765, %vm2766
        %v2768 = vsel %vm2767, %v2759, %v2764
        %v2769 = vperm.slane %v2768, 0
        %v2770 = vmul.f32 %v2675, %v2769
        %v2771 = vmul.f32 %v2676, %v2769
        %v2772 = vmul.f32 %v2677, %v2769
        %v2773 = vmul.f32 %v2678, %v2769
        %v2774 = vmul.f32 %v2679, %v2769
        %v2775 = vmul.f32 %v2680, %v2769
        %v2776 = vmul.f32 %v2681, %v2769
        %v2777 = vmul.f32 %v2682, %v2769
        %v2779 = vperm.slane %v2572, 0
        %v2781 = vmul.f32 %v2770, %v2779
        %v2782 = vmul.f32 %v2771, %v2779
        %v2783 = vmul.f32 %v2772, %v2779
        %v2784 = vmul.f32 %v2773, %v2779
        %v2785 = vmul.f32 %v2774, %v2779
        %v2786 = vmul.f32 %v2775, %v2779
        %v2787 = vmul.f32 %v2776, %v2779
        %v2788 = vmul.f32 %v2777, %v2779
        %v2790 = vperm.slane %v2573, 0
        %v2792 = vadd.f32 %v2781, %v2790
        %v2793 = vadd.f32 %v2782, %v2790
        %v2794 = vadd.f32 %v2783, %v2790
        %v2795 = vadd.f32 %v2784, %v2790
        %v2796 = vadd.f32 %v2785, %v2790
        %v2797 = vadd.f32 %v2786, %v2790
        %v2798 = vadd.f32 %v2787, %v2790
        %v2799 = vadd.f32 %v2788, %v2790
        %v2800 = vxor.u32 %v2792, 2147483648
        %v2801 = vxor.u32 %v2793, 2147483648
        %v2802 = vxor.u32 %v2794, 2147483648
        %v2803 = vxor.u32 %v2795, 2147483648
        %v2804 = vxor.u32 %v2796, 2147483648
        %v2805 = vxor.u32 %v2797, 2147483648
        %v2806 = vxor.u32 %v2798, 2147483648
        %v2807 = vxor.u32 %v2799, 2147483648
        %v2808 = vmul.f32 %v2800, 1.442695
        %v2809 = vpow.pop %v2808
        %v2810 = vmul.f32 %v2801, 1.442695
        %v2811 = vpow.pop %v2810
        %v2812 = vmul.f32 %v2802, 1.442695
        %v2813 = vpow.pop %v2812
        %v2814 = vmul.f32 %v2803, 1.442695
        %v2815 = vpow.pop %v2814
        %v2816 = vmul.f32 %v2804, 1.442695
        %v2817 = vpow.pop %v2816
        %v2818 = vmul.f32 %v2805, 1.442695
        %v2819 = vpow.pop %v2818
        %v2820 = vmul.f32 %v2806, 1.442695
        %v2821 = vpow.pop %v2820
        %v2822 = vmul.f32 %v2807, 1.442695
        %v2823 = vpow.pop %v2822
        %v2824 = vadd.f32 %v2809, 1.0
        %v2825 = vadd.f32 %v2811, 1.0
        %v2826 = vadd.f32 %v2813, 1.0
        %v2827 = vadd.f32 %v2815, 1.0
        %v2828 = vadd.f32 %v2817, 1.0
        %v2829 = vadd.f32 %v2819, 1.0
        %v2830 = vadd.f32 %v2821, 1.0
        %v2831 = vadd.f32 %v2823, 1.0
        %v2832 = vrcp.pop %v2824
        %v2833 = vmul.f32 %v2824, %v2832
        %v2834 = vsub.f32 1.0, %v2833
        %v2835 = vmul.f32 %v2832, %v2834
        %v2836 = vadd.f32 %v2832, %v2835
        %vm2837 = vweird.f32 %v2824
        %vm2838 = vweird.f32 %v2832
        %vm2839 = vmor %vm2837, %vm2838
        %v2840 = vsel %vm2839, %v2832, %v2836
        %v2841 = vand.u32 2147483647, %v2824
        %vm2842 = vcmp.eq.f32.partialorder %v2841, 8.507059e+37
        %v2843 = vand.u32 %v2824, 2147483648
        %v2844 = vor.u32 1.1754944e-38, %v2843
        %v2845 = vsel %vm2842, %v2844, %v2840
        %v2846 = vmul.f32 1.0, %v2845
        %v2847 = vrcp.pop %v2825
        %v2848 = vmul.f32 %v2825, %v2847
        %v2849 = vsub.f32 1.0, %v2848
        %v2850 = vmul.f32 %v2847, %v2849
        %v2851 = vadd.f32 %v2847, %v2850
        %vm2852 = vweird.f32 %v2825
        %vm2853 = vweird.f32 %v2847
        %vm2854 = vmor %vm2852, %vm2853
        %v2855 = vsel %vm2854, %v2847, %v2851
        %v2856 = vand.u32 2147483647, %v2825
        %vm2857 = vcmp.eq.f32.partialorder %v2856, 8.507059e+37
        %v2858 = vand.u32 %v2825, 2147483648
        %v2859 = vor.u32 1.1754944e-38, %v2858
        %v2860 = vsel %vm2857, %v2859, %v2855
        %v2861 = vmul.f32 1.0, %v2860
        %v2862 = vrcp.pop %v2826
        %v2863 = vmul.f32 %v2826, %v2862
        %v2864 = vsub.f32 1.0, %v2863
        %v2865 = vmul.f32 %v2862, %v2864
        %v2866 = vadd.f32 %v2862, %v2865
        %vm2867 = vweird.f32 %v2826
        %vm2868 = vweird.f32 %v2862
        %vm2869 = vmor %vm2867, %vm2868
        %v2870 = vsel %vm2869, %v2862, %v2866
        %v2871 = vand.u32 2147483647, %v2826
        %vm2872 = vcmp.eq.f32.partialorder %v2871, 8.507059e+37
        %v2873 = vand.u32 %v2826, 2147483648
        %v2874 = vor.u32 1.1754944e-38, %v2873
        %v2875 = vsel %vm2872, %v2874, %v2870
        %v2876 = vmul.f32 1.0, %v2875
        %v2877 = vrcp.pop %v2827
        %v2878 = vmul.f32 %v2827, %v2877
        %v2879 = vsub.f32 1.0, %v2878
        %v2880 = vmul.f32 %v2877, %v2879
        %v2881 = vadd.f32 %v2877, %v2880
        %vm2882 = vweird.f32 %v2827
        %vm2883 = vweird.f32 %v2877
        %vm2884 = vmor %vm2882, %vm2883
        %v2885 = vsel %vm2884, %v2877, %v2881
        %v2886 = vand.u32 2147483647, %v2827
        %vm2887 = vcmp.eq.f32.partialorder %v2886, 8.507059e+37
        %v2888 = vand.u32 %v2827, 2147483648
        %v2889 = vor.u32 1.1754944e-38, %v2888
        %v2890 = vsel %vm2887, %v2889, %v2885
        %v2891 = vmul.f32 1.0, %v2890
        %v2892 = vrcp.pop %v2828
        %v2893 = vmul.f32 %v2828, %v2892
        %v2894 = vsub.f32 1.0, %v2893
        %v2895 = vmul.f32 %v2892, %v2894
        %v2896 = vadd.f32 %v2892, %v2895
        %vm2897 = vweird.f32 %v2828
        %vm2898 = vweird.f32 %v2892
        %vm2899 = vmor %vm2897, %vm2898
        %v2900 = vsel %vm2899, %v2892, %v2896
        %v2901 = vand.u32 2147483647, %v2828
        %vm2902 = vcmp.eq.f32.partialorder %v2901, 8.507059e+37
        %v2903 = vand.u32 %v2828, 2147483648
        %v2904 = vor.u32 1.1754944e-38, %v2903
        %v2905 = vsel %vm2902, %v2904, %v2900
        %v2906 = vmul.f32 1.0, %v2905
        %v2907 = vrcp.pop %v2829
        %v2908 = vmul.f32 %v2829, %v2907
        %v2909 = vsub.f32 1.0, %v2908
        %v2910 = vmul.f32 %v2907, %v2909
        %v2911 = vadd.f32 %v2907, %v2910
        %vm2912 = vweird.f32 %v2829
        %vm2913 = vweird.f32 %v2907
        %vm2914 = vmor %vm2912, %vm2913
        %v2915 = vsel %vm2914, %v2907, %v2911
        %v2916 = vand.u32 2147483647, %v2829
        %vm2917 = vcmp.eq.f32.partialorder %v2916, 8.507059e+37
        %v2918 = vand.u32 %v2829, 2147483648
        %v2919 = vor.u32 1.1754944e-38, %v2918
        %v2920 = vsel %vm2917, %v2919, %v2915
        %v2921 = vmul.f32 1.0, %v2920
        %v2922 = vrcp.pop %v2830
        %v2923 = vmul.f32 %v2830, %v2922
        %v2924 = vsub.f32 1.0, %v2923
        %v2925 = vmul.f32 %v2922, %v2924
        %v2926 = vadd.f32 %v2922, %v2925
        %vm2927 = vweird.f32 %v2830
        %vm2928 = vweird.f32 %v2922
        %vm2929 = vmor %vm2927, %vm2928
        %v2930 = vsel %vm2929, %v2922, %v2926
        %v2931 = vand.u32 2147483647, %v2830
        %vm2932 = vcmp.eq.f32.partialorder %v2931, 8.507059e+37
        %v2933 = vand.u32 %v2830, 2147483648
        %v2934 = vor.u32 1.1754944e-38, %v2933
        %v2935 = vsel %vm2932, %v2934, %v2930
        %v2936 = vmul.f32 1.0, %v2935
        %v2937 = vrcp.pop %v2831
        %v2938 = vmul.f32 %v2831, %v2937
        %v2939 = vsub.f32 1.0, %v2938
        %v2940 = vmul.f32 %v2937, %v2939
        %v2941 = vadd.f32 %v2937, %v2940
        %vm2942 = vweird.f32 %v2831
        %vm2943 = vweird.f32 %v2937
        %vm2944 = vmor %vm2942, %vm2943
        %v2945 = vsel %vm2944, %v2937, %v2941
        %v2946 = vand.u32 2147483647, %v2831
        %vm2947 = vcmp.eq.f32.partialorder %v2946, 8.507059e+37
        %v2948 = vand.u32 %v2831, 2147483648
        %v2949 = vor.u32 1.1754944e-38, %v2948
        %v2950 = vsel %vm2947, %v2949, %v2945
        %v2951 = vmul.f32 1.0, %v2950
        %v2952 = vmul.f32 %v2792, %v2846
        %v2953 = vmul.f32 %v2793, %v2861
        %v2954 = vmul.f32 %v2794, %v2876
        %v2955 = vmul.f32 %v2795, %v2891
        %v2956 = vmul.f32 %v2796, %v2906
        %v2957 = vmul.f32 %v2797, %v2921
        %v2958 = vmul.f32 %v2798, %v2936
        %v2959 = vmul.f32 %v2799, %v2951
        %vm2960 = vcmask 519168
        %2961 = vst.msk [vmem:[#allocation3] sm:$0xf] %vm2960, 0
        %vm2962 = vcmask 516096
        %2963 = vst.msk [vmem:[#allocation3 + $0x4] sm:$0x1] %vm2962, 0
        %s2964 = scalar_lea.vmem [#allocation3], 72
        %2965 = vst.msk [vmem:[%s2964] sm:$0xf] %vm2960, 0
        %2966 = vst.msk [vmem:[%s2964 + $0x4] sm:$0x1] %vm2962, 0
        %vm2967 = vcmask 516096
        %vm2968 = vmand %vm2967, %vm956
        %v2969 = vld [vmem:[#allocation3] sm:$0x1]
        %v2970 = vsel %vm2968, 0, %v2969
        %2971 = vst [vmem:[#allocation3] sm:$0x1] %v2970
        %v2972 = vld [vmem:[#allocation3 + $0x8] sm:$0x1]
        %v2973 = vsel %vm2968, 0, %v2972
        %2974 = vst [vmem:[#allocation3 + $0x8] sm:$0x1] %v2973
        %v2975 = vld [vmem:[#allocation3 + $0x10] sm:$0x1]
        %v2976 = vsel %vm2968, 0, %v2975
        %2977 = vst [vmem:[#allocation3 + $0x10] sm:$0x1] %v2976
        %v2978 = vld [vmem:[#allocation3 + $0x18] sm:$0x1]
        %v2979 = vsel %vm2968, 0, %v2978
        %2980 = vst [vmem:[#allocation3 + $0x18] sm:$0x1] %v2979
        %v2981 = vld [vmem:[#allocation3 + $0x20] sm:$0x1]
        %v2982 = vsel %vm2968, 0, %v2981
        %2983 = vst [vmem:[#allocation3 + $0x20] sm:$0x1] %v2982
        %v2984 = vld [vmem:[#allocation3 + $0x28] sm:$0x1]
        %v2985 = vsel %vm2968, 0, %v2984
        %2986 = vst [vmem:[#allocation3 + $0x28] sm:$0x1] %v2985
        %v2987 = vld [vmem:[#allocation3 + $0x30] sm:$0x1]
        %v2988 = vsel %vm2968, 0, %v2987
        %2989 = vst [vmem:[#allocation3 + $0x30] sm:$0x1] %v2988
        %v2990 = vld [vmem:[#allocation3 + $0x38] sm:$0x1]
        %v2991 = vsel %vm2968, 0, %v2990
        %2992 = vst [vmem:[#allocation3 + $0x38] sm:$0x1] %v2991
        %v2993 = vld [vmem:[#allocation3 + $0x40] sm:$0x1]
        %v2994 = vsel %vm2968, 0, %v2993
        %2995 = vst [vmem:[#allocation3 + $0x40] sm:$0x1] %v2994
        %v2996 = vld [vmem:[#allocation3 + $0x48] sm:$0x1]
        %v2997 = vsel %vm2968, 0, %v2996
        %2998 = vst [vmem:[#allocation3 + $0x48] sm:$0x1] %v2997
        %vm2999 = vmand %vm2967, %vm988
        %v3000 = vld [vmem:[#allocation3 + $0x4] sm:$0x1]
        %v3001 = vsel %vm2999, 0, %v3000
        %3002 = vst [vmem:[#allocation3 + $0x4] sm:$0x1] %v3001
        %v3003 = vld [vmem:[#allocation3 + $0xc] sm:$0x1]
        %v3004 = vsel %vm2999, 0, %v3003
        %3005 = vst [vmem:[#allocation3 + $0xc] sm:$0x1] %v3004
        %v3006 = vld [vmem:[#allocation3 + $0x14] sm:$0x1]
        %v3007 = vsel %vm2999, 0, %v3006
        %3008 = vst [vmem:[#allocation3 + $0x14] sm:$0x1] %v3007
        %v3009 = vld [vmem:[#allocation3 + $0x1c] sm:$0x1]
        %v3010 = vsel %vm2999, 0, %v3009
        %3011 = vst [vmem:[#allocation3 + $0x1c] sm:$0x1] %v3010
        %v3012 = vld [vmem:[#allocation3 + $0x24] sm:$0x1]
        %v3013 = vsel %vm2999, 0, %v3012
        %3014 = vst [vmem:[#allocation3 + $0x24] sm:$0x1] %v3013
        %v3015 = vld [vmem:[#allocation3 + $0x2c] sm:$0x1]
        %v3016 = vsel %vm2999, 0, %v3015
        %3017 = vst [vmem:[#allocation3 + $0x2c] sm:$0x1] %v3016
        %v3018 = vld [vmem:[#allocation3 + $0x34] sm:$0x1]
        %v3019 = vsel %vm2999, 0, %v3018
        %3020 = vst [vmem:[#allocation3 + $0x34] sm:$0x1] %v3019
        %v3021 = vld [vmem:[#allocation3 + $0x3c] sm:$0x1]
        %v3022 = vsel %vm2999, 0, %v3021
        %3023 = vst [vmem:[#allocation3 + $0x3c] sm:$0x1] %v3022
        %v3024 = vld [vmem:[#allocation3 + $0x44] sm:$0x1]
        %v3025 = vsel %vm2999, 0, %v3024
        %3026 = vst [vmem:[#allocation3 + $0x44] sm:$0x1] %v3025
        %v3027 = vld [vmem:[#allocation3 + $0x4c] sm:$0x1]
        %v3028 = vsel %vm2999, 0, %v3027
        %3029 = vst [vmem:[#allocation3 + $0x4c] sm:$0x1] %v3028
        %v3030 = vpack.c.bf16 %v2952, %v2952
        %v3031 = vpack.c.bf16 %v2953, %v2953
        %v3032 = vpack.c.bf16 %v2954, %v2954
        %v3033 = vpack.c.bf16 %v2955, %v2955
        %v3034 = vpack.c.bf16 %v2956, %v2956
        %v3035 = vpack.c.bf16 %v2957, %v2957
        %v3036 = vpack.c.bf16 %v2958, %v2958
        %v3037 = vpack.c.bf16 %v2959, %v2959
        %v3039 = vshrl.u32 %v3030, 16
        %v3041 = vrot.slane %v3039, 7
        %v3042 = vshll.u32 %v3030, 16
        %v3044 = vor.u32 %v3041, %v3042
        %v3045 = vrot.slane %v3041, 4
        %v3047 = vshrl.u32 %v3031, 16
        %v3049 = vrot.slane %v3047, 7
        %v3050 = vshll.u32 %v3031, 16
        %v3052 = vor.u32 %v3049, %v3050
        %v3053 = vrot.slane %v3049, 4
        %v3055 = vshrl.u32 %v3032, 16
        %v3057 = vrot.slane %v3055, 7
        %v3058 = vshll.u32 %v3032, 16
        %v3060 = vor.u32 %v3057, %v3058
        %v3061 = vrot.slane %v3057, 4
        %v3063 = vshrl.u32 %v3033, 16
        %v3065 = vrot.slane %v3063, 7
        %v3066 = vshll.u32 %v3033, 16
        %v3068 = vor.u32 %v3065, %v3066
        %v3069 = vrot.slane %v3065, 4
        %v3071 = vshrl.u32 %v3034, 16
        %v3073 = vrot.slane %v3071, 7
        %v3074 = vshll.u32 %v3034, 16
        %v3076 = vor.u32 %v3073, %v3074
        %v3077 = vrot.slane %v3073, 4
        %v3079 = vshrl.u32 %v3035, 16
        %v3081 = vrot.slane %v3079, 7
        %v3082 = vshll.u32 %v3035, 16
        %v3084 = vor.u32 %v3081, %v3082
        %v3085 = vrot.slane %v3081, 4
        %v3087 = vshrl.u32 %v3036, 16
        %v3089 = vrot.slane %v3087, 7
        %v3090 = vshll.u32 %v3036, 16
        %v3092 = vor.u32 %v3089, %v3090
        %v3093 = vrot.slane %v3089, 4
        %v3095 = vshrl.u32 %v3037, 16
        %v3097 = vrot.slane %v3095, 7
        %v3098 = vshll.u32 %v3037, 16
        %v3100 = vor.u32 %v3097, %v3098
        %v3101 = vrot.slane %v3097, 4
        %s3118 = scalar_lea.vmem [#allocation3], 8
        %vm3119 = vcmask 519168
        %vm3120 = vmand %vm3119, %vm988
        %v3121 = vld [vmem:[%s3118] sm:$0xf]
        %v3122 = vsel %vm3120, %v3044, %v3121
        %3123 = vst [vmem:[%s3118] sm:$0xf] %v3122
        %v3124 = vld [vmem:[%s3118 + $0x4] sm:$0x1]
        %v3125 = vsel %vm2968, %v3045, %v3124
        %3126 = vst [vmem:[%s3118 + $0x4] sm:$0x1] %v3125
        %v3127 = vld [vmem:[%s3118 + $0x8] sm:$0xf]
        %v3128 = vsel %vm3120, %v3052, %v3127
        %3129 = vst [vmem:[%s3118 + $0x8] sm:$0xf] %v3128
        %v3130 = vld [vmem:[%s3118 + $0xc] sm:$0x1]
        %v3131 = vsel %vm2968, %v3053, %v3130
        %3132 = vst [vmem:[%s3118 + $0xc] sm:$0x1] %v3131
        %v3133 = vld [vmem:[%s3118 + $0x10] sm:$0xf]
        %v3134 = vsel %vm3120, %v3060, %v3133
        %3135 = vst [vmem:[%s3118 + $0x10] sm:$0xf] %v3134
        %v3136 = vld [vmem:[%s3118 + $0x14] sm:$0x1]
        %v3137 = vsel %vm2968, %v3061, %v3136
        %3138 = vst [vmem:[%s3118 + $0x14] sm:$0x1] %v3137
        %v3139 = vld [vmem:[%s3118 + $0x18] sm:$0xf]
        %v3140 = vsel %vm3120, %v3068, %v3139
        %3141 = vst [vmem:[%s3118 + $0x18] sm:$0xf] %v3140
        %v3142 = vld [vmem:[%s3118 + $0x1c] sm:$0x1]
        %v3143 = vsel %vm2968, %v3069, %v3142
        %3144 = vst [vmem:[%s3118 + $0x1c] sm:$0x1] %v3143
        %v3145 = vld [vmem:[%s3118 + $0x20] sm:$0xf]
        %v3146 = vsel %vm3120, %v3076, %v3145
        %3147 = vst [vmem:[%s3118 + $0x20] sm:$0xf] %v3146
        %v3148 = vld [vmem:[%s3118 + $0x24] sm:$0x1]
        %v3149 = vsel %vm2968, %v3077, %v3148
        %3150 = vst [vmem:[%s3118 + $0x24] sm:$0x1] %v3149
        %v3151 = vld [vmem:[%s3118 + $0x28] sm:$0xf]
        %v3152 = vsel %vm3120, %v3084, %v3151
        %3153 = vst [vmem:[%s3118 + $0x28] sm:$0xf] %v3152
        %v3154 = vld [vmem:[%s3118 + $0x2c] sm:$0x1]
        %v3155 = vsel %vm2968, %v3085, %v3154
        %3156 = vst [vmem:[%s3118 + $0x2c] sm:$0x1] %v3155
        %v3157 = vld [vmem:[%s3118 + $0x30] sm:$0xf]
        %v3158 = vsel %vm3120, %v3092, %v3157
        %3159 = vst [vmem:[%s3118 + $0x30] sm:$0xf] %v3158
        %v3160 = vld [vmem:[%s3118 + $0x34] sm:$0x1]
        %v3161 = vsel %vm2968, %v3093, %v3160
        %3162 = vst [vmem:[%s3118 + $0x34] sm:$0x1] %v3161
        %v3163 = vld [vmem:[%s3118 + $0x38] sm:$0xf]
        %v3164 = vsel %vm3120, %v3100, %v3163
        %3165 = vst [vmem:[%s3118 + $0x38] sm:$0xf] %v3164
        %v3166 = vld [vmem:[%s3118 + $0x3c] sm:$0x1]
        %v3167 = vsel %vm2968, %v3101, %v3166
        %3168 = vst [vmem:[%s3118 + $0x3c] sm:$0x1] %v3167
        %v3169 = vld [vmem:[#allocation3] sm:$0xf]
        %v3170 = vld [vmem:[#allocation3 + $0x8] sm:$0xf]
        %v3171 = vld [vmem:[#allocation3 + $0x10] sm:$0xf]
        %v3172 = vld [vmem:[#allocation3 + $0x18] sm:$0xf]
        %v3173 = vld [vmem:[#allocation3 + $0x20] sm:$0xf]
        %v3174 = vld [vmem:[#allocation3 + $0x28] sm:$0xf]
        %v3175 = vld [vmem:[#allocation3 + $0x30] sm:$0xf]
        %v3176 = vld [vmem:[#allocation3 + $0x38] sm:$0xf]
        %v3177 = vld [vmem:[#allocation4] sm:$0xf]
        %v3178 = vld [vmem:[#allocation4 + $0x4] sm:$0xf]
        %v3179 = vld [vmem:[#allocation4 + $0x8] sm:$0xf]
        %v3180 = vld [vmem:[#allocation4 + $0xc] sm:$0xf]
        %v3181 = vld [vmem:[#allocation4 + $0x10] sm:$0xf]
        %v3182 = vld [vmem:[#allocation4 + $0x14] sm:$0xf]
        %v3183 = vld [vmem:[#allocation4 + $0x18] sm:$0xf]
        %v3184 = vld [vmem:[#allocation4 + $0x1c] sm:$0xf]
        %v3185 = vld [vmem:[#allocation3 + $0x4] sm:$0x1]
        %v3186 = vld [vmem:[#allocation3 + $0xc] sm:$0x1]
        %v3187 = vld [vmem:[#allocation3 + $0x14] sm:$0x1]
        %v3188 = vld [vmem:[#allocation3 + $0x1c] sm:$0x1]
        %v3189 = vld [vmem:[#allocation3 + $0x24] sm:$0x1]
        %v3190 = vld [vmem:[#allocation3 + $0x2c] sm:$0x1]
        %v3191 = vld [vmem:[#allocation3 + $0x34] sm:$0x1]
        %v3192 = vld [vmem:[#allocation3 + $0x3c] sm:$0x1]
        %v3194 = vshrl.u32 %v3169, 16
        %v3196 = vrot.slane %v3194, 4
        %v3197 = vshll.u32 %v3169, 16
        %v3199 = vrot.slane %v3197, 5
        %v3200 = vor.u32 %v3196, %v3199
        %v3201 = vrot.slane %v3200, 4
        %v3203 = vshll.u32 %v3185, 16
        %v3205 = vrot.slane %v3203, 5
        %v3206 = vsel %vm1181, %v3201, %v3205
        %v3208 = vshrl.u32 %v3170, 16
        %v3210 = vrot.slane %v3208, 4
        %v3211 = vshll.u32 %v3170, 16
        %v3213 = vrot.slane %v3211, 5
        %v3214 = vor.u32 %v3210, %v3213
        %v3215 = vrot.slane %v3214, 4
        %v3217 = vshll.u32 %v3186, 16
        %v3219 = vrot.slane %v3217, 5
        %v3220 = vsel %vm1181, %v3215, %v3219
        %v3222 = vshrl.u32 %v3171, 16
        %v3224 = vrot.slane %v3222, 4
        %v3225 = vshll.u32 %v3171, 16
        %v3227 = vrot.slane %v3225, 5
        %v3228 = vor.u32 %v3224, %v3227
        %v3229 = vrot.slane %v3228, 4
        %v3231 = vshll.u32 %v3187, 16
        %v3233 = vrot.slane %v3231, 5
        %v3234 = vsel %vm1181, %v3229, %v3233
        %v3236 = vshrl.u32 %v3172, 16
        %v3238 = vrot.slane %v3236, 4
        %v3239 = vshll.u32 %v3172, 16
        %v3241 = vrot.slane %v3239, 5
        %v3242 = vor.u32 %v3238, %v3241
        %v3243 = vrot.slane %v3242, 4
        %v3245 = vshll.u32 %v3188, 16
        %v3247 = vrot.slane %v3245, 5
        %v3248 = vsel %vm1181, %v3243, %v3247
        %v3250 = vshrl.u32 %v3173, 16
        %v3252 = vrot.slane %v3250, 4
        %v3253 = vshll.u32 %v3173, 16
        %v3255 = vrot.slane %v3253, 5
        %v3256 = vor.u32 %v3252, %v3255
        %v3257 = vrot.slane %v3256, 4
        %v3259 = vshll.u32 %v3189, 16
        %v3261 = vrot.slane %v3259, 5
        %v3262 = vsel %vm1181, %v3257, %v3261
        %v3264 = vshrl.u32 %v3174, 16
        %v3266 = vrot.slane %v3264, 4
        %v3267 = vshll.u32 %v3174, 16
        %v3269 = vrot.slane %v3267, 5
        %v3270 = vor.u32 %v3266, %v3269
        %v3271 = vrot.slane %v3270, 4
        %v3273 = vshll.u32 %v3190, 16
        %v3275 = vrot.slane %v3273, 5
        %v3276 = vsel %vm1181, %v3271, %v3275
        %v3278 = vshrl.u32 %v3175, 16
        %v3280 = vrot.slane %v3278, 4
        %v3281 = vshll.u32 %v3175, 16
        %v3283 = vrot.slane %v3281, 5
        %v3284 = vor.u32 %v3280, %v3283
        %v3285 = vrot.slane %v3284, 4
        %v3287 = vshll.u32 %v3191, 16
        %v3289 = vrot.slane %v3287, 5
        %v3290 = vsel %vm1181, %v3285, %v3289
        %v3292 = vshrl.u32 %v3176, 16
        %v3294 = vrot.slane %v3292, 4
        %v3295 = vshll.u32 %v3176, 16
        %v3297 = vrot.slane %v3295, 5
        %v3298 = vor.u32 %v3294, %v3297
        %v3299 = vrot.slane %v3298, 4
        %v3301 = vshll.u32 %v3192, 16
        %v3303 = vrot.slane %v3301, 5
        %v3304 = vsel %vm1181, %v3299, %v3303
        %s3305 = scalar_lea.vmem [#allocation4], 32
        %v3306 = vld [vmem:[%s3305] sm:$0xf]
        %v3307 = vld [vmem:[%s3305 + $0x4] sm:$0xf]
        %v3308 = vld [vmem:[%s3305 + $0x8] sm:$0xf]
        %v3309 = vld [vmem:[%s3305 + $0xc] sm:$0xf]
        %v3310 = vld [vmem:[%s3305 + $0x10] sm:$0xf]
        %v3311 = vld [vmem:[%s3305 + $0x14] sm:$0xf]
        %v3312 = vld [vmem:[%s3305 + $0x18] sm:$0xf]
        %v3313 = vld [vmem:[%s3305 + $0x1c] sm:$0xf]
        %v3314 = vunpack.c.l.b16 %v3206
        %v3315 = vunpack.c.l.b16 %v3220
        %v3316 = vunpack.c.l.b16 %v3234
        %v3317 = vunpack.c.l.b16 %v3248
        %v3318 = vunpack.c.l.b16 %v3262
        %v3319 = vunpack.c.l.b16 %v3276
        %v3320 = vunpack.c.l.b16 %v3290
        %v3321 = vunpack.c.l.b16 %v3304
        %v3322 = vpack.c.b16 %v3315, %v3314
        %v3323 = vpack.c.b16 %v3317, %v3316
        %v3324 = vpack.c.b16 %v3319, %v3318
        %v3325 = vpack.c.b16 %v3321, %v3320
        %v3334 = vunpack.c.l.b16 %v3306
        %v3335 = vunpack.c.l.b16 %v3307
        %v3336 = vunpack.c.l.b16 %v3308
        %v3337 = vunpack.c.l.b16 %v3309
        %v3338 = vunpack.c.l.b16 %v3310
        %v3339 = vunpack.c.l.b16 %v3311
        %v3340 = vunpack.c.l.b16 %v3312
        %v3341 = vunpack.c.l.b16 %v3313
        %v3342 = vpack.c.b16 %v3335, %v3334
        %v3343 = vpack.c.b16 %v3337, %v3336
        %v3344 = vpack.c.b16 %v3339, %v3338
        %v3345 = vpack.c.b16 %v3341, %v3340
        %v3351 = vsel %vm2574, %v3322, 0
        %v3354 = vsel %vm2574, %v3323, 0
        %v3357 = vsel %vm2574, %v3324, 0
        %v3360 = vsel %vm2574, %v3325, 0
        %3362 = vmatpush.bf16.msra.mxu0 0
        %3363 = vmatpush.bf16.msra.mxu0 0
        %3364 = vmatpush.bf16.msra.mxu0 0
        %3365 = vmatpush.bf16.msra.mxu0 0
        %3366 = vmatpush.bf16.msra.mxu0 %v3345
        %3367 = vmatpush.bf16.msra.mxu0 %v3344
        %3368 = vmatpush.bf16.msra.mxu0 %v3343
        %3369 = vmatpush.bf16.msra.mxu0 %v3342
        %3370 = vmatmul.bf16.gmra.mxu0 %v3351
        %v3371 = vpop.f32.mrf.mxu0
        %v3372 = vadd.f32 0.0, %v3371
        %v3373 = vpop.f32.mrf.mxu0
        %v3374 = vadd.f32 0.0, %v3373
        %3375 = vmatmul.bf16.gmra.mxu0 %v3354
        %v3376 = vpop.f32.mrf.mxu0
        %v3377 = vadd.f32 0.0, %v3376
        %v3378 = vpop.f32.mrf.mxu0
        %v3379 = vadd.f32 0.0, %v3378
        %3380 = vmatmul.bf16.gmra.mxu0 %v3357
        %v3381 = vpop.f32.mrf.mxu0
        %v3382 = vadd.f32 0.0, %v3381
        %v3383 = vpop.f32.mrf.mxu0
        %v3384 = vadd.f32 0.0, %v3383
        %3385 = vmatmul.bf16.gmra.mxu0 %v3360
        %v3386 = vpop.f32.mrf.mxu0
        %v3387 = vadd.f32 0.0, %v3386
        %v3388 = vpop.f32.mrf.mxu0
        %v3389 = vadd.f32 0.0, %v3388
        %3390 = vdwg.mxu0
        %v3399 = vunpack.c.l.b16 %v3169
        %v3400 = vunpack.c.l.b16 %v3170
        %v3401 = vunpack.c.l.b16 %v3171
        %v3402 = vunpack.c.l.b16 %v3172
        %v3403 = vunpack.c.l.b16 %v3173
        %v3404 = vunpack.c.l.b16 %v3174
        %v3405 = vunpack.c.l.b16 %v3175
        %v3406 = vunpack.c.l.b16 %v3176
        %v3407 = vpack.c.b16 %v3400, %v3399
        %v3408 = vpack.c.b16 %v3402, %v3401
        %v3409 = vpack.c.b16 %v3404, %v3403
        %v3410 = vpack.c.b16 %v3406, %v3405
        %v3419 = vunpack.c.l.b16 %v3177
        %v3420 = vunpack.c.l.b16 %v3178
        %v3421 = vunpack.c.l.b16 %v3179
        %v3422 = vunpack.c.l.b16 %v3180
        %v3423 = vunpack.c.l.b16 %v3181
        %v3424 = vunpack.c.l.b16 %v3182
        %v3425 = vunpack.c.l.b16 %v3183
        %v3426 = vunpack.c.l.b16 %v3184
        %v3427 = vpack.c.b16 %v3420, %v3419
        %v3428 = vpack.c.b16 %v3422, %v3421
        %v3429 = vpack.c.b16 %v3424, %v3423
        %v3430 = vpack.c.b16 %v3426, %v3425
        %v3436 = vsel %vm2574, %v3407, 0
        %v3439 = vsel %vm2574, %v3408, 0
        %v3442 = vsel %vm2574, %v3409, 0
        %v3445 = vsel %vm2574, %v3410, 0
        %3447 = vmatpush.bf16.msra.mxu0 0
        %3448 = vmatpush.bf16.msra.mxu0 0
        %3449 = vmatpush.bf16.msra.mxu0 0
        %3450 = vmatpush.bf16.msra.mxu0 0
        %3451 = vmatpush.bf16.msra.mxu0 %v3430
        %3452 = vmatpush.bf16.msra.mxu0 %v3429
        %3453 = vmatpush.bf16.msra.mxu0 %v3428
        %3454 = vmatpush.bf16.msra.mxu0 %v3427
        %3455 = vmatmul.bf16.gmra.mxu0 %v3436
        %v3456 = vpop.f32.mrf.mxu0
        %v3457 = vadd.f32 %v3372, %v3456
        %v3458 = vpop.f32.mrf.mxu0
        %v3459 = vadd.f32 %v3374, %v3458
        %3460 = vmatmul.bf16.gmra.mxu0 %v3439
        %v3461 = vpop.f32.mrf.mxu0
        %v3462 = vadd.f32 %v3377, %v3461
        %v3463 = vpop.f32.mrf.mxu0
        %v3464 = vadd.f32 %v3379, %v3463
        %3465 = vmatmul.bf16.gmra.mxu0 %v3442
        %v3466 = vpop.f32.mrf.mxu0
        %v3467 = vadd.f32 %v3382, %v3466
        %v3468 = vpop.f32.mrf.mxu0
        %v3469 = vadd.f32 %v3384, %v3468
        %3470 = vmatmul.bf16.gmra.mxu0 %v3445
        %v3471 = vpop.f32.mrf.mxu0
        %v3472 = vadd.f32 %v3387, %v3471
        %v3473 = vpop.f32.mrf.mxu0
        %v3474 = vadd.f32 %v3389, %v3473
        %3475 = vdwg.mxu0
        %v3476 = vld [vmem:[#allocation3] sm:$0xe]
        %v3477 = vld [vmem:[#allocation3 + $0x8] sm:$0xe]
        %v3478 = vld [vmem:[#allocation3 + $0x10] sm:$0xe]
        %v3479 = vld [vmem:[#allocation3 + $0x18] sm:$0xe]
        %v3480 = vld [vmem:[#allocation3 + $0x20] sm:$0xe]
        %v3481 = vld [vmem:[#allocation3 + $0x28] sm:$0xe]
        %v3482 = vld [vmem:[#allocation3 + $0x30] sm:$0xe]
        %v3483 = vld [vmem:[#allocation3 + $0x38] sm:$0xe]
        %v3500 = vrot.slane %v3476, 5
        %v3501 = vrot.slane %v3500, 4
        %v3502 = vrot.slane %v3185, 5
        %v3503 = vsel %vm1463, %v3501, %v3502
        %v3504 = vrot.slane %v3477, 5
        %v3505 = vrot.slane %v3504, 4
        %v3506 = vrot.slane %v3186, 5
        %v3507 = vsel %vm1463, %v3505, %v3506
        %v3508 = vrot.slane %v3478, 5
        %v3509 = vrot.slane %v3508, 4
        %v3510 = vrot.slane %v3187, 5
        %v3511 = vsel %vm1463, %v3509, %v3510
        %v3512 = vrot.slane %v3479, 5
        %v3513 = vrot.slane %v3512, 4
        %v3514 = vrot.slane %v3188, 5
        %v3515 = vsel %vm1463, %v3513, %v3514
        %v3516 = vrot.slane %v3480, 5
        %v3517 = vrot.slane %v3516, 4
        %v3518 = vrot.slane %v3189, 5
        %v3519 = vsel %vm1463, %v3517, %v3518
        %v3520 = vrot.slane %v3481, 5
        %v3521 = vrot.slane %v3520, 4
        %v3522 = vrot.slane %v3190, 5
        %v3523 = vsel %vm1463, %v3521, %v3522
        %v3524 = vrot.slane %v3482, 5
        %v3525 = vrot.slane %v3524, 4
        %v3526 = vrot.slane %v3191, 5
        %v3527 = vsel %vm1463, %v3525, %v3526
        %v3528 = vrot.slane %v3483, 5
        %v3529 = vrot.slane %v3528, 4
        %v3530 = vrot.slane %v3192, 5
        %v3531 = vsel %vm1463, %v3529, %v3530
        %s3532 = scalar_lea.vmem [#allocation4], 64
        %v3533 = vld [vmem:[%s3532] sm:$0xf]
        %v3534 = vld [vmem:[%s3532 + $0x4] sm:$0xf]
        %v3535 = vld [vmem:[%s3532 + $0x8] sm:$0xf]
        %v3536 = vld [vmem:[%s3532 + $0xc] sm:$0xf]
        %v3537 = vld [vmem:[%s3532 + $0x10] sm:$0xf]
        %v3538 = vld [vmem:[%s3532 + $0x14] sm:$0xf]
        %v3539 = vld [vmem:[%s3532 + $0x18] sm:$0xf]
        %v3540 = vld [vmem:[%s3532 + $0x1c] sm:$0xf]
        %v3541 = vunpack.c.l.b16 %v3503
        %v3542 = vunpack.c.l.b16 %v3507
        %v3543 = vunpack.c.l.b16 %v3511
        %v3544 = vunpack.c.l.b16 %v3515
        %v3545 = vunpack.c.l.b16 %v3519
        %v3546 = vunpack.c.l.b16 %v3523
        %v3547 = vunpack.c.l.b16 %v3527
        %v3548 = vunpack.c.l.b16 %v3531
        %v3549 = vpack.c.b16 %v3542, %v3541
        %v3550 = vpack.c.b16 %v3544, %v3543
        %v3551 = vpack.c.b16 %v3546, %v3545
        %v3552 = vpack.c.b16 %v3548, %v3547
        %v3561 = vunpack.c.l.b16 %v3533
        %v3562 = vunpack.c.l.b16 %v3534
        %v3563 = vunpack.c.l.b16 %v3535
        %v3564 = vunpack.c.l.b16 %v3536
        %v3565 = vunpack.c.l.b16 %v3537
        %v3566 = vunpack.c.l.b16 %v3538
        %v3567 = vunpack.c.l.b16 %v3539
        %v3568 = vunpack.c.l.b16 %v3540
        %v3569 = vpack.c.b16 %v3562, %v3561
        %v3570 = vpack.c.b16 %v3564, %v3563
        %v3571 = vpack.c.b16 %v3566, %v3565
        %v3572 = vpack.c.b16 %v3568, %v3567
        %v3578 = vsel %vm2574, %v3549, 0
        %v3581 = vsel %vm2574, %v3550, 0
        %v3584 = vsel %vm2574, %v3551, 0
        %v3587 = vsel %vm2574, %v3552, 0
        %3589 = vmatpush.bf16.msra.mxu0 0
        %3590 = vmatpush.bf16.msra.mxu0 0
        %3591 = vmatpush.bf16.msra.mxu0 0
        %3592 = vmatpush.bf16.msra.mxu0 0
        %3593 = vmatpush.bf16.msra.mxu0 %v3572
        %3594 = vmatpush.bf16.msra.mxu0 %v3571
        %3595 = vmatpush.bf16.msra.mxu0 %v3570
        %3596 = vmatpush.bf16.msra.mxu0 %v3569
        %3597 = vmatmul.bf16.gmra.mxu0 %v3578
        %v3598 = vpop.f32.mrf.mxu0
        %v3599 = vadd.f32 0.0, %v3598
        %v3600 = vpop.f32.mrf.mxu0
        %v3601 = vadd.f32 0.0, %v3600
        %3602 = vmatmul.bf16.gmra.mxu0 %v3581
        %v3603 = vpop.f32.mrf.mxu0
        %v3604 = vadd.f32 0.0, %v3603
        %v3605 = vpop.f32.mrf.mxu0
        %v3606 = vadd.f32 0.0, %v3605
        %3607 = vmatmul.bf16.gmra.mxu0 %v3584
        %v3608 = vpop.f32.mrf.mxu0
        %v3609 = vadd.f32 0.0, %v3608
        %v3610 = vpop.f32.mrf.mxu0
        %v3611 = vadd.f32 0.0, %v3610
        %3612 = vmatmul.bf16.gmra.mxu0 %v3587
        %v3613 = vpop.f32.mrf.mxu0
        %v3614 = vadd.f32 0.0, %v3613
        %v3615 = vpop.f32.mrf.mxu0
        %v3616 = vadd.f32 0.0, %v3615
        %3617 = vdwg.mxu0
        %v3618 = vadd.f32 %v3457, %v3599
        %v3619 = vadd.f32 %v3459, %v3601
        %v3620 = vadd.f32 %v3462, %v3604
        %v3621 = vadd.f32 %v3464, %v3606
        %v3622 = vadd.f32 %v3467, %v3609
        %v3623 = vadd.f32 %v3469, %v3611
        %v3624 = vadd.f32 %v3472, %v3614
        %v3625 = vadd.f32 %v3474, %v3616
        %v3626 = vld [vmem:[%s3118] sm:$0xf]
        %v3627 = vld [vmem:[%s3118 + $0x8] sm:$0xf]
        %v3628 = vld [vmem:[%s3118 + $0x10] sm:$0xf]
        %v3629 = vld [vmem:[%s3118 + $0x18] sm:$0xf]
        %v3630 = vld [vmem:[%s3118 + $0x20] sm:$0xf]
        %v3631 = vld [vmem:[%s3118 + $0x28] sm:$0xf]
        %v3632 = vld [vmem:[%s3118 + $0x30] sm:$0xf]
        %v3633 = vld [vmem:[%s3118 + $0x38] sm:$0xf]
        %s3634 = scalar_lea.vmem [#allocation4], 96
        %v3635 = vld [vmem:[%s3634] sm:$0xf]
        %v3636 = vld [vmem:[%s3634 + $0x4] sm:$0xf]
        %v3637 = vld [vmem:[%s3634 + $0x8] sm:$0xf]
        %v3638 = vld [vmem:[%s3634 + $0xc] sm:$0xf]
        %v3639 = vld [vmem:[%s3634 + $0x10] sm:$0xf]
        %v3640 = vld [vmem:[%s3634 + $0x14] sm:$0xf]
        %v3641 = vld [vmem:[%s3634 + $0x18] sm:$0xf]
        %v3642 = vld [vmem:[%s3634 + $0x1c] sm:$0xf]
        %v3651 = vunpack.c.l.b16 %v3626
        %v3652 = vunpack.c.l.b16 %v3627
        %v3653 = vunpack.c.l.b16 %v3628
        %v3654 = vunpack.c.l.b16 %v3629
        %v3655 = vunpack.c.l.b16 %v3630
        %v3656 = vunpack.c.l.b16 %v3631
        %v3657 = vunpack.c.l.b16 %v3632
        %v3658 = vunpack.c.l.b16 %v3633
        %v3659 = vpack.c.b16 %v3652, %v3651
        %v3660 = vpack.c.b16 %v3654, %v3653
        %v3661 = vpack.c.b16 %v3656, %v3655
        %v3662 = vpack.c.b16 %v3658, %v3657
        %v3671 = vunpack.c.l.b16 %v3635
        %v3672 = vunpack.c.l.b16 %v3636
        %v3673 = vunpack.c.l.b16 %v3637
        %v3674 = vunpack.c.l.b16 %v3638
        %v3675 = vunpack.c.l.b16 %v3639
        %v3676 = vunpack.c.l.b16 %v3640
        %v3677 = vunpack.c.l.b16 %v3641
        %v3678 = vunpack.c.l.b16 %v3642
        %v3679 = vpack.c.b16 %v3672, %v3671
        %v3680 = vpack.c.b16 %v3674, %v3673
        %v3681 = vpack.c.b16 %v3676, %v3675
        %v3682 = vpack.c.b16 %v3678, %v3677
        %v3688 = vsel %vm2574, %v3659, 0
        %v3691 = vsel %vm2574, %v3660, 0
        %v3694 = vsel %vm2574, %v3661, 0
        %v3697 = vsel %vm2574, %v3662, 0
        %3699 = vmatpush.bf16.msra.mxu0 0
        %3700 = vmatpush.bf16.msra.mxu0 0
        %3701 = vmatpush.bf16.msra.mxu0 0
        %3702 = vmatpush.bf16.msra.mxu0 0
        %3703 = vmatpush.bf16.msra.mxu0 %v3682
        %3704 = vmatpush.bf16.msra.mxu0 %v3681
        %3705 = vmatpush.bf16.msra.mxu0 %v3680
        %3706 = vmatpush.bf16.msra.mxu0 %v3679
        %3707 = vmatmul.bf16.gmra.mxu0 %v3688
        %v3708 = vpop.f32.mrf.mxu0
        %v3709 = vadd.f32 0.0, %v3708
        %v3710 = vpop.f32.mrf.mxu0
        %v3711 = vadd.f32 0.0, %v3710
        %3712 = vmatmul.bf16.gmra.mxu0 %v3691
        %v3713 = vpop.f32.mrf.mxu0
        %v3714 = vadd.f32 0.0, %v3713
        %v3715 = vpop.f32.mrf.mxu0
        %v3716 = vadd.f32 0.0, %v3715
        %3717 = vmatmul.bf16.gmra.mxu0 %v3694
        %v3718 = vpop.f32.mrf.mxu0
        %v3719 = vadd.f32 0.0, %v3718
        %v3720 = vpop.f32.mrf.mxu0
        %v3721 = vadd.f32 0.0, %v3720
        %3722 = vmatmul.bf16.gmra.mxu0 %v3697
        %v3723 = vpop.f32.mrf.mxu0
        %v3724 = vadd.f32 0.0, %v3723
        %v3725 = vpop.f32.mrf.mxu0
        %v3726 = vadd.f32 0.0, %v3725
        %3727 = vdwg.mxu0
        %v3728 = vadd.f32 %v3618, %v3709
        %v3729 = vadd.f32 %v3619, %v3711
        %v3730 = vadd.f32 %v3620, %v3714
        %v3731 = vadd.f32 %v3621, %v3716
        %v3732 = vadd.f32 %v3622, %v3719
        %v3733 = vadd.f32 %v3623, %v3721
        %v3734 = vadd.f32 %v3624, %v3724
        %v3735 = vadd.f32 %v3625, %v3726
        %v3736 = vld [vmem:[%s3118] sm:$0xf]
        %v3737 = vld [vmem:[%s3118 + $0x4] sm:$0x1]
        %v3738 = vld [vmem:[%s3118 + $0x8] sm:$0xf]
        %v3739 = vld [vmem:[%s3118 + $0xc] sm:$0x1]
        %v3740 = vld [vmem:[%s3118 + $0x10] sm:$0xf]
        %v3741 = vld [vmem:[%s3118 + $0x14] sm:$0x1]
        %v3742 = vld [vmem:[%s3118 + $0x18] sm:$0xf]
        %v3743 = vld [vmem:[%s3118 + $0x1c] sm:$0x1]
        %v3744 = vld [vmem:[%s3118 + $0x20] sm:$0xf]
        %v3745 = vld [vmem:[%s3118 + $0x24] sm:$0x1]
        %v3746 = vld [vmem:[%s3118 + $0x28] sm:$0xf]
        %v3747 = vld [vmem:[%s3118 + $0x2c] sm:$0x1]
        %v3748 = vld [vmem:[%s3118 + $0x30] sm:$0xf]
        %v3749 = vld [vmem:[%s3118 + $0x34] sm:$0x1]
        %v3750 = vld [vmem:[%s3118 + $0x38] sm:$0xf]
        %v3751 = vld [vmem:[%s3118 + $0x3c] sm:$0x1]
        %v3753 = vshrl.u32 %v3736, 16
        %v3755 = vrot.slane %v3753, 4
        %v3756 = vshll.u32 %v3736, 16
        %v3758 = vrot.slane %v3756, 5
        %v3759 = vor.u32 %v3755, %v3758
        %v3760 = vrot.slane %v3759, 4
        %v3762 = vshll.u32 %v3737, 16
        %v3764 = vrot.slane %v3762, 5
        %v3765 = vsel %vm1181, %v3760, %v3764
        %v3767 = vshrl.u32 %v3738, 16
        %v3769 = vrot.slane %v3767, 4
        %v3770 = vshll.u32 %v3738, 16
        %v3772 = vrot.slane %v3770, 5
        %v3773 = vor.u32 %v3769, %v3772
        %v3774 = vrot.slane %v3773, 4
        %v3776 = vshll.u32 %v3739, 16
        %v3778 = vrot.slane %v3776, 5
        %v3779 = vsel %vm1181, %v3774, %v3778
        %v3781 = vshrl.u32 %v3740, 16
        %v3783 = vrot.slane %v3781, 4
        %v3784 = vshll.u32 %v3740, 16
        %v3786 = vrot.slane %v3784, 5
        %v3787 = vor.u32 %v3783, %v3786
        %v3788 = vrot.slane %v3787, 4
        %v3790 = vshll.u32 %v3741, 16
        %v3792 = vrot.slane %v3790, 5
        %v3793 = vsel %vm1181, %v3788, %v3792
        %v3795 = vshrl.u32 %v3742, 16
        %v3797 = vrot.slane %v3795, 4
        %v3798 = vshll.u32 %v3742, 16
        %v3800 = vrot.slane %v3798, 5
        %v3801 = vor.u32 %v3797, %v3800
        %v3802 = vrot.slane %v3801, 4
        %v3804 = vshll.u32 %v3743, 16
        %v3806 = vrot.slane %v3804, 5
        %v3807 = vsel %vm1181, %v3802, %v3806
        %v3809 = vshrl.u32 %v3744, 16
        %v3811 = vrot.slane %v3809, 4
        %v3812 = vshll.u32 %v3744, 16
        %v3814 = vrot.slane %v3812, 5
        %v3815 = vor.u32 %v3811, %v3814
        %v3816 = vrot.slane %v3815, 4
        %v3818 = vshll.u32 %v3745, 16
        %v3820 = vrot.slane %v3818, 5
        %v3821 = vsel %vm1181, %v3816, %v3820
        %v3823 = vshrl.u32 %v3746, 16
        %v3825 = vrot.slane %v3823, 4
        %v3826 = vshll.u32 %v3746, 16
        %v3828 = vrot.slane %v3826, 5
        %v3829 = vor.u32 %v3825, %v3828
        %v3830 = vrot.slane %v3829, 4
        %v3832 = vshll.u32 %v3747, 16
        %v3834 = vrot.slane %v3832, 5
        %v3835 = vsel %vm1181, %v3830, %v3834
        %v3837 = vshrl.u32 %v3748, 16
        %v3839 = vrot.slane %v3837, 4
        %v3840 = vshll.u32 %v3748, 16
        %v3842 = vrot.slane %v3840, 5
        %v3843 = vor.u32 %v3839, %v3842
        %v3844 = vrot.slane %v3843, 4
        %v3846 = vshll.u32 %v3749, 16
        %v3848 = vrot.slane %v3846, 5
        %v3849 = vsel %vm1181, %v3844, %v3848
        %v3851 = vshrl.u32 %v3750, 16
        %v3853 = vrot.slane %v3851, 4
        %v3854 = vshll.u32 %v3750, 16
        %v3856 = vrot.slane %v3854, 5
        %v3857 = vor.u32 %v3853, %v3856
        %v3858 = vrot.slane %v3857, 4
        %v3860 = vshll.u32 %v3751, 16
        %v3862 = vrot.slane %v3860, 5
        %v3863 = vsel %vm1181, %v3858, %v3862
        %s3864 = scalar_lea.vmem [#allocation4], 128
        %v3865 = vld [vmem:[%s3864] sm:$0xf]
        %v3866 = vld [vmem:[%s3864 + $0x4] sm:$0xf]
        %v3867 = vld [vmem:[%s3864 + $0x8] sm:$0xf]
        %v3868 = vld [vmem:[%s3864 + $0xc] sm:$0xf]
        %v3869 = vld [vmem:[%s3864 + $0x10] sm:$0xf]
        %v3870 = vld [vmem:[%s3864 + $0x14] sm:$0xf]
        %v3871 = vld [vmem:[%s3864 + $0x18] sm:$0xf]
        %v3872 = vld [vmem:[%s3864 + $0x1c] sm:$0xf]
        %v3873 = vunpack.c.l.b16 %v3765
        %v3874 = vunpack.c.l.b16 %v3779
        %v3875 = vunpack.c.l.b16 %v3793
        %v3876 = vunpack.c.l.b16 %v3807
        %v3877 = vunpack.c.l.b16 %v3821
        %v3878 = vunpack.c.l.b16 %v3835
        %v3879 = vunpack.c.l.b16 %v3849
        %v3880 = vunpack.c.l.b16 %v3863
        %v3881 = vpack.c.b16 %v3874, %v3873
        %v3882 = vpack.c.b16 %v3876, %v3875
        %v3883 = vpack.c.b16 %v3878, %v3877
        %v3884 = vpack.c.b16 %v3880, %v3879
        %v3893 = vunpack.c.l.b16 %v3865
        %v3894 = vunpack.c.l.b16 %v3866
        %v3895 = vunpack.c.l.b16 %v3867
        %v3896 = vunpack.c.l.b16 %v3868
        %v3897 = vunpack.c.l.b16 %v3869
        %v3898 = vunpack.c.l.b16 %v3870
        %v3899 = vunpack.c.l.b16 %v3871
        %v3900 = vunpack.c.l.b16 %v3872
        %v3901 = vpack.c.b16 %v3894, %v3893
        %v3902 = vpack.c.b16 %v3896, %v3895
        %v3903 = vpack.c.b16 %v3898, %v3897
        %v3904 = vpack.c.b16 %v3900, %v3899
        %v3910 = vsel %vm2574, %v3881, 0
        %v3913 = vsel %vm2574, %v3882, 0
        %v3916 = vsel %vm2574, %v3883, 0
        %v3919 = vsel %vm2574, %v3884, 0
        %3921 = vmatpush.bf16.msra.mxu0 0
        %3922 = vmatpush.bf16.msra.mxu0 0
        %3923 = vmatpush.bf16.msra.mxu0 0
        %3924 = vmatpush.bf16.msra.mxu0 0
        %3925 = vmatpush.bf16.msra.mxu0 %v3904
        %3926 = vmatpush.bf16.msra.mxu0 %v3903
        %3927 = vmatpush.bf16.msra.mxu0 %v3902
        %3928 = vmatpush.bf16.msra.mxu0 %v3901
        %3929 = vmatmul.bf16.gmra.mxu0 %v3910
        %v3930 = vpop.f32.mrf.mxu0
        %v3931 = vadd.f32 0.0, %v3930
        %v3932 = vpop.f32.mrf.mxu0
        %v3933 = vadd.f32 0.0, %v3932
        %3934 = vmatmul.bf16.gmra.mxu0 %v3913
        %v3935 = vpop.f32.mrf.mxu0
        %v3936 = vadd.f32 0.0, %v3935
        %v3937 = vpop.f32.mrf.mxu0
        %v3938 = vadd.f32 0.0, %v3937
        %3939 = vmatmul.bf16.gmra.mxu0 %v3916
        %v3940 = vpop.f32.mrf.mxu0
        %v3941 = vadd.f32 0.0, %v3940
        %v3942 = vpop.f32.mrf.mxu0
        %v3943 = vadd.f32 0.0, %v3942
        %3944 = vmatmul.bf16.gmra.mxu0 %v3919
        %v3945 = vpop.f32.mrf.mxu0
        %v3946 = vadd.f32 0.0, %v3945
        %v3947 = vpop.f32.mrf.mxu0
        %v3948 = vadd.f32 0.0, %v3947
        %3949 = vdwg.mxu0
        %v3950 = vadd.f32 %v3728, %v3931
        %v3951 = vadd.f32 %v3729, %v3933
        %v3952 = vadd.f32 %v3730, %v3936
        %v3953 = vadd.f32 %v3731, %v3938
        %v3954 = vadd.f32 %v3732, %v3941
        %v3955 = vadd.f32 %v3733, %v3943
        %v3956 = vadd.f32 %v3734, %v3946
        %v3957 = vadd.f32 %v3735, %v3948
        %v3958 = vld [vmem:[%s3118] sm:$0xe]
        %v3959 = vld [vmem:[%s3118 + $0x8] sm:$0xe]
        %v3960 = vld [vmem:[%s3118 + $0x10] sm:$0xe]
        %v3961 = vld [vmem:[%s3118 + $0x18] sm:$0xe]
        %v3962 = vld [vmem:[%s3118 + $0x20] sm:$0xe]
        %v3963 = vld [vmem:[%s3118 + $0x28] sm:$0xe]
        %v3964 = vld [vmem:[%s3118 + $0x30] sm:$0xe]
        %v3965 = vld [vmem:[%s3118 + $0x38] sm:$0xe]
        %v3982 = vrot.slane %v3958, 5
        %v3983 = vrot.slane %v3982, 4
        %v3984 = vrot.slane %v3737, 5
        %v3985 = vsel %vm1463, %v3983, %v3984
        %v3986 = vrot.slane %v3959, 5
        %v3987 = vrot.slane %v3986, 4
        %v3988 = vrot.slane %v3739, 5
        %v3989 = vsel %vm1463, %v3987, %v3988
        %v3990 = vrot.slane %v3960, 5
        %v3991 = vrot.slane %v3990, 4
        %v3992 = vrot.slane %v3741, 5
        %v3993 = vsel %vm1463, %v3991, %v3992
        %v3994 = vrot.slane %v3961, 5
        %v3995 = vrot.slane %v3994, 4
        %v3996 = vrot.slane %v3743, 5
        %v3997 = vsel %vm1463, %v3995, %v3996
        %v3998 = vrot.slane %v3962, 5
        %v3999 = vrot.slane %v3998, 4
        %v4000 = vrot.slane %v3745, 5
        %v4001 = vsel %vm1463, %v3999, %v4000
        %v4002 = vrot.slane %v3963, 5
        %v4003 = vrot.slane %v4002, 4
        %v4004 = vrot.slane %v3747, 5
        %v4005 = vsel %vm1463, %v4003, %v4004
        %v4006 = vrot.slane %v3964, 5
        %v4007 = vrot.slane %v4006, 4
        %v4008 = vrot.slane %v3749, 5
        %v4009 = vsel %vm1463, %v4007, %v4008
        %v4010 = vrot.slane %v3965, 5
        %v4011 = vrot.slane %v4010, 4
        %v4012 = vrot.slane %v3751, 5
        %v4013 = vsel %vm1463, %v4011, %v4012
        %s4014 = scalar_lea.vmem [#allocation4], 160
        %v4015 = vld [vmem:[%s4014] sm:$0xf]
        %v4016 = vld [vmem:[%s4014 + $0x4] sm:$0xf]
        %v4017 = vld [vmem:[%s4014 + $0x8] sm:$0xf]
        %v4018 = vld [vmem:[%s4014 + $0xc] sm:$0xf]
        %v4019 = vld [vmem:[%s4014 + $0x10] sm:$0xf]
        %v4020 = vld [vmem:[%s4014 + $0x14] sm:$0xf]
        %v4021 = vld [vmem:[%s4014 + $0x18] sm:$0xf]
        %v4022 = vld [vmem:[%s4014 + $0x1c] sm:$0xf]
        %v4023 = vunpack.c.l.b16 %v3985
        %v4024 = vunpack.c.l.b16 %v3989
        %v4025 = vunpack.c.l.b16 %v3993
        %v4026 = vunpack.c.l.b16 %v3997
        %v4027 = vunpack.c.l.b16 %v4001
        %v4028 = vunpack.c.l.b16 %v4005
        %v4029 = vunpack.c.l.b16 %v4009
        %v4030 = vunpack.c.l.b16 %v4013
        %v4031 = vpack.c.b16 %v4024, %v4023
        %v4032 = vpack.c.b16 %v4026, %v4025
        %v4033 = vpack.c.b16 %v4028, %v4027
        %v4034 = vpack.c.b16 %v4030, %v4029
        %v4043 = vunpack.c.l.b16 %v4015
        %v4044 = vunpack.c.l.b16 %v4016
        %v4045 = vunpack.c.l.b16 %v4017
        %v4046 = vunpack.c.l.b16 %v4018
        %v4047 = vunpack.c.l.b16 %v4019
        %v4048 = vunpack.c.l.b16 %v4020
        %v4049 = vunpack.c.l.b16 %v4021
        %v4050 = vunpack.c.l.b16 %v4022
        %v4051 = vpack.c.b16 %v4044, %v4043
        %v4052 = vpack.c.b16 %v4046, %v4045
        %v4053 = vpack.c.b16 %v4048, %v4047
        %v4054 = vpack.c.b16 %v4050, %v4049
        %v4060 = vsel %vm2574, %v4031, 0
        %v4063 = vsel %vm2574, %v4032, 0
        %v4066 = vsel %vm2574, %v4033, 0
        %v4069 = vsel %vm2574, %v4034, 0
        %4071 = vmatpush.bf16.msra.mxu0 0
        %4072 = vmatpush.bf16.msra.mxu0 0
        %4073 = vmatpush.bf16.msra.mxu0 0
        %4074 = vmatpush.bf16.msra.mxu0 0
        %4075 = vmatpush.bf16.msra.mxu0 %v4054
        %4076 = vmatpush.bf16.msra.mxu0 %v4053
        %4077 = vmatpush.bf16.msra.mxu0 %v4052
        %4078 = vmatpush.bf16.msra.mxu0 %v4051
        %4079 = vmatmul.bf16.gmra.mxu0 %v4060
        %v4080 = vpop.f32.mrf.mxu0
        %v4081 = vadd.f32 0.0, %v4080
        %v4082 = vpop.f32.mrf.mxu0
        %v4083 = vadd.f32 0.0, %v4082
        %4084 = vmatmul.bf16.gmra.mxu0 %v4063
        %v4085 = vpop.f32.mrf.mxu0
        %v4086 = vadd.f32 0.0, %v4085
        %v4087 = vpop.f32.mrf.mxu0
        %v4088 = vadd.f32 0.0, %v4087
        %4089 = vmatmul.bf16.gmra.mxu0 %v4066
        %v4090 = vpop.f32.mrf.mxu0
        %v4091 = vadd.f32 0.0, %v4090
        %v4092 = vpop.f32.mrf.mxu0
        %v4093 = vadd.f32 0.0, %v4092
        %4094 = vmatmul.bf16.gmra.mxu0 %v4069
        %v4095 = vpop.f32.mrf.mxu0
        %v4096 = vadd.f32 0.0, %v4095
        %v4097 = vpop.f32.mrf.mxu0
        %v4098 = vadd.f32 0.0, %v4097
        %4099 = vdwg.mxu0
        %v4100 = vadd.f32 %v3950, %v4081
        %v4101 = vadd.f32 %v3951, %v4083
        %v4102 = vadd.f32 %v3952, %v4086
        %v4103 = vadd.f32 %v3953, %v4088
        %v4104 = vadd.f32 %v3954, %v4091
        %v4105 = vadd.f32 %v3955, %v4093
        %v4106 = vadd.f32 %v3956, %v4096
        %v4107 = vadd.f32 %v3957, %v4098
        %s4108 = scalar_lea.vmem [#allocation3], 16
        %v4109 = vld [vmem:[%s4108] sm:$0xf]
        %v4110 = vld [vmem:[%s4108 + $0x8] sm:$0xf]
        %v4111 = vld [vmem:[%s4108 + $0x10] sm:$0xf]
        %v4112 = vld [vmem:[%s4108 + $0x18] sm:$0xf]
        %v4113 = vld [vmem:[%s4108 + $0x20] sm:$0xf]
        %v4114 = vld [vmem:[%s4108 + $0x28] sm:$0xf]
        %v4115 = vld [vmem:[%s4108 + $0x30] sm:$0xf]
        %v4116 = vld [vmem:[%s4108 + $0x38] sm:$0xf]
        %s4117 = scalar_lea.vmem [#allocation4], 192
        %v4118 = vld [vmem:[%s4117] sm:$0xf]
        %v4119 = vld [vmem:[%s4117 + $0x4] sm:$0xf]
        %v4120 = vld [vmem:[%s4117 + $0x8] sm:$0xf]
        %v4121 = vld [vmem:[%s4117 + $0xc] sm:$0xf]
        %v4122 = vld [vmem:[%s4117 + $0x10] sm:$0xf]
        %v4123 = vld [vmem:[%s4117 + $0x14] sm:$0xf]
        %v4124 = vld [vmem:[%s4117 + $0x18] sm:$0xf]
        %v4125 = vld [vmem:[%s4117 + $0x1c] sm:$0xf]
        %v4134 = vunpack.c.l.b16 %v4109
        %v4135 = vunpack.c.l.b16 %v4110
        %v4136 = vunpack.c.l.b16 %v4111
        %v4137 = vunpack.c.l.b16 %v4112
        %v4138 = vunpack.c.l.b16 %v4113
        %v4139 = vunpack.c.l.b16 %v4114
        %v4140 = vunpack.c.l.b16 %v4115
        %v4141 = vunpack.c.l.b16 %v4116
        %v4142 = vpack.c.b16 %v4135, %v4134
        %v4143 = vpack.c.b16 %v4137, %v4136
        %v4144 = vpack.c.b16 %v4139, %v4138
        %v4145 = vpack.c.b16 %v4141, %v4140
        %v4154 = vunpack.c.l.b16 %v4118
        %v4155 = vunpack.c.l.b16 %v4119
        %v4156 = vunpack.c.l.b16 %v4120
        %v4157 = vunpack.c.l.b16 %v4121
        %v4158 = vunpack.c.l.b16 %v4122
        %v4159 = vunpack.c.l.b16 %v4123
        %v4160 = vunpack.c.l.b16 %v4124
        %v4161 = vunpack.c.l.b16 %v4125
        %v4162 = vpack.c.b16 %v4155, %v4154
        %v4163 = vpack.c.b16 %v4157, %v4156
        %v4164 = vpack.c.b16 %v4159, %v4158
        %v4165 = vpack.c.b16 %v4161, %v4160
        %v4171 = vsel %vm2574, %v4142, 0
        %v4174 = vsel %vm2574, %v4143, 0
        %v4177 = vsel %vm2574, %v4144, 0
        %v4180 = vsel %vm2574, %v4145, 0
        %4182 = vmatpush.bf16.msra.mxu0 0
        %4183 = vmatpush.bf16.msra.mxu0 0
        %4184 = vmatpush.bf16.msra.mxu0 0
        %4185 = vmatpush.bf16.msra.mxu0 0
        %4186 = vmatpush.bf16.msra.mxu0 %v4165
        %4187 = vmatpush.bf16.msra.mxu0 %v4164
        %4188 = vmatpush.bf16.msra.mxu0 %v4163
        %4189 = vmatpush.bf16.msra.mxu0 %v4162
        %4190 = vmatmul.bf16.gmra.mxu0 %v4171
        %v4191 = vpop.f32.mrf.mxu0
        %v4192 = vadd.f32 0.0, %v4191
        %v4193 = vpop.f32.mrf.mxu0
        %v4194 = vadd.f32 0.0, %v4193
        %4195 = vmatmul.bf16.gmra.mxu0 %v4174
        %v4196 = vpop.f32.mrf.mxu0
        %v4197 = vadd.f32 0.0, %v4196
        %v4198 = vpop.f32.mrf.mxu0
        %v4199 = vadd.f32 0.0, %v4198
        %4200 = vmatmul.bf16.gmra.mxu0 %v4177
        %v4201 = vpop.f32.mrf.mxu0
        %v4202 = vadd.f32 0.0, %v4201
        %v4203 = vpop.f32.mrf.mxu0
        %v4204 = vadd.f32 0.0, %v4203
        %4205 = vmatmul.bf16.gmra.mxu0 %v4180
        %v4206 = vpop.f32.mrf.mxu0
        %v4207 = vadd.f32 0.0, %v4206
        %v4208 = vpop.f32.mrf.mxu0
        %v4209 = vadd.f32 0.0, %v4208
        %4210 = vdwg.mxu0
        %v4211 = vadd.f32 %v4100, %v4192
        %v4212 = vadd.f32 %v4101, %v4194
        %v4213 = vadd.f32 %v4102, %v4197
        %v4214 = vadd.f32 %v4103, %v4199
        %v4215 = vadd.f32 %v4104, %v4202
        %v4216 = vadd.f32 %v4105, %v4204
        %v4217 = vadd.f32 %v4106, %v4207
        %v4218 = vadd.f32 %v4107, %v4209
        %v4219 = vld [vmem:[%s4108] sm:$0xf]
        %v4220 = vld [vmem:[%s4108 + $0x4] sm:$0x1]
        %v4221 = vld [vmem:[%s4108 + $0x8] sm:$0xf]
        %v4222 = vld [vmem:[%s4108 + $0xc] sm:$0x1]
        %v4223 = vld [vmem:[%s4108 + $0x10] sm:$0xf]
        %v4224 = vld [vmem:[%s4108 + $0x14] sm:$0x1]
        %v4225 = vld [vmem:[%s4108 + $0x18] sm:$0xf]
        %v4226 = vld [vmem:[%s4108 + $0x1c] sm:$0x1]
        %v4227 = vld [vmem:[%s4108 + $0x20] sm:$0xf]
        %v4228 = vld [vmem:[%s4108 + $0x24] sm:$0x1]
        %v4229 = vld [vmem:[%s4108 + $0x28] sm:$0xf]
        %v4230 = vld [vmem:[%s4108 + $0x2c] sm:$0x1]
        %v4231 = vld [vmem:[%s4108 + $0x30] sm:$0xf]
        %v4232 = vld [vmem:[%s4108 + $0x34] sm:$0x1]
        %v4233 = vld [vmem:[%s4108 + $0x38] sm:$0xf]
        %v4234 = vld [vmem:[%s4108 + $0x3c] sm:$0x1]
        %v4236 = vshrl.u32 %v4219, 16
        %v4238 = vrot.slane %v4236, 4
        %v4239 = vshll.u32 %v4219, 16
        %v4241 = vrot.slane %v4239, 5
        %v4242 = vor.u32 %v4238, %v4241
        %v4243 = vrot.slane %v4242, 4
        %v4245 = vshll.u32 %v4220, 16
        %v4247 = vrot.slane %v4245, 5
        %v4248 = vsel %vm1181, %v4243, %v4247
        %v4250 = vshrl.u32 %v4221, 16
        %v4252 = vrot.slane %v4250, 4
        %v4253 = vshll.u32 %v4221, 16
        %v4255 = vrot.slane %v4253, 5
        %v4256 = vor.u32 %v4252, %v4255
        %v4257 = vrot.slane %v4256, 4
        %v4259 = vshll.u32 %v4222, 16
        %v4261 = vrot.slane %v4259, 5
        %v4262 = vsel %vm1181, %v4257, %v4261
        %v4264 = vshrl.u32 %v4223, 16
        %v4266 = vrot.slane %v4264, 4
        %v4267 = vshll.u32 %v4223, 16
        %v4269 = vrot.slane %v4267, 5
        %v4270 = vor.u32 %v4266, %v4269
        %v4271 = vrot.slane %v4270, 4
        %v4273 = vshll.u32 %v4224, 16
        %v4275 = vrot.slane %v4273, 5
        %v4276 = vsel %vm1181, %v4271, %v4275
        %v4278 = vshrl.u32 %v4225, 16
        %v4280 = vrot.slane %v4278, 4
        %v4281 = vshll.u32 %v4225, 16
        %v4283 = vrot.slane %v4281, 5
        %v4284 = vor.u32 %v4280, %v4283
        %v4285 = vrot.slane %v4284, 4
        %v4287 = vshll.u32 %v4226, 16
        %v4289 = vrot.slane %v4287, 5
        %v4290 = vsel %vm1181, %v4285, %v4289
        %v4292 = vshrl.u32 %v4227, 16
        %v4294 = vrot.slane %v4292, 4
        %v4295 = vshll.u32 %v4227, 16
        %v4297 = vrot.slane %v4295, 5
        %v4298 = vor.u32 %v4294, %v4297
        %v4299 = vrot.slane %v4298, 4
        %v4301 = vshll.u32 %v4228, 16
        %v4303 = vrot.slane %v4301, 5
        %v4304 = vsel %vm1181, %v4299, %v4303
        %v4306 = vshrl.u32 %v4229, 16
        %v4308 = vrot.slane %v4306, 4
        %v4309 = vshll.u32 %v4229, 16
        %v4311 = vrot.slane %v4309, 5
        %v4312 = vor.u32 %v4308, %v4311
        %v4313 = vrot.slane %v4312, 4
        %v4315 = vshll.u32 %v4230, 16
        %v4317 = vrot.slane %v4315, 5
        %v4318 = vsel %vm1181, %v4313, %v4317
        %v4320 = vshrl.u32 %v4231, 16
        %v4322 = vrot.slane %v4320, 4
        %v4323 = vshll.u32 %v4231, 16
        %v4325 = vrot.slane %v4323, 5
        %v4326 = vor.u32 %v4322, %v4325
        %v4327 = vrot.slane %v4326, 4
        %v4329 = vshll.u32 %v4232, 16
        %v4331 = vrot.slane %v4329, 5
        %v4332 = vsel %vm1181, %v4327, %v4331
        %v4334 = vshrl.u32 %v4233, 16
        %v4336 = vrot.slane %v4334, 4
        %v4337 = vshll.u32 %v4233, 16
        %v4339 = vrot.slane %v4337, 5
        %v4340 = vor.u32 %v4336, %v4339
        %v4341 = vrot.slane %v4340, 4
        %v4343 = vshll.u32 %v4234, 16
        %v4345 = vrot.slane %v4343, 5
        %v4346 = vsel %vm1181, %v4341, %v4345
        %s4347 = scalar_lea.vmem [#allocation4], 224
        %v4348 = vld [vmem:[%s4347] sm:$0xf]
        %v4349 = vld [vmem:[%s4347 + $0x4] sm:$0xf]
        %v4350 = vld [vmem:[%s4347 + $0x8] sm:$0xf]
        %v4351 = vld [vmem:[%s4347 + $0xc] sm:$0xf]
        %v4352 = vld [vmem:[%s4347 + $0x10] sm:$0xf]
        %v4353 = vld [vmem:[%s4347 + $0x14] sm:$0xf]
        %v4354 = vld [vmem:[%s4347 + $0x18] sm:$0xf]
        %v4355 = vld [vmem:[%s4347 + $0x1c] sm:$0xf]
        %v4356 = vunpack.c.l.b16 %v4248
        %v4357 = vunpack.c.l.b16 %v4262
        %v4358 = vunpack.c.l.b16 %v4276
        %v4359 = vunpack.c.l.b16 %v4290
        %v4360 = vunpack.c.l.b16 %v4304
        %v4361 = vunpack.c.l.b16 %v4318
        %v4362 = vunpack.c.l.b16 %v4332
        %v4363 = vunpack.c.l.b16 %v4346
        %v4364 = vpack.c.b16 %v4357, %v4356
        %v4365 = vpack.c.b16 %v4359, %v4358
        %v4366 = vpack.c.b16 %v4361, %v4360
        %v4367 = vpack.c.b16 %v4363, %v4362
        %v4376 = vunpack.c.l.b16 %v4348
        %v4377 = vunpack.c.l.b16 %v4349
        %v4378 = vunpack.c.l.b16 %v4350
        %v4379 = vunpack.c.l.b16 %v4351
        %v4380 = vunpack.c.l.b16 %v4352
        %v4381 = vunpack.c.l.b16 %v4353
        %v4382 = vunpack.c.l.b16 %v4354
        %v4383 = vunpack.c.l.b16 %v4355
        %v4384 = vpack.c.b16 %v4377, %v4376
        %v4385 = vpack.c.b16 %v4379, %v4378
        %v4386 = vpack.c.b16 %v4381, %v4380
        %v4387 = vpack.c.b16 %v4383, %v4382
        %v4393 = vsel %vm2574, %v4364, 0
        %v4396 = vsel %vm2574, %v4365, 0
        %v4399 = vsel %vm2574, %v4366, 0
        %v4402 = vsel %vm2574, %v4367, 0
        %4404 = vmatpush.bf16.msra.mxu0 0
        %4405 = vmatpush.bf16.msra.mxu0 0
        %4406 = vmatpush.bf16.msra.mxu0 0
        %4407 = vmatpush.bf16.msra.mxu0 0
        %4408 = vmatpush.bf16.msra.mxu0 %v4387
        %4409 = vmatpush.bf16.msra.mxu0 %v4386
        %4410 = vmatpush.bf16.msra.mxu0 %v4385
        %4411 = vmatpush.bf16.msra.mxu0 %v4384
        %4412 = vmatmul.bf16.gmra.mxu0 %v4393
        %v4413 = vpop.f32.mrf.mxu0
        %v4414 = vadd.f32 0.0, %v4413
        %v4415 = vpop.f32.mrf.mxu0
        %v4416 = vadd.f32 0.0, %v4415
        %4417 = vmatmul.bf16.gmra.mxu0 %v4396
        %v4418 = vpop.f32.mrf.mxu0
        %v4419 = vadd.f32 0.0, %v4418
        %v4420 = vpop.f32.mrf.mxu0
        %v4421 = vadd.f32 0.0, %v4420
        %4422 = vmatmul.bf16.gmra.mxu0 %v4399
        %v4423 = vpop.f32.mrf.mxu0
        %v4424 = vadd.f32 0.0, %v4423
        %v4425 = vpop.f32.mrf.mxu0
        %v4426 = vadd.f32 0.0, %v4425
        %4427 = vmatmul.bf16.gmra.mxu0 %v4402
        %v4428 = vpop.f32.mrf.mxu0
        %v4429 = vadd.f32 0.0, %v4428
        %v4430 = vpop.f32.mrf.mxu0
        %v4431 = vadd.f32 0.0, %v4430
        %4432 = vdwg.mxu0
        %v4433 = vadd.f32 %v4211, %v4414
        %v4434 = vadd.f32 %v4212, %v4416
        %v4435 = vadd.f32 %v4213, %v4419
        %v4436 = vadd.f32 %v4214, %v4421
        %v4437 = vadd.f32 %v4215, %v4424
        %v4438 = vadd.f32 %v4216, %v4426
        %v4439 = vadd.f32 %v4217, %v4429
        %v4440 = vadd.f32 %v4218, %v4431
        %v4441 = vld [vmem:[%s4108] sm:$0xe]
        %v4442 = vld [vmem:[%s4108 + $0x8] sm:$0xe]
        %v4443 = vld [vmem:[%s4108 + $0x10] sm:$0xe]
        %v4444 = vld [vmem:[%s4108 + $0x18] sm:$0xe]
        %v4445 = vld [vmem:[%s4108 + $0x20] sm:$0xe]
        %v4446 = vld [vmem:[%s4108 + $0x28] sm:$0xe]
        %v4447 = vld [vmem:[%s4108 + $0x30] sm:$0xe]
        %v4448 = vld [vmem:[%s4108 + $0x38] sm:$0xe]
        %v4465 = vrot.slane %v4441, 5
        %v4466 = vrot.slane %v4465, 4
        %v4467 = vrot.slane %v4220, 5
        %v4468 = vsel %vm1463, %v4466, %v4467
        %v4469 = vrot.slane %v4442, 5
        %v4470 = vrot.slane %v4469, 4
        %v4471 = vrot.slane %v4222, 5
        %v4472 = vsel %vm1463, %v4470, %v4471
        %v4473 = vrot.slane %v4443, 5
        %v4474 = vrot.slane %v4473, 4
        %v4475 = vrot.slane %v4224, 5
        %v4476 = vsel %vm1463, %v4474, %v4475
        %v4477 = vrot.slane %v4444, 5
        %v4478 = vrot.slane %v4477, 4
        %v4479 = vrot.slane %v4226, 5
        %v4480 = vsel %vm1463, %v4478, %v4479
        %v4481 = vrot.slane %v4445, 5
        %v4482 = vrot.slane %v4481, 4
        %v4483 = vrot.slane %v4228, 5
        %v4484 = vsel %vm1463, %v4482, %v4483
        %v4485 = vrot.slane %v4446, 5
        %v4486 = vrot.slane %v4485, 4
        %v4487 = vrot.slane %v4230, 5
        %v4488 = vsel %vm1463, %v4486, %v4487
        %v4489 = vrot.slane %v4447, 5
        %v4490 = vrot.slane %v4489, 4
        %v4491 = vrot.slane %v4232, 5
        %v4492 = vsel %vm1463, %v4490, %v4491
        %v4493 = vrot.slane %v4448, 5
        %v4494 = vrot.slane %v4493, 4
        %v4495 = vrot.slane %v4234, 5
        %v4496 = vsel %vm1463, %v4494, %v4495
        %s4497 = scalar_lea.vmem [#allocation4], 256
        %v4498 = vld [vmem:[%s4497] sm:$0xf]
        %v4499 = vld [vmem:[%s4497 + $0x4] sm:$0xf]
        %v4500 = vld [vmem:[%s4497 + $0x8] sm:$0xf]
        %v4501 = vld [vmem:[%s4497 + $0xc] sm:$0xf]
        %v4502 = vld [vmem:[%s4497 + $0x10] sm:$0xf]
        %v4503 = vld [vmem:[%s4497 + $0x14] sm:$0xf]
        %v4504 = vld [vmem:[%s4497 + $0x18] sm:$0xf]
        %v4505 = vld [vmem:[%s4497 + $0x1c] sm:$0xf]
        %v4506 = vunpack.c.l.b16 %v4468
        %v4507 = vunpack.c.l.b16 %v4472
        %v4508 = vunpack.c.l.b16 %v4476
        %v4509 = vunpack.c.l.b16 %v4480
        %v4510 = vunpack.c.l.b16 %v4484
        %v4511 = vunpack.c.l.b16 %v4488
        %v4512 = vunpack.c.l.b16 %v4492
        %v4513 = vunpack.c.l.b16 %v4496
        %v4514 = vpack.c.b16 %v4507, %v4506
        %v4515 = vpack.c.b16 %v4509, %v4508
        %v4516 = vpack.c.b16 %v4511, %v4510
        %v4517 = vpack.c.b16 %v4513, %v4512
        %v4526 = vunpack.c.l.b16 %v4498
        %v4527 = vunpack.c.l.b16 %v4499
        %v4528 = vunpack.c.l.b16 %v4500
        %v4529 = vunpack.c.l.b16 %v4501
        %v4530 = vunpack.c.l.b16 %v4502
        %v4531 = vunpack.c.l.b16 %v4503
        %v4532 = vunpack.c.l.b16 %v4504
        %v4533 = vunpack.c.l.b16 %v4505
        %v4534 = vpack.c.b16 %v4527, %v4526
        %v4535 = vpack.c.b16 %v4529, %v4528
        %v4536 = vpack.c.b16 %v4531, %v4530
        %v4537 = vpack.c.b16 %v4533, %v4532
        %v4543 = vsel %vm2574, %v4514, 0
        %v4546 = vsel %vm2574, %v4515, 0
        %v4549 = vsel %vm2574, %v4516, 0
        %v4552 = vsel %vm2574, %v4517, 0
        %4554 = vmatpush.bf16.msra.mxu0 0
        %4555 = vmatpush.bf16.msra.mxu0 0
        %4556 = vmatpush.bf16.msra.mxu0 0
        %4557 = vmatpush.bf16.msra.mxu0 0
        %4558 = vmatpush.bf16.msra.mxu0 %v4537
        %4559 = vmatpush.bf16.msra.mxu0 %v4536
        %4560 = vmatpush.bf16.msra.mxu0 %v4535
        %4561 = vmatpush.bf16.msra.mxu0 %v4534
        %4562 = vmatmul.bf16.gmra.mxu0 %v4543
        %v4563 = vpop.f32.mrf.mxu0
        %v4564 = vadd.f32 0.0, %v4563
        %v4565 = vpop.f32.mrf.mxu0
        %v4566 = vadd.f32 0.0, %v4565
        %4567 = vmatmul.bf16.gmra.mxu0 %v4546
        %v4568 = vpop.f32.mrf.mxu0
        %v4569 = vadd.f32 0.0, %v4568
        %v4570 = vpop.f32.mrf.mxu0
        %v4571 = vadd.f32 0.0, %v4570
        %4572 = vmatmul.bf16.gmra.mxu0 %v4549
        %v4573 = vpop.f32.mrf.mxu0
        %v4574 = vadd.f32 0.0, %v4573
        %v4575 = vpop.f32.mrf.mxu0
        %v4576 = vadd.f32 0.0, %v4575
        %4577 = vmatmul.bf16.gmra.mxu0 %v4552
        %v4578 = vpop.f32.mrf.mxu0
        %v4579 = vadd.f32 0.0, %v4578
        %v4580 = vpop.f32.mrf.mxu0
        %v4581 = vadd.f32 0.0, %v4580
        %4582 = vdwg.mxu0
        %v4583 = vadd.f32 %v4433, %v4564
        %v4584 = vadd.f32 %v4434, %v4566
        %v4585 = vadd.f32 %v4435, %v4569
        %v4586 = vadd.f32 %v4436, %v4571
        %v4587 = vadd.f32 %v4437, %v4574
        %v4588 = vadd.f32 %v4438, %v4576
        %v4589 = vadd.f32 %v4439, %v4579
        %v4590 = vadd.f32 %v4440, %v4581
        %v4591 = vld [vmem:[%s13] sm:$0x1]
        %v4593 = vperm.slane %v4591, 0
        %v4595 = vadd.f32 %v4583, %v4593
        %v4596 = vadd.f32 %v4584, %v4593
        %v4597 = vadd.f32 %v4585, %v4593
        %v4598 = vadd.f32 %v4586, %v4593
        %v4599 = vadd.f32 %v4587, %v4593
        %v4600 = vadd.f32 %v4588, %v4593
        %v4601 = vadd.f32 %v4589, %v4593
        %v4602 = vadd.f32 %v4590, %v4593
        %v4603 = vpack.c.bf16 %v561, %v560
        %v4604 = vpack.c.bf16 %v563, %v562
        %v4605 = vpack.c.bf16 %v565, %v564
        %v4606 = vpack.c.bf16 %v567, %v566
        %v4607 = vld [vmem:[%s14] sm:$0xf]
        %v4608 = vld [vmem:[%s14 + $0x4] sm:$0xf]
        %v4609 = vld [vmem:[%s14 + $0x8] sm:$0xf]
        %v4610 = vld [vmem:[%s14 + $0xc] sm:$0xf]
        %v4611 = vld [vmem:[%s15] sm:$0x1]
        %v4613 = vperm.slane %v4611, 0
        %v4619 = vunpack.c.l.b16 %v4607
        %v4620 = vunpack.c.l.b16 %v4608
        %v4621 = vunpack.c.l.b16 %v4609
        %v4622 = vunpack.c.l.b16 %v4610
        %v4623 = vpack.c.b16 %v4620, %v4619
        %v4624 = vpack.c.b16 %v4622, %v4621
        %v4628 = vsel %vm574, %v4603, 0
        %v4631 = vsel %vm574, %v4604, 0
        %v4634 = vsel %vm574, %v4605, 0
        %v4637 = vsel %vm574, %v4606, 0
        %4639 = vmatpush.bf16.msra.mxu0 0
        %4640 = vmatpush.bf16.msra.mxu0 0
        %4641 = vmatpush.bf16.msra.mxu0 0
        %4642 = vmatpush.bf16.msra.mxu0 0
        %4643 = vmatpush.bf16.msra.mxu0 0
        %4644 = vmatpush.bf16.msra.mxu0 0
        %4645 = vmatpush.bf16.msra.mxu0 %v4624
        %4646 = vmatpush.bf16.msra.mxu0 %v4623
        %4647 = vmatmul.bf16.gmra.mxu0 %v4628
        %v4648 = vpop.f32.mrf.mxu0
        %v4649 = vadd.f32 %v4613, %v4648
        %v4650 = vpop.f32.mrf.mxu0
        %v4651 = vadd.f32 %v4613, %v4650
        %4652 = vmatmul.bf16.gmra.mxu0 %v4631
        %v4653 = vpop.f32.mrf.mxu0
        %v4654 = vadd.f32 %v4613, %v4653
        %v4655 = vpop.f32.mrf.mxu0
        %v4656 = vadd.f32 %v4613, %v4655
        %4657 = vmatmul.bf16.gmra.mxu0 %v4634
        %v4658 = vpop.f32.mrf.mxu0
        %v4659 = vadd.f32 %v4613, %v4658
        %v4660 = vpop.f32.mrf.mxu0
        %v4661 = vadd.f32 %v4613, %v4660
        %4662 = vmatmul.bf16.gmra.mxu0 %v4637
        %v4663 = vpop.f32.mrf.mxu0
        %v4664 = vadd.f32 %v4613, %v4663
        %v4665 = vpop.f32.mrf.mxu0
        %v4666 = vadd.f32 %v4613, %v4665
        %4667 = vdwg.mxu0
        %v4668 = vadd.f32 %v4595, %v4649
        %v4669 = vadd.f32 %v4596, %v4651
        %v4670 = vadd.f32 %v4597, %v4654
        %v4671 = vadd.f32 %v4598, %v4656
        %v4672 = vadd.f32 %v4599, %v4659
        %v4673 = vadd.f32 %v4600, %v4661
        %v4674 = vadd.f32 %v4601, %v4664
        %v4675 = vadd.f32 %v4602, %v4666
        %4676 = vst.msk [vmem:[%s542] sm:$0xff] %vm2574, %v4668
        %4677 = vst.msk [vmem:[%s542 + $0x8] sm:$0xff] %vm2574, %v4669
        %4678 = vst.msk [vmem:[%s542 + $0x10] sm:$0xff] %vm2574, %v4670
        %4679 = vst.msk [vmem:[%s542 + $0x18] sm:$0xff] %vm2574, %v4671
        %4680 = vst.msk [vmem:[%s542 + $0x20] sm:$0xff] %vm2574, %v4672
        %4681 = vst.msk [vmem:[%s542 + $0x28] sm:$0xff] %vm2574, %v4673
        %4682 = vst.msk [vmem:[%s542 + $0x30] sm:$0xff] %vm2574, %v4674
        %4683 = vst.msk [vmem:[%s542 + $0x38] sm:$0xff] %vm2574, %v4675
        %s4684 = sand.u32 %s385, 1
        %s4685 = scalar_lea.sflag [#allocation6], %s4684
        %s4686 = sand.u32 %s385, 1
        %s4687 = smul.addr %s4686, 64
        %s4688 = scalar_lea.vmem [#allocation7], %s4687
        // Predicated region
        $region89: #{resnet_block_forward.1} parent=83 // pred_check
          %p4689 = pneg %p395
        $region90: #{resnet_block_forward.1} parent=83 // pred_check_branch
          %4691 = sbr.rel (%p4689) target = $region92
        $region91: #{resnet_block_forward.1} parent=83 // pred_region
          %4693 = vsyncadd %s4685, 0
          %s4694 = smul.addr %s31, 8
          %s4695 = smul.addr %s4694, 8
          %s4696 = scalar_lea.hbm %s16, %s4695
          %s4697 = sshll.u32 %s4688, 4
          %s4698 = int_to_ptr.vmem [resolvable:$true] %s4697
          %s4699 = sshll.u32 %s4696, 4
          %s4700 = int_to_ptr.hbm [resolvable:$true] %s4699
          %4705 = dma.vmem_to_hbm [thread:$0]  %s4698, 1024, %s4700, %s4685, 128, 128, 8
        $region92: #{resnet_block_forward.1} parent=83 // pred_fallthru
          _
      $region84: #{resnet_block_forward.1} parent=5 // pred_fallthru
        _
      %p4706 = scmp.le.s32.totalorder 2, %s26
      // Predicated region
      $region93: #{resnet_block_forward.1} parent=5 // pred_check
        %p4707 = pneg %p4706
      $region94: #{resnet_block_forward.1} parent=5 // pred_check_branch
        %4709 = sbr.rel (%p4707) target = $region96
      $region95: #{resnet_block_forward.1} parent=5 // pred_region
        %s4710 = ssub.s32 %s26, 2
        // Predicated region
        $region97: #{resnet_block_forward.1} parent=95 // pred_check
          %p4711 = pneg %p401
        $region98: #{resnet_block_forward.1} parent=95 // pred_check_branch
          %4713 = sbr.rel (%p4711) target = $region100
        $region99: #{resnet_block_forward.1} parent=95 // pred_region
          %s4714 = sand.u32 %s386, 1
          %s4715 = scalar_lea.sflag [#allocation6], %s4714
          %s4716 = sand.u32 %s386, 1
          %s4717 = smul.addr %s4716, 64
          %s4718 = scalar_lea.vmem [#allocation7], %s4717
          %4720 = dma.done %s4715, 1024
        $region100: #{resnet_block_forward.1} parent=95 // pred_fallthru
          _
      $region96: #{resnet_block_forward.1} parent=5 // pred_fallthru
        _
    $region6: #{resnet_block_forward.1} parent=1 // loop_footer
      %s30 = sadd.s32 1, %s26
    $region7: #{resnet_block_forward.1} parent=1 // loop_footer_branch
      %25 = sbr.rel target = $region3
    $region8: #{resnet_block_forward.1} parent=1 // loop_exit
      _
    %4721 = vsyncpa [#allocation5], 1
    %s4722 = scalar_lea.sflag [#allocation5], 1
    %4723 = vsyncpa %s4722, 1
    %4724 = vsyncpa [#allocation6], 1
    %s4725 = scalar_lea.sflag [#allocation6], 1
    %4726 = vsyncpa %s4725, 1

</llo_original>
